<compile_context>
chip_gen: v7x
topology: tpu7x:2x2x1
jax: 0.10.0
libtpu: 0.0.40
codegen_flags: <defaults>
</compile_context>

<pallas_src>
import functools

import jax
import jax.numpy as jnp
from jax.experimental import pallas as pl
from jax.experimental.pallas import tpu as pltpu

LANE = 128
SUBLANE = 8


def _round_up(x, m):
    return (x + m - 1) // m * m


# --------------------------------------------------------------------------
# Fused im2col + matmul accumulation (shared by both kernels)
# --------------------------------------------------------------------------
def _conv_accum(x_ref, w_ref, *, H, W, k):
    # x_ref: (1, Hp, Wp, Cin_p) bf16 (spatially pre-padded, SAME)
    # w_ref: (k*k, Cin_p, Cout_p) bf16
    x = x_ref[0]                                   # (Hp, Wp, Cin_p)
    Cin_p = x.shape[-1]
    Cout_p = w_ref.shape[-1]
    acc = jnp.zeros((H * W, Cout_p), jnp.float32)
    for kh in range(k):                            # unrolled k*k shifted matmuls
        for kw in range(k):
            xs = x[kh:kh + H, kw:kw + W, :]        # (H, W, Cin_p) shifted window
            xs = xs.reshape(H * W, Cin_p)
            acc = acc + jnp.dot(xs, w_ref[kh * k + kw],
                                preferred_element_type=jnp.float32)
    return acc


# --------------------------------------------------------------------------
# Kernel 1 (bn=True only): per-image channel sum / sum-of-squares (no h write)
# --------------------------------------------------------------------------
def _stats_kernel(x_ref, w_ref, psum_ref, pssq_ref, *, H, W, k):
    acc = _conv_accum(x_ref, w_ref, H=H, W=W, k=k)
    psum_ref[0] = jnp.sum(acc, axis=0, keepdims=True)
    pssq_ref[0] = jnp.sum(acc * acc, axis=0, keepdims=True)


def _conv_stats(x_pad, w_mat, *, H, W, k, Cout_p):
    N, Hp, Wp, Cin_p = x_pad.shape
    kern = functools.partial(_stats_kernel, H=H, W=W, k=k)
    return pl.pallas_call(
        kern,
        out_shape=(
            jax.ShapeDtypeStruct((N, 1, Cout_p), jnp.float32),   # partial sum
            jax.ShapeDtypeStruct((N, 1, Cout_p), jnp.float32),   # partial ssq
        ),
        grid_spec=pltpu.PrefetchScalarGridSpec(
            num_scalar_prefetch=0,
            grid=(N,),
            in_specs=[
                pl.BlockSpec((1, Hp, Wp, Cin_p), lambda n: (n, 0, 0, 0)),
                # constant block index -> weights stay resident across the grid
                pl.BlockSpec((k * k, Cin_p, Cout_p), lambda n: (0, 0, 0)),
            ],
            out_specs=[
                pl.BlockSpec((1, 1, Cout_p), lambda n: (n, 0, 0)),
                pl.BlockSpec((1, 1, Cout_p), lambda n: (n, 0, 0)),
            ],
        ),
        compiler_params=pltpu.CompilerParams(
            dimension_semantics=("parallel",),       # independent per image
            vmem_limit_bytes=32 * 1024 * 1024),
    )(x_pad, w_mat)


# --------------------------------------------------------------------------
# Kernel 2: conv + per-channel affine (scale * conv(x) + shift), fused
#   bn=True : scale = gamma * inv_std, shift = beta - mean * gamma * inv_std
#   bn=False: scale = 1,               shift = conv bias
# --------------------------------------------------------------------------
def _conv_affine_kernel(x_ref, w_ref, scale_ref, shift_ref, out_ref, *, H, W, k):
    acc = _conv_accum(x_ref, w_ref, H=H, W=W, k=k)
    out_ref[0] = acc * scale_ref[0] + shift_ref[0]   # (1, Cout_p) broadcast


def _conv_affine(x_pad, w_mat, scale, shift, *, H, W, k, Cout_p):
    N, Hp, Wp, Cin_p = x_pad.shape
    kern = functools.partial(_conv_affine_kernel, H=H, W=W, k=k)
    return pl.pallas_call(
        kern,
        out_shape=jax.ShapeDtypeStruct((N, H * W, Cout_p), jnp.float32),
        grid_spec=pltpu.PrefetchScalarGridSpec(
            num_scalar_prefetch=0,
            grid=(N,),
            in_specs=[
                pl.BlockSpec((1, Hp, Wp, Cin_p), lambda n: (n, 0, 0, 0)),
                pl.BlockSpec((k * k, Cin_p, Cout_p), lambda n: (0, 0, 0)),
                pl.BlockSpec((1, 1, Cout_p), lambda n: (0, 0, 0)),
                pl.BlockSpec((1, 1, Cout_p), lambda n: (0, 0, 0)),
            ],
            out_specs=pl.BlockSpec((1, H * W, Cout_p), lambda n: (n, 0, 0)),
        ),
        compiler_params=pltpu.CompilerParams(
            dimension_semantics=("parallel",),
            vmem_limit_bytes=32 * 1024 * 1024),
    )(x_pad, w_mat, scale, shift)


# --------------------------------------------------------------------------
# Forward of the PyTorch `Conv` module (training-mode BN batch stats)
# --------------------------------------------------------------------------
@functools.partial(jax.jit, static_argnames=("kernel_size", "bn"))
def conv_forward(x_nchw, conv_w, conv_b, bn_gamma, bn_beta, *, kernel_size, bn):
    N, Cin, H, W = x_nchw.shape
    Cout = conv_w.shape[0]
    k = kernel_size
    pad = k // 2
    Cin_p = _round_up(Cin, SUBLANE)
    Cout_p = _round_up(Cout, LANE)
    M = N * H * W

    # NCHW -> NHWC, pad channels/spatial, cast to bf16 (one cheap XLA pass).
    x = jnp.transpose(x_nchw, (0, 2, 3, 1))
    x = jnp.pad(x, ((0, 0), (pad, pad), (pad, pad), (0, Cin_p - Cin)))
    x_pad = x.astype(jnp.bfloat16)

    # OIHW -> (k*k, Cin_p, Cout_p), zero-padded, bf16.
    w = jnp.transpose(conv_w, (2, 3, 1, 0))          # (k, k, Cin, Cout)
    w = jnp.pad(w, ((0, 0), (0, 0), (0, Cin_p - Cin), (0, Cout_p - Cout)))
    w_mat = w.reshape(k * k, Cin_p, Cout_p).astype(jnp.bfloat16)

    if bn:
        psum, pssq = _conv_stats(x_pad, w_mat, H=H, W=W, k=k, Cout_p=Cout_p)
        eps = 1e-5
        mean = jnp.sum(psum, axis=(0, 1)) / M        # (Cout_p,)
        # TODO(synk): E[x^2]-E[x]^2 in f32 can lose precision for huge M /
        # strongly non-centered activations (Welford combine would fix it).
        var = jnp.sum(pssq, axis=(0, 1)) / M - mean * mean
        inv_std = jax.lax.rsqrt(var + eps)
        gamma_p = jnp.pad(bn_gamma.astype(jnp.float32), (0, Cout_p - Cout))
        beta_p = jnp.pad(bn_beta.astype(jnp.float32), (0, Cout_p - Cout))
        scale = (gamma_p * inv_std).reshape(1, 1, Cout_p)
        shift = (beta_p - mean * gamma_p * inv_std).reshape(1, 1, Cout_p)
    else:
        b = conv_b if conv_b is not None else jnp.zeros((Cout,), jnp.float32)
        scale = jnp.ones((1, 1, Cout_p), jnp.float32)
        shift = jnp.pad(b.astype(jnp.float32),
                        (0, Cout_p - Cout)).reshape(1, 1, Cout_p)

    y = _conv_affine(x_pad, w_mat, scale, shift, H=H, W=W, k=k, Cout_p=Cout_p)
    y = y[:, :, :Cout].reshape(N, H, W, Cout)
    return jnp.transpose(y, (0, 3, 1, 2))            # back to PyTorch NCHW


# --------------------------------------------------------------------------
# Reference (plain JAX).  Inputs rounded to bf16 to match the kernel's
# bf16-multiply / f32-accumulate contract.
# --------------------------------------------------------------------------
def _reference(x, w, b, gamma, beta, *, bn):
    xb = x.astype(jnp.bfloat16).astype(jnp.float32)
    wb = w.astype(jnp.bfloat16).astype(jnp.float32)
    y = jax.lax.conv_general_dilated(
        xb, wb, window_strides=(1, 1), padding="SAME",
        dimension_numbers=("NCHW", "OIHW", "NCHW"))
    if bn:
        mean = jnp.mean(y, axis=(0, 2, 3), keepdims=True)
        var = jnp.var(y, axis=(0, 2, 3), keepdims=True)
        y = (y - mean) * jax.lax.rsqrt(var + 1e-5)
        y = y * gamma[None, :, None, None] + beta[None, :, None, None]
    elif b is not None:
        y = y + b[None, :, None, None]
    return y


if __name__ == "__main__":
    # Module config: Conv(filters0=4, filters1=8, kernel_size=3, bn=True)
    N, Cin, Cout, H, W, k = 2, 4, 8, 16, 16, 3

    key = jax.random.PRNGKey(0)
    kx, kw, kb = jax.random.split(key, 3)
    x = jax.random.normal(kx, (N, Cin, H, W), jnp.float32)
    conv_w = jax.random.normal(kw, (Cout, Cin, k, k), jnp.float32) * 0.1
    conv_b = jax.random.normal(kb, (Cout,), jnp.float32) * 0.1
    bn_gamma = jnp.ones((Cout,), jnp.float32)    # PyTorch BatchNorm2d default
    bn_beta = jnp.zeros((Cout,), jnp.float32)

    # --- bn=True path (conv bias disabled, matches the PyTorch module) ---
    y = conv_forward(x, conv_w, None, bn_gamma, bn_beta, kernel_size=k, bn=True)
    jax.block_until_ready(y)
    y_ref = _reference(x, conv_w, None, bn_gamma, bn_beta, bn=True)
    assert y.shape == (N, Cout, H, W)
    assert jnp.allclose(y, y_ref, atol=1e-3, rtol=1e-3), \
        float(jnp.max(jnp.abs(y - y_ref)))

    # --- bn=False path (bias folded into the fused conv kernel, single pass) ---
    y2 = conv_forward(x, conv_w, conv_b, bn_gamma, bn_beta, kernel_size=k, bn=False)
    jax.block_until_ready(y2)
    y2_ref = _reference(x, conv_w, conv_b, bn_gamma, bn_beta, bn=False)
    assert jnp.allclose(y2, y2_ref, atol=1e-3, rtol=1e-3), \
        float(jnp.max(jnp.abs(y2 - y2_ref)))

    print("KERNEL_OK")
</pallas_src>

<mosaic_0001>
module attributes {stable_mosaic.version = 11 : i64} {
  func.func @_stats_kernel(%arg0: i32, %arg1: memref<1x18x18x8xbf16, #tpu.memory_space<vmem>>, %arg2: memref<9x8x128xbf16, #tpu.memory_space<vmem>>, %arg3: memref<1x1x128xf32, #tpu.memory_space<vmem>>, %arg4: memref<1x1x128xf32, #tpu.memory_space<vmem>>) attributes {dimension_semantics = [#tpu.dimension_semantics<parallel>], iteration_bounds = array<i64: 2>, scalar_prefetch = 0 : i64, scratch_operands = 0 : i64, tpu.core_type = #tpu.core_type<tc>, window_params = [{transform_indices = @transform_0, window_bounds = array<i64: 1, 18, 18, 8>}, {pipeline_mode = #tpu.pipeline_mode<synchronous>, transform_indices = @transform_1, window_bounds = array<i64: 9, 8, 128>}, {transform_indices = @transform_2, window_bounds = array<i64: 1, 1, 128>}, {transform_indices = @transform_3, window_bounds = array<i64: 1, 1, 128>}]} {
    %c0 = arith.constant 0 : index
    %c0_0 = arith.constant 0 : index
    %c0_1 = arith.constant 0 : index
    %c0_2 = arith.constant 0 : index
    %0 = vector.load %arg1[%c0, %c0_0, %c0_1, %c0_2] : memref<1x18x18x8xbf16, #tpu.memory_space<vmem>>, vector<1x18x18x8xbf16>
    %1 = vector.shape_cast %0 : vector<1x18x18x8xbf16> to vector<18x18x8xbf16>
    %cst = arith.constant 0.000000e+00 : f32
    %2 = vector.broadcast %cst : f32 to vector<256x128xf32>
    %3 = vector.extract_strided_slice %1 {offsets = [0, 0, 0], sizes = [16, 16, 8], strides = [1, 1, 1]} : vector<18x18x8xbf16> to vector<16x16x8xbf16>
    %4 = vector.shape_cast %3 : vector<16x16x8xbf16> to vector<256x8xbf16>
    %c0_3 = arith.constant 0 : index
    %c0_4 = arith.constant 0 : index
    %c0_5 = arith.constant 0 : index
    %5 = vector.load %arg2[%c0_3, %c0_4, %c0_5] : memref<9x8x128xbf16, #tpu.memory_space<vmem>>, vector<1x8x128xbf16>
    %6 = vector.shape_cast %5 : vector<1x8x128xbf16> to vector<8x128xbf16>
    %cst_6 = arith.constant dense<0.000000e+00> : vector<256x128xf32>
    %7 = tpu.matmul %4, %6, %cst_6 {dimension_numbers = #tpu.dot_dimension_numbers<[1], [0], [0], [1], [0, 0, 1, 1], [], []>} : vector<256x8xbf16>, vector<8x128xbf16>, vector<256x128xf32> -> vector<256x128xf32>
    %8 = arith.addf %2, %7 : vector<256x128xf32>
    %9 = vector.extract_strided_slice %1 {offsets = [0, 1, 0], sizes = [16, 16, 8], strides = [1, 1, 1]} : vector<18x18x8xbf16> to vector<16x16x8xbf16>
    %10 = vector.shape_cast %9 : vector<16x16x8xbf16> to vector<256x8xbf16>
    %c1 = arith.constant 1 : index
    %c0_7 = arith.constant 0 : index
    %c0_8 = arith.constant 0 : index
    %11 = vector.load %arg2[%c1, %c0_7, %c0_8] : memref<9x8x128xbf16, #tpu.memory_space<vmem>>, vector<1x8x128xbf16>
    %12 = vector.shape_cast %11 : vector<1x8x128xbf16> to vector<8x128xbf16>
    %cst_9 = arith.constant dense<0.000000e+00> : vector<256x128xf32>
    %13 = tpu.matmul %10, %12, %cst_9 {dimension_numbers = #tpu.dot_dimension_numbers<[1], [0], [0], [1], [0, 0, 1, 1], [], []>} : vector<256x8xbf16>, vector<8x128xbf16>, vector<256x128xf32> -> vector<256x128xf32>
    %14 = arith.addf %8, %13 : vector<256x128xf32>
    %15 = vector.extract_strided_slice %1 {offsets = [0, 2, 0], sizes = [16, 16, 8], strides = [1, 1, 1]} : vector<18x18x8xbf16> to vector<16x16x8xbf16>
    %16 = vector.shape_cast %15 : vector<16x16x8xbf16> to vector<256x8xbf16>
    %c2 = arith.constant 2 : index
    %c0_10 = arith.constant 0 : index
    %c0_11 = arith.constant 0 : index
    %17 = vector.load %arg2[%c2, %c0_10, %c0_11] : memref<9x8x128xbf16, #tpu.memory_space<vmem>>, vector<1x8x128xbf16>
    %18 = vector.shape_cast %17 : vector<1x8x128xbf16> to vector<8x128xbf16>
    %cst_12 = arith.constant dense<0.000000e+00> : vector<256x128xf32>
    %19 = tpu.matmul %16, %18, %cst_12 {dimension_numbers = #tpu.dot_dimension_numbers<[1], [0], [0], [1], [0, 0, 1, 1], [], []>} : vector<256x8xbf16>, vector<8x128xbf16>, vector<256x128xf32> -> vector<256x128xf32>
    %20 = arith.addf %14, %19 : vector<256x128xf32>
    %21 = vector.extract_strided_slice %1 {offsets = [1, 0, 0], sizes = [16, 16, 8], strides = [1, 1, 1]} : vector<18x18x8xbf16> to vector<16x16x8xbf16>
    %22 = vector.shape_cast %21 : vector<16x16x8xbf16> to vector<256x8xbf16>
    %c3 = arith.constant 3 : index
    %c0_13 = arith.constant 0 : index
    %c0_14 = arith.constant 0 : index
    %23 = vector.load %arg2[%c3, %c0_13, %c0_14] : memref<9x8x128xbf16, #tpu.memory_space<vmem>>, vector<1x8x128xbf16>
    %24 = vector.shape_cast %23 : vector<1x8x128xbf16> to vector<8x128xbf16>
    %cst_15 = arith.constant dense<0.000000e+00> : vector<256x128xf32>
    %25 = tpu.matmul %22, %24, %cst_15 {dimension_numbers = #tpu.dot_dimension_numbers<[1], [0], [0], [1], [0, 0, 1, 1], [], []>} : vector<256x8xbf16>, vector<8x128xbf16>, vector<256x128xf32> -> vector<256x128xf32>
    %26 = arith.addf %20, %25 : vector<256x128xf32>
    %27 = vector.extract_strided_slice %1 {offsets = [1, 1, 0], sizes = [16, 16, 8], strides = [1, 1, 1]} : vector<18x18x8xbf16> to vector<16x16x8xbf16>
    %28 = vector.shape_cast %27 : vector<16x16x8xbf16> to vector<256x8xbf16>
    %c4 = arith.constant 4 : index
    %c0_16 = arith.constant 0 : index
    %c0_17 = arith.constant 0 : index
    %29 = vector.load %arg2[%c4, %c0_16, %c0_17] : memref<9x8x128xbf16, #tpu.memory_space<vmem>>, vector<1x8x128xbf16>
    %30 = vector.shape_cast %29 : vector<1x8x128xbf16> to vector<8x128xbf16>
    %cst_18 = arith.constant dense<0.000000e+00> : vector<256x128xf32>
    %31 = tpu.matmul %28, %30, %cst_18 {dimension_numbers = #tpu.dot_dimension_numbers<[1], [0], [0], [1], [0, 0, 1, 1], [], []>} : vector<256x8xbf16>, vector<8x128xbf16>, vector<256x128xf32> -> vector<256x128xf32>
    %32 = arith.addf %26, %31 : vector<256x128xf32>
    %33 = vector.extract_strided_slice %1 {offsets = [1, 2, 0], sizes = [16, 16, 8], strides = [1, 1, 1]} : vector<18x18x8xbf16> to vector<16x16x8xbf16>
    %34 = vector.shape_cast %33 : vector<16x16x8xbf16> to vector<256x8xbf16>
    %c5 = arith.constant 5 : index
    %c0_19 = arith.constant 0 : index
    %c0_20 = arith.constant 0 : index
    %35 = vector.load %arg2[%c5, %c0_19, %c0_20] : memref<9x8x128xbf16, #tpu.memory_space<vmem>>, vector<1x8x128xbf16>
    %36 = vector.shape_cast %35 : vector<1x8x128xbf16> to vector<8x128xbf16>
    %cst_21 = arith.constant dense<0.000000e+00> : vector<256x128xf32>
    %37 = tpu.matmul %34, %36, %cst_21 {dimension_numbers = #tpu.dot_dimension_numbers<[1], [0], [0], [1], [0, 0, 1, 1], [], []>} : vector<256x8xbf16>, vector<8x128xbf16>, vector<256x128xf32> -> vector<256x128xf32>
    %38 = arith.addf %32, %37 : vector<256x128xf32>
    %39 = vector.extract_strided_slice %1 {offsets = [2, 0, 0], sizes = [16, 16, 8], strides = [1, 1, 1]} : vector<18x18x8xbf16> to vector<16x16x8xbf16>
    %40 = vector.shape_cast %39 : vector<16x16x8xbf16> to vector<256x8xbf16>
    %c6 = arith.constant 6 : index
    %c0_22 = arith.constant 0 : index
    %c0_23 = arith.constant 0 : index
    %41 = vector.load %arg2[%c6, %c0_22, %c0_23] : memref<9x8x128xbf16, #tpu.memory_space<vmem>>, vector<1x8x128xbf16>
    %42 = vector.shape_cast %41 : vector<1x8x128xbf16> to vector<8x128xbf16>
    %cst_24 = arith.constant dense<0.000000e+00> : vector<256x128xf32>
    %43 = tpu.matmul %40, %42, %cst_24 {dimension_numbers = #tpu.dot_dimension_numbers<[1], [0], [0], [1], [0, 0, 1, 1], [], []>} : vector<256x8xbf16>, vector<8x128xbf16>, vector<256x128xf32> -> vector<256x128xf32>
    %44 = arith.addf %38, %43 : vector<256x128xf32>
    %45 = vector.extract_strided_slice %1 {offsets = [2, 1, 0], sizes = [16, 16, 8], strides = [1, 1, 1]} : vector<18x18x8xbf16> to vector<16x16x8xbf16>
    %46 = vector.shape_cast %45 : vector<16x16x8xbf16> to vector<256x8xbf16>
    %c7 = arith.constant 7 : index
    %c0_25 = arith.constant 0 : index
    %c0_26 = arith.constant 0 : index
    %47 = vector.load %arg2[%c7, %c0_25, %c0_26] : memref<9x8x128xbf16, #tpu.memory_space<vmem>>, vector<1x8x128xbf16>
    %48 = vector.shape_cast %47 : vector<1x8x128xbf16> to vector<8x128xbf16>
    %cst_27 = arith.constant dense<0.000000e+00> : vector<256x128xf32>
    %49 = tpu.matmul %46, %48, %cst_27 {dimension_numbers = #tpu.dot_dimension_numbers<[1], [0], [0], [1], [0, 0, 1, 1], [], []>} : vector<256x8xbf16>, vector<8x128xbf16>, vector<256x128xf32> -> vector<256x128xf32>
    %50 = arith.addf %44, %49 : vector<256x128xf32>
    %51 = vector.extract_strided_slice %1 {offsets = [2, 2, 0], sizes = [16, 16, 8], strides = [1, 1, 1]} : vector<18x18x8xbf16> to vector<16x16x8xbf16>
    %52 = vector.shape_cast %51 : vector<16x16x8xbf16> to vector<256x8xbf16>
    %c8 = arith.constant 8 : index
    %c0_28 = arith.constant 0 : index
    %c0_29 = arith.constant 0 : index
    %53 = vector.load %arg2[%c8, %c0_28, %c0_29] : memref<9x8x128xbf16, #tpu.memory_space<vmem>>, vector<1x8x128xbf16>
    %54 = vector.shape_cast %53 : vector<1x8x128xbf16> to vector<8x128xbf16>
    %cst_30 = arith.constant dense<0.000000e+00> : vector<256x128xf32>
    %55 = tpu.matmul %52, %54, %cst_30 {dimension_numbers = #tpu.dot_dimension_numbers<[1], [0], [0], [1], [0, 0, 1, 1], [], []>} : vector<256x8xbf16>, vector<8x128xbf16>, vector<256x128xf32> -> vector<256x128xf32>
    %56 = arith.addf %50, %55 : vector<256x128xf32>
    %cst_31 = arith.constant dense<0.000000e+00> : vector<128xf32>
    %57 = vector.multi_reduction <add>, %56, %cst_31 [0] : vector<256x128xf32> to vector<128xf32>
    %58 = vector.shape_cast %57 : vector<128xf32> to vector<1x128xf32>
    %c0_32 = arith.constant 0 : index
    %c0_33 = arith.constant 0 : index
    %c0_34 = arith.constant 0 : index
    %59 = vector.load %arg3[%c0_32, %c0_33, %c0_34] : memref<1x1x128xf32, #tpu.memory_space<vmem>>, vector<1x1x128xf32>
    %60 = vector.shape_cast %59 : vector<1x1x128xf32> to vector<1x128xf32>
    %61 = vector.shape_cast %58 : vector<1x128xf32> to vector<1x1x128xf32>
    tpu.vector_store %arg3[%c0_32, %c0_33, %c0_34], %61 {strides = array<i32>} : memref<1x1x128xf32, #tpu.memory_space<vmem>>, vector<1x1x128xf32>,
    %62 = arith.mulf %56, %56 : vector<256x128xf32>
    %cst_35 = arith.constant dense<0.000000e+00> : vector<128xf32>
    %63 = vector.multi_reduction <add>, %62, %cst_35 [0] : vector<256x128xf32> to vector<128xf32>
    %64 = vector.shape_cast %63 : vector<128xf32> to vector<1x128xf32>
    %c0_36 = arith.constant 0 : index
    %c0_37 = arith.constant 0 : index
    %c0_38 = arith.constant 0 : index
    %65 = vector.load %arg4[%c0_36, %c0_37, %c0_38] : memref<1x1x128xf32, #tpu.memory_space<vmem>>, vector<1x1x128xf32>
    %66 = vector.shape_cast %65 : vector<1x1x128xf32> to vector<1x128xf32>
    %67 = vector.shape_cast %64 : vector<1x128xf32> to vector<1x1x128xf32>
    tpu.vector_store %arg4[%c0_36, %c0_37, %c0_38], %67 {strides = array<i32>} : memref<1x1x128xf32, #tpu.memory_space<vmem>>, vector<1x1x128xf32>,
    return
  }
  func.func @transform_0(%arg0: i32) -> (i32, i32, i32, i32) {
    %c0_i32 = arith.constant 0 : i32
    %c0_i32_0 = arith.constant 0 : i32
    %c0_i32_1 = arith.constant 0 : i32
    %c0_i32_2 = arith.constant 0 : i32
    return %arg0, %c0_i32, %c0_i32_0, %c0_i32_1 : i32, i32, i32, i32
  }
  func.func @transform_1(%arg0: i32) -> (i32, i32, i32) {
    %c0_i32 = arith.constant 0 : i32
    %c0_i32_0 = arith.constant 0 : i32
    %c0_i32_1 = arith.constant 0 : i32
    %c0_i32_2 = arith.constant 0 : i32
    return %c0_i32, %c0_i32_0, %c0_i32_1 : i32, i32, i32
  }
  func.func @transform_2(%arg0: i32) -> (i32, i32, i32) {
    %c0_i32 = arith.constant 0 : i32
    %c0_i32_0 = arith.constant 0 : i32
    %c0_i32_1 = arith.constant 0 : i32
    return %arg0, %c0_i32, %c0_i32_0 : i32, i32, i32
  }
  func.func @transform_3(%arg0: i32) -> (i32, i32, i32) {
    %c0_i32 = arith.constant 0 : i32
    %c0_i32_0 = arith.constant 0 : i32
    %c0_i32_1 = arith.constant 0 : i32
    return %arg0, %c0_i32, %c0_i32_0 : i32, i32, i32
  }
}

module attributes {stable_mosaic.version = 11 : i64} {
  func.func @_conv_affine_kernel(%arg0: i32, %arg1: memref<1x18x18x8xbf16, #tpu.memory_space<vmem>>, %arg2: memref<9x8x128xbf16, #tpu.memory_space<vmem>>, %arg3: memref<1x1x128xf32, #tpu.memory_space<vmem>>, %arg4: memref<1x1x128xf32, #tpu.memory_space<vmem>>, %arg5: memref<1x256x128xf32, #tpu.memory_space<vmem>>) attributes {dimension_semantics = [#tpu.dimension_semantics<parallel>], iteration_bounds = array<i64: 2>, scalar_prefetch = 0 : i64, scratch_operands = 0 : i64, tpu.core_type = #tpu.core_type<tc>, window_params = [{transform_indices = @transform_0, window_bounds = array<i64: 1, 18, 18, 8>}, {pipeline_mode = #tpu.pipeline_mode<synchronous>, transform_indices = @transform_1, window_bounds = array<i64: 9, 8, 128>}, {pipeline_mode = #tpu.pipeline_mode<synchronous>, transform_indices = @transform_2, window_bounds = array<i64: 1, 1, 128>}, {pipeline_mode = #tpu.pipeline_mode<synchronous>, transform_indices = @transform_3, window_bounds = array<i64: 1, 1, 128>}, {transform_indices = @transform_4, window_bounds = array<i64: 1, 256, 128>}]} {
    %c0 = arith.constant 0 : index
    %c0_0 = arith.constant 0 : index
    %c0_1 = arith.constant 0 : index
    %c0_2 = arith.constant 0 : index
    %0 = vector.load %arg1[%c0, %c0_0, %c0_1, %c0_2] : memref<1x18x18x8xbf16, #tpu.memory_space<vmem>>, vector<1x18x18x8xbf16>
    %1 = vector.shape_cast %0 : vector<1x18x18x8xbf16> to vector<18x18x8xbf16>
    %cst = arith.constant 0.000000e+00 : f32
    %2 = vector.broadcast %cst : f32 to vector<256x128xf32>
    %3 = vector.extract_strided_slice %1 {offsets = [0, 0, 0], sizes = [16, 16, 8], strides = [1, 1, 1]} : vector<18x18x8xbf16> to vector<16x16x8xbf16>
    %4 = vector.shape_cast %3 : vector<16x16x8xbf16> to vector<256x8xbf16>
    %c0_3 = arith.constant 0 : index
    %c0_4 = arith.constant 0 : index
    %c0_5 = arith.constant 0 : index
    %5 = vector.load %arg2[%c0_3, %c0_4, %c0_5] : memref<9x8x128xbf16, #tpu.memory_space<vmem>>, vector<1x8x128xbf16>
    %6 = vector.shape_cast %5 : vector<1x8x128xbf16> to vector<8x128xbf16>
    %cst_6 = arith.constant dense<0.000000e+00> : vector<256x128xf32>
    %7 = tpu.matmul %4, %6, %cst_6 {dimension_numbers = #tpu.dot_dimension_numbers<[1], [0], [0], [1], [0, 0, 1, 1], [], []>} : vector<256x8xbf16>, vector<8x128xbf16>, vector<256x128xf32> -> vector<256x128xf32>
    %8 = arith.addf %2, %7 : vector<256x128xf32>
    %9 = vector.extract_strided_slice %1 {offsets = [0, 1, 0], sizes = [16, 16, 8], strides = [1, 1, 1]} : vector<18x18x8xbf16> to vector<16x16x8xbf16>
    %10 = vector.shape_cast %9 : vector<16x16x8xbf16> to vector<256x8xbf16>
    %c1 = arith.constant 1 : index
    %c0_7 = arith.constant 0 : index
    %c0_8 = arith.constant 0 : index
    %11 = vector.load %arg2[%c1, %c0_7, %c0_8] : memref<9x8x128xbf16, #tpu.memory_space<vmem>>, vector<1x8x128xbf16>
    %12 = vector.shape_cast %11 : vector<1x8x128xbf16> to vector<8x128xbf16>
    %cst_9 = arith.constant dense<0.000000e+00> : vector<256x128xf32>
    %13 = tpu.matmul %10, %12, %cst_9 {dimension_numbers = #tpu.dot_dimension_numbers<[1], [0], [0], [1], [0, 0, 1, 1], [], []>} : vector<256x8xbf16>, vector<8x128xbf16>, vector<256x128xf32> -> vector<256x128xf32>
    %14 = arith.addf %8, %13 : vector<256x128xf32>
    %15 = vector.extract_strided_slice %1 {offsets = [0, 2, 0], sizes = [16, 16, 8], strides = [1, 1, 1]} : vector<18x18x8xbf16> to vector<16x16x8xbf16>
    %16 = vector.shape_cast %15 : vector<16x16x8xbf16> to vector<256x8xbf16>
    %c2 = arith.constant 2 : index
    %c0_10 = arith.constant 0 : index
    %c0_11 = arith.constant 0 : index
    %17 = vector.load %arg2[%c2, %c0_10, %c0_11] : memref<9x8x128xbf16, #tpu.memory_space<vmem>>, vector<1x8x128xbf16>
    %18 = vector.shape_cast %17 : vector<1x8x128xbf16> to vector<8x128xbf16>
    %cst_12 = arith.constant dense<0.000000e+00> : vector<256x128xf32>
    %19 = tpu.matmul %16, %18, %cst_12 {dimension_numbers = #tpu.dot_dimension_numbers<[1], [0], [0], [1], [0, 0, 1, 1], [], []>} : vector<256x8xbf16>, vector<8x128xbf16>, vector<256x128xf32> -> vector<256x128xf32>
    %20 = arith.addf %14, %19 : vector<256x128xf32>
    %21 = vector.extract_strided_slice %1 {offsets = [1, 0, 0], sizes = [16, 16, 8], strides = [1, 1, 1]} : vector<18x18x8xbf16> to vector<16x16x8xbf16>
    %22 = vector.shape_cast %21 : vector<16x16x8xbf16> to vector<256x8xbf16>
    %c3 = arith.constant 3 : index
    %c0_13 = arith.constant 0 : index
    %c0_14 = arith.constant 0 : index
    %23 = vector.load %arg2[%c3, %c0_13, %c0_14] : memref<9x8x128xbf16, #tpu.memory_space<vmem>>, vector<1x8x128xbf16>
    %24 = vector.shape_cast %23 : vector<1x8x128xbf16> to vector<8x128xbf16>
    %cst_15 = arith.constant dense<0.000000e+00> : vector<256x128xf32>
    %25 = tpu.matmul %22, %24, %cst_15 {dimension_numbers = #tpu.dot_dimension_numbers<[1], [0], [0], [1], [0, 0, 1, 1], [], []>} : vector<256x8xbf16>, vector<8x128xbf16>, vector<256x128xf32> -> vector<256x128xf32>
    %26 = arith.addf %20, %25 : vector<256x128xf32>
    %27 = vector.extract_strided_slice %1 {offsets = [1, 1, 0], sizes = [16, 16, 8], strides = [1, 1, 1]} : vector<18x18x8xbf16> to vector<16x16x8xbf16>
    %28 = vector.shape_cast %27 : vector<16x16x8xbf16> to vector<256x8xbf16>
    %c4 = arith.constant 4 : index
    %c0_16 = arith.constant 0 : index
    %c0_17 = arith.constant 0 : index
    %29 = vector.load %arg2[%c4, %c0_16, %c0_17] : memref<9x8x128xbf16, #tpu.memory_space<vmem>>, vector<1x8x128xbf16>
    %30 = vector.shape_cast %29 : vector<1x8x128xbf16> to vector<8x128xbf16>
    %cst_18 = arith.constant dense<0.000000e+00> : vector<256x128xf32>
    %31 = tpu.matmul %28, %30, %cst_18 {dimension_numbers = #tpu.dot_dimension_numbers<[1], [0], [0], [1], [0, 0, 1, 1], [], []>} : vector<256x8xbf16>, vector<8x128xbf16>, vector<256x128xf32> -> vector<256x128xf32>
    %32 = arith.addf %26, %31 : vector<256x128xf32>
    %33 = vector.extract_strided_slice %1 {offsets = [1, 2, 0], sizes = [16, 16, 8], strides = [1, 1, 1]} : vector<18x18x8xbf16> to vector<16x16x8xbf16>
    %34 = vector.shape_cast %33 : vector<16x16x8xbf16> to vector<256x8xbf16>
    %c5 = arith.constant 5 : index
    %c0_19 = arith.constant 0 : index
    %c0_20 = arith.constant 0 : index
    %35 = vector.load %arg2[%c5, %c0_19, %c0_20] : memref<9x8x128xbf16, #tpu.memory_space<vmem>>, vector<1x8x128xbf16>
    %36 = vector.shape_cast %35 : vector<1x8x128xbf16> to vector<8x128xbf16>
    %cst_21 = arith.constant dense<0.000000e+00> : vector<256x128xf32>
    %37 = tpu.matmul %34, %36, %cst_21 {dimension_numbers = #tpu.dot_dimension_numbers<[1], [0], [0], [1], [0, 0, 1, 1], [], []>} : vector<256x8xbf16>, vector<8x128xbf16>, vector<256x128xf32> -> vector<256x128xf32>
    %38 = arith.addf %32, %37 : vector<256x128xf32>
    %39 = vector.extract_strided_slice %1 {offsets = [2, 0, 0], sizes = [16, 16, 8], strides = [1, 1, 1]} : vector<18x18x8xbf16> to vector<16x16x8xbf16>
    %40 = vector.shape_cast %39 : vector<16x16x8xbf16> to vector<256x8xbf16>
    %c6 = arith.constant 6 : index
    %c0_22 = arith.constant 0 : index
    %c0_23 = arith.constant 0 : index
    %41 = vector.load %arg2[%c6, %c0_22, %c0_23] : memref<9x8x128xbf16, #tpu.memory_space<vmem>>, vector<1x8x128xbf16>
    %42 = vector.shape_cast %41 : vector<1x8x128xbf16> to vector<8x128xbf16>
    %cst_24 = arith.constant dense<0.000000e+00> : vector<256x128xf32>
    %43 = tpu.matmul %40, %42, %cst_24 {dimension_numbers = #tpu.dot_dimension_numbers<[1], [0], [0], [1], [0, 0, 1, 1], [], []>} : vector<256x8xbf16>, vector<8x128xbf16>, vector<256x128xf32> -> vector<256x128xf32>
    %44 = arith.addf %38, %43 : vector<256x128xf32>
    %45 = vector.extract_strided_slice %1 {offsets = [2, 1, 0], sizes = [16, 16, 8], strides = [1, 1, 1]} : vector<18x18x8xbf16> to vector<16x16x8xbf16>
    %46 = vector.shape_cast %45 : vector<16x16x8xbf16> to vector<256x8xbf16>
    %c7 = arith.constant 7 : index
    %c0_25 = arith.constant 0 : index
    %c0_26 = arith.constant 0 : index
    %47 = vector.load %arg2[%c7, %c0_25, %c0_26] : memref<9x8x128xbf16, #tpu.memory_space<vmem>>, vector<1x8x128xbf16>
    %48 = vector.shape_cast %47 : vector<1x8x128xbf16> to vector<8x128xbf16>
    %cst_27 = arith.constant dense<0.000000e+00> : vector<256x128xf32>
    %49 = tpu.matmul %46, %48, %cst_27 {dimension_numbers = #tpu.dot_dimension_numbers<[1], [0], [0], [1], [0, 0, 1, 1], [], []>} : vector<256x8xbf16>, vector<8x128xbf16>, vector<256x128xf32> -> vector<256x128xf32>
    %50 = arith.addf %44, %49 : vector<256x128xf32>
    %51 = vector.extract_strided_slice %1 {offsets = [2, 2, 0], sizes = [16, 16, 8], strides = [1, 1, 1]} : vector<18x18x8xbf16> to vector<16x16x8xbf16>
    %52 = vector.shape_cast %51 : vector<16x16x8xbf16> to vector<256x8xbf16>
    %c8 = arith.constant 8 : index
    %c0_28 = arith.constant 0 : index
    %c0_29 = arith.constant 0 : index
    %53 = vector.load %arg2[%c8, %c0_28, %c0_29] : memref<9x8x128xbf16, #tpu.memory_space<vmem>>, vector<1x8x128xbf16>
    %54 = vector.shape_cast %53 : vector<1x8x128xbf16> to vector<8x128xbf16>
    %cst_30 = arith.constant dense<0.000000e+00> : vector<256x128xf32>
    %55 = tpu.matmul %52, %54, %cst_30 {dimension_numbers = #tpu.dot_dimension_numbers<[1], [0], [0], [1], [0, 0, 1, 1], [], []>} : vector<256x8xbf16>, vector<8x128xbf16>, vector<256x128xf32> -> vector<256x128xf32>
    %56 = arith.addf %50, %55 : vector<256x128xf32>
    %c0_31 = arith.constant 0 : index
    %c0_32 = arith.constant 0 : index
    %c0_33 = arith.constant 0 : index
    %57 = vector.load %arg3[%c0_31, %c0_32, %c0_33] : memref<1x1x128xf32, #tpu.memory_space<vmem>>, vector<1x1x128xf32>
    %58 = vector.shape_cast %57 : vector<1x1x128xf32> to vector<1x128xf32>
    %59 = vector.broadcast %58 : vector<1x128xf32> to vector<256x128xf32>
    %60 = arith.mulf %56, %59 : vector<256x128xf32>
    %c0_34 = arith.constant 0 : index
    %c0_35 = arith.constant 0 : index
    %c0_36 = arith.constant 0 : index
    %61 = vector.load %arg4[%c0_34, %c0_35, %c0_36] : memref<1x1x128xf32, #tpu.memory_space<vmem>>, vector<1x1x128xf32>
    %62 = vector.shape_cast %61 : vector<1x1x128xf32> to vector<1x128xf32>
    %63 = vector.broadcast %62 : vector<1x128xf32> to vector<256x128xf32>
    %64 = arith.addf %60, %63 : vector<256x128xf32>
    %c0_37 = arith.constant 0 : index
    %c0_38 = arith.constant 0 : index
    %c0_39 = arith.constant 0 : index
    %65 = vector.load %arg5[%c0_37, %c0_38, %c0_39] : memref<1x256x128xf32, #tpu.memory_space<vmem>>, vector<1x256x128xf32>
    %66 = vector.shape_cast %65 : vector<1x256x128xf32> to vector<256x128xf32>
    %67 = vector.shape_cast %64 : vector<256x128xf32> to vector<1x256x128xf32>
    tpu.vector_store %arg5[%c0_37, %c0_38, %c0_39], %67 {strides = array<i32>} : memref<1x256x128xf32, #tpu.memory_space<vmem>>, vector<1x256x128xf32>,
    return
  }
  func.func @transform_0(%arg0: i32) -> (i32, i32, i32, i32) {
    %c0_i32 = arith.constant 0 : i32
    %c0_i32_0 = arith.constant 0 : i32
    %c0_i32_1 = arith.constant 0 : i32
    %c0_i32_2 = arith.constant 0 : i32
    return %arg0, %c0_i32, %c0_i32_0, %c0_i32_1 : i32, i32, i32, i32
  }
  func.func @transform_1(%arg0: i32) -> (i32, i32, i32) {
    %c0_i32 = arith.constant 0 : i32
    %c0_i32_0 = arith.constant 0 : i32
    %c0_i32_1 = arith.constant 0 : i32
    %c0_i32_2 = arith.constant 0 : i32
    return %c0_i32, %c0_i32_0, %c0_i32_1 : i32, i32, i32
  }
  func.func @transform_2(%arg0: i32) -> (i32, i32, i32) {
    %c0_i32 = arith.constant 0 : i32
    %c0_i32_0 = arith.constant 0 : i32
    %c0_i32_1 = arith.constant 0 : i32
    %c0_i32_2 = arith.constant 0 : i32
    return %c0_i32, %c0_i32_0, %c0_i32_1 : i32, i32, i32
  }
  func.func @transform_3(%arg0: i32) -> (i32, i32, i32) {
    %c0_i32 = arith.constant 0 : i32
    %c0_i32_0 = arith.constant 0 : i32
    %c0_i32_1 = arith.constant 0 : i32
    %c0_i32_2 = arith.constant 0 : i32
    return %c0_i32, %c0_i32_0, %c0_i32_1 : i32, i32, i32
  }
  func.func @transform_4(%arg0: i32) -> (i32, i32, i32) {
    %c0_i32 = arith.constant 0 : i32
    %c0_i32_0 = arith.constant 0 : i32
    %c0_i32_1 = arith.constant 0 : i32
    return %arg0, %c0_i32, %c0_i32_0 : i32, i32, i32
  }
}

</mosaic_0001>

<llo_original>
// kernel: conv_forward.2
$region0: #{conv_forward.2}
  #allocation0 [shape = 'u32[]', space=smem, size = 0x4, offset = 0x4, fixed_abs, tag = 'smem constant byte address 0x4 - core index']
  #allocation1 [shape = 'u32[144,128]{1,0:T(1,128)}', space=vmem, size = 0x12000, scoped, tag = 'internal scratch']
  %s0 = inlined_call_operand.vmem [shape: bf16[2,18,18,8], index: 0, kind: input, shape index: {}]
  %s1 = inlined_call_operand.vmem [shape: bf16[9,8,128], index: 1, kind: input, shape index: {}]
  %s2 = inlined_call_operand.vmem [shape: f32[2,1,128], index: 2, kind: output, shape index: {0}]
  %s3 = inlined_call_operand.vmem [shape: f32[2,1,128], index: 3, kind: output, shape index: {1}]
  %4 = xla_tuple %s2, %s3
  %s5 = sld [smem:[#allocation0]]
  $region49: #{conv_forward.2} parent=0
    _
  %s7 = ssub.s32 1, %s5
  %s8 = scalar_select 0, %s7, %s5
  loop: start=0, step=1, limit=4
  $region2: #{conv_forward.2} parent=0 // loop_pre_header
    _
  $region3: #{conv_forward.2} parent=0 // loop_header
    %s10 = sphi 0, %s14
    %p11 = scmp.ge.s32.totalorder %s10, 4
    %s20 = sphi 0, %s22
    %s23 = sphi 0, %s20
    %s24 = sphi 0, %s23
    %s40 = sphi 0, %s24
    %s44 = sphi 0, %s44
    %s46 = sphi 0, %s44
    %s47 = sphi 0, %s46
    %s61 = sphi 0, %s47
    %s67 = sphi 0, %s69
    %s70 = sphi 0, %s67
    %s71 = sphi 0, %s70
    %s87 = sphi 0, %s71
    %s93 = sphi 0, %s95
    %s96 = sphi 0, %s93
    %s97 = sphi 0, %s96
    %s113 = sphi 0, %s97
  $region4: #{conv_forward.2} parent=0 // loop_header_branch
    %13 = sbr.rel (%p11) target = $region8
  $region5: #{conv_forward.2} parent=0 // loop_body
    %s15 = ssub.s32 %s10, 1
    %s16 = ssub.s32 %s10, 2
    %s17 = sadd.s32 %s10, 1
    %s18 = ssub.s32 %s10, %s17
    %p19 = scmp.eq.s32.totalorder %s18, 0
    %s21 = sadd.s32 %s20, 1
    %s22 = scalar_select %p19, %s20, %s21
    %p25 = pneg %p19
    %p26 = scmp.eq.s32.totalorder %s10, 1
    %p27 = por %p25, %p26
    %p28 = scmp.ne.s32.totalorder %s20, %s23
    %p29 = scmp.eq.s32.totalorder %s10, 0
    %p30 = por %p28, %p29
    %p31 = scmp.ne.s32.totalorder %s20, %s23
    %p32 = scmp.eq.s32.totalorder %s15, 1
    %p33 = por %p31, %p32
    %p34 = scmp.ne.s32.totalorder %s23, %s24
    %p35 = scmp.eq.s32.totalorder %s15, 0
    %p36 = por %p34, %p35
    %p37 = scmp.ne.s32.totalorder %s23, %s24
    %p38 = scmp.eq.s32.totalorder %s16, 1
    %p39 = por %p37, %p38
    %p41 = scmp.ne.s32.totalorder %s24, %s40
    %p42 = scmp.eq.s32.totalorder %s16, 0
    %p43 = por %p41, %p42
    %s45 = sadd.s32 %s44, 1
    %p48 = scmp.eq.s32.totalorder %s10, 1
    %p49 = scmp.ne.s32.totalorder %s44, %s46
    %p50 = scmp.eq.s32.totalorder %s10, 0
    %p51 = por %p49, %p50
    %p52 = scmp.ne.s32.totalorder %s44, %s46
    %p53 = scmp.eq.s32.totalorder %s15, 1
    %p54 = por %p52, %p53
    %p55 = scmp.ne.s32.totalorder %s46, %s47
    %p56 = scmp.eq.s32.totalorder %s15, 0
    %p57 = por %p55, %p56
    %p58 = scmp.ne.s32.totalorder %s46, %s47
    %p59 = scmp.eq.s32.totalorder %s16, 1
    %p60 = por %p58, %p59
    %p62 = scmp.ne.s32.totalorder %s47, %s61
    %p63 = scmp.eq.s32.totalorder %s16, 0
    %p64 = por %p62, %p63
    %s65 = ssub.s32 %s10, %s17
    %p66 = scmp.eq.s32.totalorder %s65, 0
    %s68 = sadd.s32 %s67, 1
    %s69 = scalar_select %p66, %s67, %s68
    %p72 = pneg %p66
    %p73 = scmp.eq.s32.totalorder %s10, 1
    %p74 = por %p72, %p73
    %p75 = scmp.ne.s32.totalorder %s67, %s70
    %p76 = scmp.eq.s32.totalorder %s10, 0
    %p77 = por %p75, %p76
    %p78 = scmp.ne.s32.totalorder %s67, %s70
    %p79 = scmp.eq.s32.totalorder %s15, 1
    %p80 = por %p78, %p79
    %p81 = scmp.ne.s32.totalorder %s70, %s71
    %p82 = scmp.eq.s32.totalorder %s15, 0
    %p83 = por %p81, %p82
    %p84 = scmp.ne.s32.totalorder %s70, %s71
    %p85 = scmp.eq.s32.totalorder %s16, 1
    %p86 = por %p84, %p85
    %p88 = scmp.ne.s32.totalorder %s71, %s87
    %p89 = scmp.eq.s32.totalorder %s16, 0
    %p90 = por %p88, %p89
    %s91 = ssub.s32 %s10, %s17
    %p92 = scmp.eq.s32.totalorder %s91, 0
    %s94 = sadd.s32 %s93, 1
    %s95 = scalar_select %p92, %s93, %s94
    %p98 = pneg %p92
    %p99 = scmp.eq.s32.totalorder %s10, 1
    %p100 = por %p98, %p99
    %p101 = scmp.ne.s32.totalorder %s93, %s96
    %p102 = scmp.eq.s32.totalorder %s10, 0
    %p103 = por %p101, %p102
    %p104 = scmp.ne.s32.totalorder %s93, %s96
    %p105 = scmp.eq.s32.totalorder %s15, 1
    %p106 = por %p104, %p105
    %p107 = scmp.ne.s32.totalorder %s96, %s97
    %p108 = scmp.eq.s32.totalorder %s15, 0
    %p109 = por %p107, %p108
    %p110 = scmp.ne.s32.totalorder %s96, %s97
    %p111 = scmp.eq.s32.totalorder %s16, 1
    %p112 = por %p110, %p111
    %p114 = scmp.ne.s32.totalorder %s97, %s113
    %p115 = scmp.eq.s32.totalorder %s16, 0
    %p116 = por %p114, %p115
    %p117 = scmp.le.s32.totalorder 1, %s10
    %p118 = scmp.lt.s32.totalorder %s10, 3
    %p119 = pnand %p117, %p118
    %p120 = pneg %p119
    // Predicated region
    $region9: #{conv_forward.2} parent=5 // pred_check
      _
    $region10: #{conv_forward.2} parent=5 // pred_check_branch
      %122 = sbr.rel (%p119) target = $region12
    $region11: #{conv_forward.2} parent=5 // pred_region
      %s123 = ssub.s32 %s10, 1
      // Predicated region
      $region13: #{conv_forward.2} parent=11 // pred_check
        %p124 = pneg %p57
      $region14: #{conv_forward.2} parent=11 // pred_check_branch
        %126 = sbr.rel (%p124) target = $region16
      $region15: #{conv_forward.2} parent=11 // pred_region
        _
      $region16: #{conv_forward.2} parent=11 // pred_fallthru
        _
    $region12: #{conv_forward.2} parent=5 // pred_fallthru
      _
    %p127 = scmp.lt.s32.totalorder %s10, 2
    // Predicated region
    $region17: #{conv_forward.2} parent=5 // pred_check
      %p128 = pneg %p127
    $region18: #{conv_forward.2} parent=5 // pred_check_branch
      %130 = sbr.rel (%p128) target = $region20
    $region19: #{conv_forward.2} parent=5 // pred_region
      // Predicated region
      $region21: #{conv_forward.2} parent=19 // pred_check
        %p131 = pneg %p30
      $region22: #{conv_forward.2} parent=19 // pred_check_branch
        %133 = sbr.rel (%p131) target = $region24
      $region23: #{conv_forward.2} parent=19 // pred_region
        %p134 = scmp.lt.s32.totalorder %s10, 1
        %s135 = scalar_select %p134, %s10, 1
        %s136 = smul.addr %s135, 54
        %s137 = smul.addr %s136, 4
        %s138 = scalar_lea.vmem %s0, %s137
      $region24: #{conv_forward.2} parent=19 // pred_fallthru
        _
    $region20: #{conv_forward.2} parent=5 // pred_fallthru
      _
    %p139 = scmp.le.s32.totalorder 1, %s10
    %p140 = scmp.lt.s32.totalorder %s10, 3
    %p141 = pnand %p139, %p140
    %p142 = pneg %p141
    // Predicated region
    $region25: #{conv_forward.2} parent=5 // pred_check
      _
    $region26: #{conv_forward.2} parent=5 // pred_check_branch
      %144 = sbr.rel (%p141) target = $region28
    $region27: #{conv_forward.2} parent=5 // pred_region
      %s145 = ssub.s32 %s10, 1
      %p146 = scmp.lt.s32.totalorder %s15, 1
      %s147 = scalar_select %p146, %s15, 1
      %s148 = smul.addr %s147, 54
      %s149 = smul.addr %s148, 4
      %s150 = scalar_lea.vmem %s0, %s149
      %p151 = pneg %p36
      %p152 = pneg %p33
      %p153 = pneg %p57
      %p154 = pneg %p54
      %p155 = pneg %p83
      %p156 = pneg %p80
      %p157 = scmp.lt.s32.totalorder %s15, 1
      %s158 = scalar_select %p157, %s15, 1
      %s159 = scalar_lea.vmem %s2, %s158
      %p160 = pneg %p109
      %p161 = pneg %p106
      %p162 = scmp.lt.s32.totalorder %s15, 1
      %s163 = scalar_select %p162, %s15, 1
      %s164 = scalar_lea.vmem %s3, %s163
      %p165 = scmp.lt.s32.totalorder %s15, 1
      %s166 = scalar_select %p165, %s15, 1
      %s167 = smul.addr %s166, 54
      %s168 = smul.addr %s167, 4
      %s169 = scalar_lea.vmem %s0, %s168
      %p170 = scmp.lt.s32.totalorder %s15, 1
      %s171 = scalar_select %p170, %s15, 1
      %s172 = scalar_lea.vmem %s2, %s171
      %p173 = scmp.lt.s32.totalorder %s15, 1
      %s174 = scalar_select %p173, %s15, 1
      %s175 = scalar_lea.vmem %s3, %s174
      %v177 = vld [vmem:[%s169] sm:$0xf]
      %v178 = vld [vmem:[%s169 + $0x4] sm:$0xf]
      %v179 = vld [vmem:[%s169 + $0x8] sm:$0x1]
      %v180 = vld [vmem:[%s169 + $0xc] sm:$0xf]
      %v181 = vld [vmem:[%s169 + $0x10] sm:$0xf]
      %v182 = vld [vmem:[%s169 + $0x14] sm:$0x1]
      %v183 = vld [vmem:[%s169 + $0x18] sm:$0xf]
      %v184 = vld [vmem:[%s169 + $0x1c] sm:$0xf]
      %v185 = vld [vmem:[%s169 + $0x20] sm:$0x1]
      %v186 = vld [vmem:[%s169 + $0x24] sm:$0xf]
      %v187 = vld [vmem:[%s169 + $0x28] sm:$0xf]
      %v188 = vld [vmem:[%s169 + $0x2c] sm:$0x1]
      %v189 = vld [vmem:[%s169 + $0x30] sm:$0xf]
      %v190 = vld [vmem:[%s169 + $0x34] sm:$0xf]
      %v191 = vld [vmem:[%s169 + $0x38] sm:$0x1]
      %v192 = vld [vmem:[%s169 + $0x3c] sm:$0xf]
      %v193 = vld [vmem:[%s169 + $0x40] sm:$0xf]
      %v194 = vld [vmem:[%s169 + $0x44] sm:$0x1]
      %v195 = vld [vmem:[%s169 + $0x48] sm:$0xf]
      %v196 = vld [vmem:[%s169 + $0x4c] sm:$0xf]
      %v197 = vld [vmem:[%s169 + $0x50] sm:$0x1]
      %v198 = vld [vmem:[%s169 + $0x54] sm:$0xf]
      %v199 = vld [vmem:[%s169 + $0x58] sm:$0xf]
      %v200 = vld [vmem:[%s169 + $0x5c] sm:$0x1]
      %v201 = vld [vmem:[%s169 + $0x60] sm:$0xf]
      %v202 = vld [vmem:[%s169 + $0x64] sm:$0xf]
      %v203 = vld [vmem:[%s169 + $0x68] sm:$0x1]
      %v204 = vld [vmem:[%s169 + $0x6c] sm:$0xf]
      %v205 = vld [vmem:[%s169 + $0x70] sm:$0xf]
      %v206 = vld [vmem:[%s169 + $0x74] sm:$0x1]
      %v207 = vld [vmem:[%s169 + $0x78] sm:$0xf]
      %v208 = vld [vmem:[%s169 + $0x7c] sm:$0xf]
      %v209 = vld [vmem:[%s169 + $0x80] sm:$0x1]
      %v210 = vld [vmem:[%s169 + $0x84] sm:$0xf]
      %v211 = vld [vmem:[%s169 + $0x88] sm:$0xf]
      %v212 = vld [vmem:[%s169 + $0x8c] sm:$0x1]
      %v213 = vld [vmem:[%s169 + $0x90] sm:$0xf]
      %v214 = vld [vmem:[%s169 + $0x94] sm:$0xf]
      %v215 = vld [vmem:[%s169 + $0x98] sm:$0x1]
      %v216 = vld [vmem:[%s169 + $0x9c] sm:$0xf]
      %v217 = vld [vmem:[%s169 + $0xa0] sm:$0xf]
      %v218 = vld [vmem:[%s169 + $0xa4] sm:$0x1]
      %v219 = vld [vmem:[%s169 + $0xa8] sm:$0xf]
      %v220 = vld [vmem:[%s169 + $0xac] sm:$0xf]
      %v221 = vld [vmem:[%s169 + $0xb0] sm:$0x1]
      %v222 = vld [vmem:[%s169 + $0xb4] sm:$0xf]
      %v223 = vld [vmem:[%s169 + $0xb8] sm:$0xf]
      %v224 = vld [vmem:[%s169 + $0xbc] sm:$0x1]
      %v225 = vld [vmem:[%s169 + $0xc0] sm:$0xf]
      %v226 = vld [vmem:[%s169 + $0xc4] sm:$0xf]
      %v227 = vld [vmem:[%s169 + $0xc8] sm:$0x1]
      %v228 = vld [vmem:[%s169 + $0xcc] sm:$0xf]
      %v229 = vld [vmem:[%s169 + $0xd0] sm:$0xf]
      %v230 = vld [vmem:[%s169 + $0xd4] sm:$0x1]
      %v231 = vld [vmem:[%s1] sm:$0xf]
      %vm232 = vsmask.f32 3328
      %vm233 = vsmask.f32 7440
      %vm234 = vmor %vm232, %vm233
      %v236 = vshrl.u32 %v177, 16
      %v238 = vrot.slane %v236, 4
      %v239 = vshll.u32 %v177, 16
      %v241 = vrot.slane %v239, 5
      %v242 = vor.u32 %v238, %v241
      %v243 = vrot.slane %v242, 4
      %v245 = vshll.u32 %v178, 16
      %v247 = vrot.slane %v245, 5
      %v248 = vsel %vm234, %v243, %v247
      %v249 = vshrl.u32 %v178, 16
      %v251 = vrot.slane %v249, 4
      %v252 = vor.u32 %v251, %v247
      %v253 = vrot.slane %v252, 4
      %v255 = vshll.u32 %v179, 16
      %v257 = vrot.slane %v255, 5
      %v258 = vsel %vm234, %v253, %v257
      %v260 = vshrl.u32 %v180, 16
      %v262 = vrot.slane %v260, 4
      %v263 = vshll.u32 %v180, 16
      %v265 = vrot.slane %v263, 5
      %v266 = vor.u32 %v262, %v265
      %v267 = vrot.slane %v266, 4
      %v269 = vshll.u32 %v181, 16
      %v271 = vrot.slane %v269, 5
      %v272 = vsel %vm234, %v267, %v271
      %v273 = vshrl.u32 %v181, 16
      %v275 = vrot.slane %v273, 4
      %v276 = vor.u32 %v275, %v271
      %v277 = vrot.slane %v276, 4
      %v279 = vshll.u32 %v182, 16
      %v281 = vrot.slane %v279, 5
      %v282 = vsel %vm234, %v277, %v281
      %v284 = vshrl.u32 %v183, 16
      %v286 = vrot.slane %v284, 4
      %v287 = vshll.u32 %v183, 16
      %v289 = vrot.slane %v287, 5
      %v290 = vor.u32 %v286, %v289
      %v291 = vrot.slane %v290, 4
      %v293 = vshll.u32 %v184, 16
      %v295 = vrot.slane %v293, 5
      %v296 = vsel %vm234, %v291, %v295
      %v297 = vshrl.u32 %v184, 16
      %v299 = vrot.slane %v297, 4
      %v300 = vor.u32 %v299, %v295
      %v301 = vrot.slane %v300, 4
      %v303 = vshll.u32 %v185, 16
      %v305 = vrot.slane %v303, 5
      %v306 = vsel %vm234, %v301, %v305
      %v308 = vshrl.u32 %v186, 16
      %v310 = vrot.slane %v308, 4
      %v311 = vshll.u32 %v186, 16
      %v313 = vrot.slane %v311, 5
      %v314 = vor.u32 %v310, %v313
      %v315 = vrot.slane %v314, 4
      %v317 = vshll.u32 %v187, 16
      %v319 = vrot.slane %v317, 5
      %v320 = vsel %vm234, %v315, %v319
      %v321 = vshrl.u32 %v187, 16
      %v323 = vrot.slane %v321, 4
      %v324 = vor.u32 %v323, %v319
      %v325 = vrot.slane %v324, 4
      %v327 = vshll.u32 %v188, 16
      %v329 = vrot.slane %v327, 5
      %v330 = vsel %vm234, %v325, %v329
      %v332 = vshrl.u32 %v189, 16
      %v334 = vrot.slane %v332, 4
      %v335 = vshll.u32 %v189, 16
      %v337 = vrot.slane %v335, 5
      %v338 = vor.u32 %v334, %v337
      %v339 = vrot.slane %v338, 4
      %v341 = vshll.u32 %v190, 16
      %v343 = vrot.slane %v341, 5
      %v344 = vsel %vm234, %v339, %v343
      %v345 = vshrl.u32 %v190, 16
      %v347 = vrot.slane %v345, 4
      %v348 = vor.u32 %v347, %v343
      %v349 = vrot.slane %v348, 4
      %v351 = vshll.u32 %v191, 16
      %v353 = vrot.slane %v351, 5
      %v354 = vsel %vm234, %v349, %v353
      %v356 = vshrl.u32 %v192, 16
      %v358 = vrot.slane %v356, 4
      %v359 = vshll.u32 %v192, 16
      %v361 = vrot.slane %v359, 5
      %v362 = vor.u32 %v358, %v361
      %v363 = vrot.slane %v362, 4
      %v365 = vshll.u32 %v193, 16
      %v367 = vrot.slane %v365, 5
      %v368 = vsel %vm234, %v363, %v367
      %v369 = vshrl.u32 %v193, 16
      %v371 = vrot.slane %v369, 4
      %v372 = vor.u32 %v371, %v367
      %v373 = vrot.slane %v372, 4
      %v375 = vshll.u32 %v194, 16
      %v377 = vrot.slane %v375, 5
      %v378 = vsel %vm234, %v373, %v377
      %v380 = vshrl.u32 %v195, 16
      %v382 = vrot.slane %v380, 4
      %v383 = vshll.u32 %v195, 16
      %v385 = vrot.slane %v383, 5
      %v386 = vor.u32 %v382, %v385
      %v387 = vrot.slane %v386, 4
      %v389 = vshll.u32 %v196, 16
      %v391 = vrot.slane %v389, 5
      %v392 = vsel %vm234, %v387, %v391
      %v393 = vshrl.u32 %v196, 16
      %v395 = vrot.slane %v393, 4
      %v396 = vor.u32 %v395, %v391
      %v397 = vrot.slane %v396, 4
      %v399 = vshll.u32 %v197, 16
      %v401 = vrot.slane %v399, 5
      %v402 = vsel %vm234, %v397, %v401
      %v404 = vshrl.u32 %v198, 16
      %v406 = vrot.slane %v404, 4
      %v407 = vshll.u32 %v198, 16
      %v409 = vrot.slane %v407, 5
      %v410 = vor.u32 %v406, %v409
      %v411 = vrot.slane %v410, 4
      %v413 = vshll.u32 %v199, 16
      %v415 = vrot.slane %v413, 5
      %v416 = vsel %vm234, %v411, %v415
      %v417 = vshrl.u32 %v199, 16
      %v419 = vrot.slane %v417, 4
      %v420 = vor.u32 %v419, %v415
      %v421 = vrot.slane %v420, 4
      %v423 = vshll.u32 %v200, 16
      %v425 = vrot.slane %v423, 5
      %v426 = vsel %vm234, %v421, %v425
      %v428 = vshrl.u32 %v201, 16
      %v430 = vrot.slane %v428, 4
      %v431 = vshll.u32 %v201, 16
      %v433 = vrot.slane %v431, 5
      %v434 = vor.u32 %v430, %v433
      %v435 = vrot.slane %v434, 4
      %v437 = vshll.u32 %v202, 16
      %v439 = vrot.slane %v437, 5
      %v440 = vsel %vm234, %v435, %v439
      %v441 = vshrl.u32 %v202, 16
      %v443 = vrot.slane %v441, 4
      %v444 = vor.u32 %v443, %v439
      %v445 = vrot.slane %v444, 4
      %v447 = vshll.u32 %v203, 16
      %v449 = vrot.slane %v447, 5
      %v450 = vsel %vm234, %v445, %v449
      %v452 = vshrl.u32 %v204, 16
      %v454 = vrot.slane %v452, 4
      %v455 = vshll.u32 %v204, 16
      %v457 = vrot.slane %v455, 5
      %v458 = vor.u32 %v454, %v457
      %v459 = vrot.slane %v458, 4
      %v461 = vshll.u32 %v205, 16
      %v463 = vrot.slane %v461, 5
      %v464 = vsel %vm234, %v459, %v463
      %v465 = vshrl.u32 %v205, 16
      %v467 = vrot.slane %v465, 4
      %v468 = vor.u32 %v467, %v463
      %v469 = vrot.slane %v468, 4
      %v471 = vshll.u32 %v206, 16
      %v473 = vrot.slane %v471, 5
      %v474 = vsel %vm234, %v469, %v473
      %v476 = vshrl.u32 %v207, 16
      %v478 = vrot.slane %v476, 4
      %v479 = vshll.u32 %v207, 16
      %v481 = vrot.slane %v479, 5
      %v482 = vor.u32 %v478, %v481
      %v483 = vrot.slane %v482, 4
      %v485 = vshll.u32 %v208, 16
      %v487 = vrot.slane %v485, 5
      %v488 = vsel %vm234, %v483, %v487
      %v489 = vshrl.u32 %v208, 16
      %v491 = vrot.slane %v489, 4
      %v492 = vor.u32 %v491, %v487
      %v493 = vrot.slane %v492, 4
      %v495 = vshll.u32 %v209, 16
      %v497 = vrot.slane %v495, 5
      %v498 = vsel %vm234, %v493, %v497
      %v500 = vshrl.u32 %v210, 16
      %v502 = vrot.slane %v500, 4
      %v503 = vshll.u32 %v210, 16
      %v505 = vrot.slane %v503, 5
      %v506 = vor.u32 %v502, %v505
      %v507 = vrot.slane %v506, 4
      %v509 = vshll.u32 %v211, 16
      %v511 = vrot.slane %v509, 5
      %v512 = vsel %vm234, %v507, %v511
      %v513 = vshrl.u32 %v211, 16
      %v515 = vrot.slane %v513, 4
      %v516 = vor.u32 %v515, %v511
      %v517 = vrot.slane %v516, 4
      %v519 = vshll.u32 %v212, 16
      %v521 = vrot.slane %v519, 5
      %v522 = vsel %vm234, %v517, %v521
      %v524 = vshrl.u32 %v213, 16
      %v526 = vrot.slane %v524, 4
      %v527 = vshll.u32 %v213, 16
      %v529 = vrot.slane %v527, 5
      %v530 = vor.u32 %v526, %v529
      %v531 = vrot.slane %v530, 4
      %v533 = vshll.u32 %v214, 16
      %v535 = vrot.slane %v533, 5
      %v536 = vsel %vm234, %v531, %v535
      %v537 = vshrl.u32 %v214, 16
      %v539 = vrot.slane %v537, 4
      %v540 = vor.u32 %v539, %v535
      %v541 = vrot.slane %v540, 4
      %v543 = vshll.u32 %v215, 16
      %v545 = vrot.slane %v543, 5
      %v546 = vsel %vm234, %v541, %v545
      %v548 = vshrl.u32 %v216, 16
      %v550 = vrot.slane %v548, 4
      %v551 = vshll.u32 %v216, 16
      %v553 = vrot.slane %v551, 5
      %v554 = vor.u32 %v550, %v553
      %v555 = vrot.slane %v554, 4
      %v557 = vshll.u32 %v217, 16
      %v559 = vrot.slane %v557, 5
      %v560 = vsel %vm234, %v555, %v559
      %v561 = vshrl.u32 %v217, 16
      %v563 = vrot.slane %v561, 4
      %v564 = vor.u32 %v563, %v559
      %v565 = vrot.slane %v564, 4
      %v567 = vshll.u32 %v218, 16
      %v569 = vrot.slane %v567, 5
      %v570 = vsel %vm234, %v565, %v569
      %v572 = vshrl.u32 %v219, 16
      %v574 = vrot.slane %v572, 4
      %v575 = vshll.u32 %v219, 16
      %v577 = vrot.slane %v575, 5
      %v578 = vor.u32 %v574, %v577
      %v579 = vrot.slane %v578, 4
      %v581 = vshll.u32 %v220, 16
      %v583 = vrot.slane %v581, 5
      %v584 = vsel %vm234, %v579, %v583
      %v585 = vshrl.u32 %v220, 16
      %v587 = vrot.slane %v585, 4
      %v588 = vor.u32 %v587, %v583
      %v589 = vrot.slane %v588, 4
      %v591 = vshll.u32 %v221, 16
      %v593 = vrot.slane %v591, 5
      %v594 = vsel %vm234, %v589, %v593
      %v596 = vshrl.u32 %v222, 16
      %v598 = vrot.slane %v596, 4
      %v599 = vshll.u32 %v222, 16
      %v601 = vrot.slane %v599, 5
      %v602 = vor.u32 %v598, %v601
      %v603 = vrot.slane %v602, 4
      %v605 = vshll.u32 %v223, 16
      %v607 = vrot.slane %v605, 5
      %v608 = vsel %vm234, %v603, %v607
      %v609 = vshrl.u32 %v223, 16
      %v611 = vrot.slane %v609, 4
      %v612 = vor.u32 %v611, %v607
      %v613 = vrot.slane %v612, 4
      %v615 = vshll.u32 %v224, 16
      %v617 = vrot.slane %v615, 5
      %v618 = vsel %vm234, %v613, %v617
      %s619 = scalar_lea.vmem %s1, 4
      %v620 = vld [vmem:[%s619] sm:$0xf]
      %v621 = vunpack.c.l.b16 %v248
      %v622 = vunpack.c.l.b16 %v258
      %v623 = vunpack.c.l.b16 %v272
      %v624 = vunpack.c.l.b16 %v282
      %v625 = vunpack.c.l.b16 %v296
      %v626 = vunpack.c.l.b16 %v306
      %v627 = vunpack.c.l.b16 %v320
      %v628 = vunpack.c.l.b16 %v330
      %v629 = vunpack.c.l.b16 %v344
      %v630 = vunpack.c.l.b16 %v354
      %v631 = vunpack.c.l.b16 %v368
      %v632 = vunpack.c.l.b16 %v378
      %v633 = vunpack.c.l.b16 %v392
      %v634 = vunpack.c.l.b16 %v402
      %v635 = vunpack.c.l.b16 %v416
      %v636 = vunpack.c.l.b16 %v426
      %v637 = vunpack.c.l.b16 %v440
      %v638 = vunpack.c.l.b16 %v450
      %v639 = vunpack.c.l.b16 %v464
      %v640 = vunpack.c.l.b16 %v474
      %v641 = vunpack.c.l.b16 %v488
      %v642 = vunpack.c.l.b16 %v498
      %v643 = vunpack.c.l.b16 %v512
      %v644 = vunpack.c.l.b16 %v522
      %v645 = vunpack.c.l.b16 %v536
      %v646 = vunpack.c.l.b16 %v546
      %v647 = vunpack.c.l.b16 %v560
      %v648 = vunpack.c.l.b16 %v570
      %v649 = vunpack.c.l.b16 %v584
      %v650 = vunpack.c.l.b16 %v594
      %v651 = vunpack.c.l.b16 %v608
      %v652 = vunpack.c.l.b16 %v618
      %v653 = vpack.c.b16 %v622, %v621
      %v654 = vpack.c.b16 %v624, %v623
      %v655 = vpack.c.b16 %v626, %v625
      %v656 = vpack.c.b16 %v628, %v627
      %v657 = vpack.c.b16 %v630, %v629
      %v658 = vpack.c.b16 %v632, %v631
      %v659 = vpack.c.b16 %v634, %v633
      %v660 = vpack.c.b16 %v636, %v635
      %v661 = vpack.c.b16 %v638, %v637
      %v662 = vpack.c.b16 %v640, %v639
      %v663 = vpack.c.b16 %v642, %v641
      %v664 = vpack.c.b16 %v644, %v643
      %v665 = vpack.c.b16 %v646, %v645
      %v666 = vpack.c.b16 %v648, %v647
      %v667 = vpack.c.b16 %v650, %v649
      %v668 = vpack.c.b16 %v652, %v651
      %vm669 = vcmask 64512
      %v671 = vsel %vm669, %v653, 0
      %v674 = vsel %vm669, %v654, 0
      %v677 = vsel %vm669, %v655, 0
      %v680 = vsel %vm669, %v656, 0
      %v683 = vsel %vm669, %v657, 0
      %v686 = vsel %vm669, %v658, 0
      %v689 = vsel %vm669, %v659, 0
      %v692 = vsel %vm669, %v660, 0
      %v695 = vsel %vm669, %v661, 0
      %v698 = vsel %vm669, %v662, 0
      %v701 = vsel %vm669, %v663, 0
      %v704 = vsel %vm669, %v664, 0
      %v707 = vsel %vm669, %v665, 0
      %v710 = vsel %vm669, %v666, 0
      %v713 = vsel %vm669, %v667, 0
      %v716 = vsel %vm669, %v668, 0
      %vm718 = vcmask 1043456
      %v720 = vsel %vm718, %v620, 0
      %722 = vmatprep.subr.bf16.mxu0 0
      %723 = vmatpush1.bf16.msra.mxu0 %v720
      %724 = vmatprep.subr.bf16.mxu0 0
      %725 = vmatpush1.bf16.msra.mxu0 0
      %726 = vmatprep.subr.bf16.mxu0 0
      %727 = vmatpush1.bf16.msra.mxu0 0
      %728 = vmatprep.subr.bf16.mxu0 0
      %729 = vmatpush1.bf16.msra.mxu0 0
      %730 = vmatprep.subr.bf16.mxu0 0
      %731 = vmatpush1.bf16.msra.mxu0 0
      %732 = vmatprep.subr.bf16.mxu0 0
      %733 = vmatpush1.bf16.msra.mxu0 0
      %734 = vmatprep.subr.bf16.mxu0 0
      %735 = vmatpush1.bf16.msra.mxu0 0
      %736 = vmatprep.subr.bf16.mxu0 0
      %737 = vmatpush1.bf16.msra.mxu0 0
      %738 = vmatprep.subr.bf16.mxu0 0
      %739 = vmatpush1.bf16.msra.mxu0 0
      %740 = vmatprep.subr.bf16.mxu0 0
      %741 = vmatpush1.bf16.msra.mxu0 0
      %742 = vmatprep.subr.bf16.mxu0 0
      %743 = vmatpush1.bf16.msra.mxu0 0
      %744 = vmatprep.subr.bf16.mxu0 0
      %745 = vmatpush1.bf16.msra.mxu0 0
      %746 = vmatprep.subr.bf16.mxu0 0
      %747 = vmatpush1.bf16.msra.mxu0 0
      %748 = vmatprep.subr.bf16.mxu0 0
      %749 = vmatpush1.bf16.msra.mxu0 0
      %750 = vmatprep.subr.bf16.mxu0 0
      %751 = vmatpush1.bf16.msra.mxu0 0
      %752 = vmatprep.subr.bf16.mxu0 0
      %753 = vmatpush1.bf16.msra.mxu0 0
      %754 = vmatprep.mubr.bf16.mxu0 0
      %755 = vmatmul.mubr.bf16.gmra.mrb[0].mxu0 %v671
      %v756 = vpop.f32.mrb[0].mxu0
      %v757 = vadd.f32 0.0, %v756
      %v758 = vpop.f32.mrb[0].mxu0
      %v759 = vpop.f32.mrb[0].mxu0
      %v760 = vadd.f32 0.0, %v759
      %v761 = vpop.f32.mrb[0].mxu0
      %762 = vmatprep.mubr.bf16.mxu0 0
      %763 = vmatmul.mubr.bf16.gmra.mrb[0].mxu0 %v674
      %v764 = vpop.f32.mrb[0].mxu0
      %v765 = vadd.f32 0.0, %v764
      %v766 = vpop.f32.mrb[0].mxu0
      %v767 = vpop.f32.mrb[0].mxu0
      %v768 = vadd.f32 0.0, %v767
      %v769 = vpop.f32.mrb[0].mxu0
      %770 = vmatprep.mubr.bf16.mxu0 0
      %771 = vmatmul.mubr.bf16.gmra.mrb[0].mxu0 %v677
      %v772 = vpop.f32.mrb[0].mxu0
      %v773 = vadd.f32 0.0, %v772
      %v774 = vpop.f32.mrb[0].mxu0
      %v775 = vpop.f32.mrb[0].mxu0
      %v776 = vadd.f32 0.0, %v775
      %v777 = vpop.f32.mrb[0].mxu0
      %778 = vmatprep.mubr.bf16.mxu0 0
      %779 = vmatmul.mubr.bf16.gmra.mrb[0].mxu0 %v680
      %v780 = vpop.f32.mrb[0].mxu0
      %v781 = vadd.f32 0.0, %v780
      %v782 = vpop.f32.mrb[0].mxu0
      %v783 = vpop.f32.mrb[0].mxu0
      %v784 = vadd.f32 0.0, %v783
      %v785 = vpop.f32.mrb[0].mxu0
      %786 = vmatprep.mubr.bf16.mxu0 0
      %787 = vmatmul.mubr.bf16.gmra.mrb[0].mxu0 %v683
      %v788 = vpop.f32.mrb[0].mxu0
      %v789 = vadd.f32 0.0, %v788
      %v790 = vpop.f32.mrb[0].mxu0
      %v791 = vpop.f32.mrb[0].mxu0
      %v792 = vadd.f32 0.0, %v791
      %v793 = vpop.f32.mrb[0].mxu0
      %794 = vmatprep.mubr.bf16.mxu0 0
      %795 = vmatmul.mubr.bf16.gmra.mrb[0].mxu0 %v686
      %v796 = vpop.f32.mrb[0].mxu0
      %v797 = vadd.f32 0.0, %v796
      %v798 = vpop.f32.mrb[0].mxu0
      %v799 = vpop.f32.mrb[0].mxu0
      %v800 = vadd.f32 0.0, %v799
      %v801 = vpop.f32.mrb[0].mxu0
      %802 = vmatprep.mubr.bf16.mxu0 0
      %803 = vmatmul.mubr.bf16.gmra.mrb[0].mxu0 %v689
      %v804 = vpop.f32.mrb[0].mxu0
      %v805 = vadd.f32 0.0, %v804
      %v806 = vpop.f32.mrb[0].mxu0
      %v807 = vpop.f32.mrb[0].mxu0
      %v808 = vadd.f32 0.0, %v807
      %v809 = vpop.f32.mrb[0].mxu0
      %810 = vmatprep.mubr.bf16.mxu0 0
      %811 = vmatmul.mubr.bf16.gmra.mrb[0].mxu0 %v692
      %v812 = vpop.f32.mrb[0].mxu0
      %v813 = vadd.f32 0.0, %v812
      %v814 = vpop.f32.mrb[0].mxu0
      %v815 = vpop.f32.mrb[0].mxu0
      %v816 = vadd.f32 0.0, %v815
      %v817 = vpop.f32.mrb[0].mxu0
      %818 = vmatprep.mubr.bf16.mxu0 0
      %819 = vmatmul.mubr.bf16.gmra.mrb[0].mxu0 %v695
      %v820 = vpop.f32.mrb[0].mxu0
      %v821 = vadd.f32 0.0, %v820
      %v822 = vpop.f32.mrb[0].mxu0
      %v823 = vpop.f32.mrb[0].mxu0
      %v824 = vadd.f32 0.0, %v823
      %v825 = vpop.f32.mrb[0].mxu0
      %826 = vmatprep.mubr.bf16.mxu0 0
      %827 = vmatmul.mubr.bf16.gmra.mrb[0].mxu0 %v698
      %v828 = vpop.f32.mrb[0].mxu0
      %v829 = vadd.f32 0.0, %v828
      %v830 = vpop.f32.mrb[0].mxu0
      %v831 = vpop.f32.mrb[0].mxu0
      %v832 = vadd.f32 0.0, %v831
      %v833 = vpop.f32.mrb[0].mxu0
      %834 = vmatprep.mubr.bf16.mxu0 0
      %835 = vmatmul.mubr.bf16.gmra.mrb[0].mxu0 %v701
      %v836 = vpop.f32.mrb[0].mxu0
      %v837 = vadd.f32 0.0, %v836
      %v838 = vpop.f32.mrb[0].mxu0
      %v839 = vpop.f32.mrb[0].mxu0
      %v840 = vadd.f32 0.0, %v839
      %v841 = vpop.f32.mrb[0].mxu0
      %842 = vmatprep.mubr.bf16.mxu0 0
      %843 = vmatmul.mubr.bf16.gmra.mrb[0].mxu0 %v704
      %v844 = vpop.f32.mrb[0].mxu0
      %v845 = vadd.f32 0.0, %v844
      %v846 = vpop.f32.mrb[0].mxu0
      %v847 = vpop.f32.mrb[0].mxu0
      %v848 = vadd.f32 0.0, %v847
      %v849 = vpop.f32.mrb[0].mxu0
      %850 = vmatprep.mubr.bf16.mxu0 0
      %851 = vmatmul.mubr.bf16.gmra.mrb[0].mxu0 %v707
      %v852 = vpop.f32.mrb[0].mxu0
      %v853 = vadd.f32 0.0, %v852
      %v854 = vpop.f32.mrb[0].mxu0
      %v855 = vpop.f32.mrb[0].mxu0
      %v856 = vadd.f32 0.0, %v855
      %v857 = vpop.f32.mrb[0].mxu0
      %858 = vmatprep.mubr.bf16.mxu0 0
      %859 = vmatmul.mubr.bf16.gmra.mrb[0].mxu0 %v710
      %v860 = vpop.f32.mrb[0].mxu0
      %v861 = vadd.f32 0.0, %v860
      %v862 = vpop.f32.mrb[0].mxu0
      %v863 = vpop.f32.mrb[0].mxu0
      %v864 = vadd.f32 0.0, %v863
      %v865 = vpop.f32.mrb[0].mxu0
      %866 = vmatprep.mubr.bf16.mxu0 0
      %867 = vmatmul.mubr.bf16.gmra.mrb[0].mxu0 %v713
      %v868 = vpop.f32.mrb[0].mxu0
      %v869 = vadd.f32 0.0, %v868
      %v870 = vpop.f32.mrb[0].mxu0
      %v871 = vpop.f32.mrb[0].mxu0
      %v872 = vadd.f32 0.0, %v871
      %v873 = vpop.f32.mrb[0].mxu0
      %874 = vmatprep.mubr.bf16.mxu0 0
      %875 = vmatmul.mubr.bf16.gmra.mrb[0].mxu0 %v716
      %v876 = vpop.f32.mrb[0].mxu0
      %v877 = vadd.f32 0.0, %v876
      %v878 = vpop.f32.mrb[0].mxu0
      %v879 = vpop.f32.mrb[0].mxu0
      %v880 = vadd.f32 0.0, %v879
      %v881 = vpop.f32.mrb[0].mxu0
      %882 = vdwg.mxu0
      %v915 = vunpack.c.l.b16 %v177
      %v916 = vunpack.c.l.b16 %v178
      %v917 = vunpack.c.l.b16 %v180
      %v918 = vunpack.c.l.b16 %v181
      %v919 = vunpack.c.l.b16 %v183
      %v920 = vunpack.c.l.b16 %v184
      %v921 = vunpack.c.l.b16 %v186
      %v922 = vunpack.c.l.b16 %v187
      %v923 = vunpack.c.l.b16 %v189
      %v924 = vunpack.c.l.b16 %v190
      %v925 = vunpack.c.l.b16 %v192
      %v926 = vunpack.c.l.b16 %v193
      %v927 = vunpack.c.l.b16 %v195
      %v928 = vunpack.c.l.b16 %v196
      %v929 = vunpack.c.l.b16 %v198
      %v930 = vunpack.c.l.b16 %v199
      %v931 = vunpack.c.l.b16 %v201
      %v932 = vunpack.c.l.b16 %v202
      %v933 = vunpack.c.l.b16 %v204
      %v934 = vunpack.c.l.b16 %v205
      %v935 = vunpack.c.l.b16 %v207
      %v936 = vunpack.c.l.b16 %v208
      %v937 = vunpack.c.l.b16 %v210
      %v938 = vunpack.c.l.b16 %v211
      %v939 = vunpack.c.l.b16 %v213
      %v940 = vunpack.c.l.b16 %v214
      %v941 = vunpack.c.l.b16 %v216
      %v942 = vunpack.c.l.b16 %v217
      %v943 = vunpack.c.l.b16 %v219
      %v944 = vunpack.c.l.b16 %v220
      %v945 = vunpack.c.l.b16 %v222
      %v946 = vunpack.c.l.b16 %v223
      %v947 = vpack.c.b16 %v916, %v915
      %v948 = vpack.c.b16 %v918, %v917
      %v949 = vpack.c.b16 %v920, %v919
      %v950 = vpack.c.b16 %v922, %v921
      %v951 = vpack.c.b16 %v924, %v923
      %v952 = vpack.c.b16 %v926, %v925
      %v953 = vpack.c.b16 %v928, %v927
      %v954 = vpack.c.b16 %v930, %v929
      %v955 = vpack.c.b16 %v932, %v931
      %v956 = vpack.c.b16 %v934, %v933
      %v957 = vpack.c.b16 %v936, %v935
      %v958 = vpack.c.b16 %v938, %v937
      %v959 = vpack.c.b16 %v940, %v939
      %v960 = vpack.c.b16 %v942, %v941
      %v961 = vpack.c.b16 %v944, %v943
      %v962 = vpack.c.b16 %v946, %v945
      %v964 = vsel %vm669, %v947, 0
      %v967 = vsel %vm669, %v948, 0
      %v970 = vsel %vm669, %v949, 0
      %v973 = vsel %vm669, %v950, 0
      %v976 = vsel %vm669, %v951, 0
      %v979 = vsel %vm669, %v952, 0
      %v982 = vsel %vm669, %v953, 0
      %v985 = vsel %vm669, %v954, 0
      %v988 = vsel %vm669, %v955, 0
      %v991 = vsel %vm669, %v956, 0
      %v994 = vsel %vm669, %v957, 0
      %v997 = vsel %vm669, %v958, 0
      %v1000 = vsel %vm669, %v959, 0
      %v1003 = vsel %vm669, %v960, 0
      %v1006 = vsel %vm669, %v961, 0
      %v1009 = vsel %vm669, %v962, 0
      %v1012 = vsel %vm718, %v231, 0
      %1014 = vmatprep.subr.bf16.mxu0 0
      %1015 = vmatpush1.bf16.msra.mxu0 %v1012
      %1016 = vmatprep.subr.bf16.mxu0 0
      %1017 = vmatpush1.bf16.msra.mxu0 0
      %1018 = vmatprep.subr.bf16.mxu0 0
      %1019 = vmatpush1.bf16.msra.mxu0 0
      %1020 = vmatprep.subr.bf16.mxu0 0
      %1021 = vmatpush1.bf16.msra.mxu0 0
      %1022 = vmatprep.subr.bf16.mxu0 0
      %1023 = vmatpush1.bf16.msra.mxu0 0
      %1024 = vmatprep.subr.bf16.mxu0 0
      %1025 = vmatpush1.bf16.msra.mxu0 0
      %1026 = vmatprep.subr.bf16.mxu0 0
      %1027 = vmatpush1.bf16.msra.mxu0 0
      %1028 = vmatprep.subr.bf16.mxu0 0
      %1029 = vmatpush1.bf16.msra.mxu0 0
      %1030 = vmatprep.subr.bf16.mxu0 0
      %1031 = vmatpush1.bf16.msra.mxu0 0
      %1032 = vmatprep.subr.bf16.mxu0 0
      %1033 = vmatpush1.bf16.msra.mxu0 0
      %1034 = vmatprep.subr.bf16.mxu0 0
      %1035 = vmatpush1.bf16.msra.mxu0 0
      %1036 = vmatprep.subr.bf16.mxu0 0
      %1037 = vmatpush1.bf16.msra.mxu0 0
      %1038 = vmatprep.subr.bf16.mxu0 0
      %1039 = vmatpush1.bf16.msra.mxu0 0
      %1040 = vmatprep.subr.bf16.mxu0 0
      %1041 = vmatpush1.bf16.msra.mxu0 0
      %1042 = vmatprep.subr.bf16.mxu0 0
      %1043 = vmatpush1.bf16.msra.mxu0 0
      %1044 = vmatprep.subr.bf16.mxu0 0
      %1045 = vmatpush1.bf16.msra.mxu0 0
      %1046 = vmatprep.mubr.bf16.mxu0 0
      %1047 = vmatmul.mubr.bf16.gmra.mrb[0].mxu0 %v964
      %v1048 = vpop.f32.mrb[0].mxu0
      %v1049 = vadd.f32 %v757, %v1048
      %v1050 = vpop.f32.mrb[0].mxu0
      %v1051 = vpop.f32.mrb[0].mxu0
      %v1052 = vadd.f32 %v760, %v1051
      %v1053 = vpop.f32.mrb[0].mxu0
      %1054 = vmatprep.mubr.bf16.mxu0 0
      %1055 = vmatmul.mubr.bf16.gmra.mrb[0].mxu0 %v967
      %v1056 = vpop.f32.mrb[0].mxu0
      %v1057 = vadd.f32 %v765, %v1056
      %v1058 = vpop.f32.mrb[0].mxu0
      %v1059 = vpop.f32.mrb[0].mxu0
      %v1060 = vadd.f32 %v768, %v1059
      %v1061 = vpop.f32.mrb[0].mxu0
      %1062 = vmatprep.mubr.bf16.mxu0 0
      %1063 = vmatmul.mubr.bf16.gmra.mrb[0].mxu0 %v970
      %v1064 = vpop.f32.mrb[0].mxu0
      %v1065 = vadd.f32 %v773, %v1064
      %v1066 = vpop.f32.mrb[0].mxu0
      %v1067 = vpop.f32.mrb[0].mxu0
      %v1068 = vadd.f32 %v776, %v1067
      %v1069 = vpop.f32.mrb[0].mxu0
      %1070 = vmatprep.mubr.bf16.mxu0 0
      %1071 = vmatmul.mubr.bf16.gmra.mrb[0].mxu0 %v973
      %v1072 = vpop.f32.mrb[0].mxu0
      %v1073 = vadd.f32 %v781, %v1072
      %v1074 = vpop.f32.mrb[0].mxu0
      %v1075 = vpop.f32.mrb[0].mxu0
      %v1076 = vadd.f32 %v784, %v1075
      %v1077 = vpop.f32.mrb[0].mxu0
      %1078 = vmatprep.mubr.bf16.mxu0 0
      %1079 = vmatmul.mubr.bf16.gmra.mrb[0].mxu0 %v976
      %v1080 = vpop.f32.mrb[0].mxu0
      %v1081 = vadd.f32 %v789, %v1080
      %v1082 = vpop.f32.mrb[0].mxu0
      %v1083 = vpop.f32.mrb[0].mxu0
      %v1084 = vadd.f32 %v792, %v1083
      %v1085 = vpop.f32.mrb[0].mxu0
      %1086 = vmatprep.mubr.bf16.mxu0 0
      %1087 = vmatmul.mubr.bf16.gmra.mrb[0].mxu0 %v979
      %v1088 = vpop.f32.mrb[0].mxu0
      %v1089 = vadd.f32 %v797, %v1088
      %v1090 = vpop.f32.mrb[0].mxu0
      %v1091 = vpop.f32.mrb[0].mxu0
      %v1092 = vadd.f32 %v800, %v1091
      %v1093 = vpop.f32.mrb[0].mxu0
      %1094 = vmatprep.mubr.bf16.mxu0 0
      %1095 = vmatmul.mubr.bf16.gmra.mrb[0].mxu0 %v982
      %v1096 = vpop.f32.mrb[0].mxu0
      %v1097 = vadd.f32 %v805, %v1096
      %v1098 = vpop.f32.mrb[0].mxu0
      %v1099 = vpop.f32.mrb[0].mxu0
      %v1100 = vadd.f32 %v808, %v1099
      %v1101 = vpop.f32.mrb[0].mxu0
      %1102 = vmatprep.mubr.bf16.mxu0 0
      %1103 = vmatmul.mubr.bf16.gmra.mrb[0].mxu0 %v985
      %v1104 = vpop.f32.mrb[0].mxu0
      %v1105 = vadd.f32 %v813, %v1104
      %v1106 = vpop.f32.mrb[0].mxu0
      %v1107 = vpop.f32.mrb[0].mxu0
      %v1108 = vadd.f32 %v816, %v1107
      %v1109 = vpop.f32.mrb[0].mxu0
      %1110 = vmatprep.mubr.bf16.mxu0 0
      %1111 = vmatmul.mubr.bf16.gmra.mrb[0].mxu0 %v988
      %v1112 = vpop.f32.mrb[0].mxu0
      %v1113 = vadd.f32 %v821, %v1112
      %v1114 = vpop.f32.mrb[0].mxu0
      %v1115 = vpop.f32.mrb[0].mxu0
      %v1116 = vadd.f32 %v824, %v1115
      %v1117 = vpop.f32.mrb[0].mxu0
      %1118 = vmatprep.mubr.bf16.mxu0 0
      %1119 = vmatmul.mubr.bf16.gmra.mrb[0].mxu0 %v991
      %v1120 = vpop.f32.mrb[0].mxu0
      %v1121 = vadd.f32 %v829, %v1120
      %v1122 = vpop.f32.mrb[0].mxu0
      %v1123 = vpop.f32.mrb[0].mxu0
      %v1124 = vadd.f32 %v832, %v1123
      %v1125 = vpop.f32.mrb[0].mxu0
      %1126 = vmatprep.mubr.bf16.mxu0 0
      %1127 = vmatmul.mubr.bf16.gmra.mrb[0].mxu0 %v994
      %v1128 = vpop.f32.mrb[0].mxu0
      %v1129 = vadd.f32 %v837, %v1128
      %v1130 = vpop.f32.mrb[0].mxu0
      %v1131 = vpop.f32.mrb[0].mxu0
      %v1132 = vadd.f32 %v840, %v1131
      %v1133 = vpop.f32.mrb[0].mxu0
      %1134 = vmatprep.mubr.bf16.mxu0 0
      %1135 = vmatmul.mubr.bf16.gmra.mrb[0].mxu0 %v997
      %v1136 = vpop.f32.mrb[0].mxu0
      %v1137 = vadd.f32 %v845, %v1136
      %v1138 = vpop.f32.mrb[0].mxu0
      %v1139 = vpop.f32.mrb[0].mxu0
      %v1140 = vadd.f32 %v848, %v1139
      %v1141 = vpop.f32.mrb[0].mxu0
      %1142 = vmatprep.mubr.bf16.mxu0 0
      %1143 = vmatmul.mubr.bf16.gmra.mrb[0].mxu0 %v1000
      %v1144 = vpop.f32.mrb[0].mxu0
      %v1145 = vadd.f32 %v853, %v1144
      %v1146 = vpop.f32.mrb[0].mxu0
      %v1147 = vpop.f32.mrb[0].mxu0
      %v1148 = vadd.f32 %v856, %v1147
      %v1149 = vpop.f32.mrb[0].mxu0
      %1150 = vmatprep.mubr.bf16.mxu0 0
      %1151 = vmatmul.mubr.bf16.gmra.mrb[0].mxu0 %v1003
      %v1152 = vpop.f32.mrb[0].mxu0
      %v1153 = vadd.f32 %v861, %v1152
      %v1154 = vpop.f32.mrb[0].mxu0
      %v1155 = vpop.f32.mrb[0].mxu0
      %v1156 = vadd.f32 %v864, %v1155
      %v1157 = vpop.f32.mrb[0].mxu0
      %1158 = vmatprep.mubr.bf16.mxu0 0
      %1159 = vmatmul.mubr.bf16.gmra.mrb[0].mxu0 %v1006
      %v1160 = vpop.f32.mrb[0].mxu0
      %v1161 = vadd.f32 %v869, %v1160
      %v1162 = vpop.f32.mrb[0].mxu0
      %v1163 = vpop.f32.mrb[0].mxu0
      %v1164 = vadd.f32 %v872, %v1163
      %v1165 = vpop.f32.mrb[0].mxu0
      %1166 = vmatprep.mubr.bf16.mxu0 0
      %1167 = vmatmul.mubr.bf16.gmra.mrb[0].mxu0 %v1009
      %v1168 = vpop.f32.mrb[0].mxu0
      %v1169 = vadd.f32 %v877, %v1168
      %v1170 = vpop.f32.mrb[0].mxu0
      %v1171 = vpop.f32.mrb[0].mxu0
      %v1172 = vadd.f32 %v880, %v1171
      %v1173 = vpop.f32.mrb[0].mxu0
      %1174 = vdwg.mxu0
      %vm1191 = vcmask 1042432
      %vm1192 = vcmask 1046532
      %vm1193 = vmor %vm1191, %vm1192
      %v1194 = vrot.slane %v177, 5
      %v1195 = vrot.slane %v1194, 4
      %v1196 = vrot.slane %v178, 5
      %v1197 = vsel %vm1193, %v1195, %v1196
      %v1198 = vrot.slane %v1196, 4
      %v1199 = vrot.slane %v179, 5
      %v1200 = vsel %vm1193, %v1198, %v1199
      %v1201 = vrot.slane %v180, 5
      %v1202 = vrot.slane %v1201, 4
      %v1203 = vrot.slane %v181, 5
      %v1204 = vsel %vm1193, %v1202, %v1203
      %v1205 = vrot.slane %v1203, 4
      %v1206 = vrot.slane %v182, 5
      %v1207 = vsel %vm1193, %v1205, %v1206
      %v1208 = vrot.slane %v183, 5
      %v1209 = vrot.slane %v1208, 4
      %v1210 = vrot.slane %v184, 5
      %v1211 = vsel %vm1193, %v1209, %v1210
      %v1212 = vrot.slane %v1210, 4
      %v1213 = vrot.slane %v185, 5
      %v1214 = vsel %vm1193, %v1212, %v1213
      %v1215 = vrot.slane %v186, 5
      %v1216 = vrot.slane %v1215, 4
      %v1217 = vrot.slane %v187, 5
      %v1218 = vsel %vm1193, %v1216, %v1217
      %v1219 = vrot.slane %v1217, 4
      %v1220 = vrot.slane %v188, 5
      %v1221 = vsel %vm1193, %v1219, %v1220
      %v1222 = vrot.slane %v189, 5
      %v1223 = vrot.slane %v1222, 4
      %v1224 = vrot.slane %v190, 5
      %v1225 = vsel %vm1193, %v1223, %v1224
      %v1226 = vrot.slane %v1224, 4
      %v1227 = vrot.slane %v191, 5
      %v1228 = vsel %vm1193, %v1226, %v1227
      %v1229 = vrot.slane %v192, 5
      %v1230 = vrot.slane %v1229, 4
      %v1231 = vrot.slane %v193, 5
      %v1232 = vsel %vm1193, %v1230, %v1231
      %v1233 = vrot.slane %v1231, 4
      %v1234 = vrot.slane %v194, 5
      %v1235 = vsel %vm1193, %v1233, %v1234
      %v1236 = vrot.slane %v195, 5
      %v1237 = vrot.slane %v1236, 4
      %v1238 = vrot.slane %v196, 5
      %v1239 = vsel %vm1193, %v1237, %v1238
      %v1240 = vrot.slane %v1238, 4
      %v1241 = vrot.slane %v197, 5
      %v1242 = vsel %vm1193, %v1240, %v1241
      %v1243 = vrot.slane %v198, 5
      %v1244 = vrot.slane %v1243, 4
      %v1245 = vrot.slane %v199, 5
      %v1246 = vsel %vm1193, %v1244, %v1245
      %v1247 = vrot.slane %v1245, 4
      %v1248 = vrot.slane %v200, 5
      %v1249 = vsel %vm1193, %v1247, %v1248
      %v1250 = vrot.slane %v201, 5
      %v1251 = vrot.slane %v1250, 4
      %v1252 = vrot.slane %v202, 5
      %v1253 = vsel %vm1193, %v1251, %v1252
      %v1254 = vrot.slane %v1252, 4
      %v1255 = vrot.slane %v203, 5
      %v1256 = vsel %vm1193, %v1254, %v1255
      %v1257 = vrot.slane %v204, 5
      %v1258 = vrot.slane %v1257, 4
      %v1259 = vrot.slane %v205, 5
      %v1260 = vsel %vm1193, %v1258, %v1259
      %v1261 = vrot.slane %v1259, 4
      %v1262 = vrot.slane %v206, 5
      %v1263 = vsel %vm1193, %v1261, %v1262
      %v1264 = vrot.slane %v207, 5
      %v1265 = vrot.slane %v1264, 4
      %v1266 = vrot.slane %v208, 5
      %v1267 = vsel %vm1193, %v1265, %v1266
      %v1268 = vrot.slane %v1266, 4
      %v1269 = vrot.slane %v209, 5
      %v1270 = vsel %vm1193, %v1268, %v1269
      %v1271 = vrot.slane %v210, 5
      %v1272 = vrot.slane %v1271, 4
      %v1273 = vrot.slane %v211, 5
      %v1274 = vsel %vm1193, %v1272, %v1273
      %v1275 = vrot.slane %v1273, 4
      %v1276 = vrot.slane %v212, 5
      %v1277 = vsel %vm1193, %v1275, %v1276
      %v1278 = vrot.slane %v213, 5
      %v1279 = vrot.slane %v1278, 4
      %v1280 = vrot.slane %v214, 5
      %v1281 = vsel %vm1193, %v1279, %v1280
      %v1282 = vrot.slane %v1280, 4
      %v1283 = vrot.slane %v215, 5
      %v1284 = vsel %vm1193, %v1282, %v1283
      %v1285 = vrot.slane %v216, 5
      %v1286 = vrot.slane %v1285, 4
      %v1287 = vrot.slane %v217, 5
      %v1288 = vsel %vm1193, %v1286, %v1287
      %v1289 = vrot.slane %v1287, 4
      %v1290 = vrot.slane %v218, 5
      %v1291 = vsel %vm1193, %v1289, %v1290
      %v1292 = vrot.slane %v219, 5
      %v1293 = vrot.slane %v1292, 4
      %v1294 = vrot.slane %v220, 5
      %v1295 = vsel %vm1193, %v1293, %v1294
      %v1296 = vrot.slane %v1294, 4
      %v1297 = vrot.slane %v221, 5
      %v1298 = vsel %vm1193, %v1296, %v1297
      %v1299 = vrot.slane %v222, 5
      %v1300 = vrot.slane %v1299, 4
      %v1301 = vrot.slane %v223, 5
      %v1302 = vsel %vm1193, %v1300, %v1301
      %v1303 = vrot.slane %v1301, 4
      %v1304 = vrot.slane %v224, 5
      %v1305 = vsel %vm1193, %v1303, %v1304
      %s1306 = scalar_lea.vmem %s1, 8
      %v1307 = vld [vmem:[%s1306] sm:$0xf]
      %v1308 = vunpack.c.l.b16 %v1197
      %v1309 = vunpack.c.l.b16 %v1200
      %v1310 = vunpack.c.l.b16 %v1204
      %v1311 = vunpack.c.l.b16 %v1207
      %v1312 = vunpack.c.l.b16 %v1211
      %v1313 = vunpack.c.l.b16 %v1214
      %v1314 = vunpack.c.l.b16 %v1218
      %v1315 = vunpack.c.l.b16 %v1221
      %v1316 = vunpack.c.l.b16 %v1225
      %v1317 = vunpack.c.l.b16 %v1228
      %v1318 = vunpack.c.l.b16 %v1232
      %v1319 = vunpack.c.l.b16 %v1235
      %v1320 = vunpack.c.l.b16 %v1239
      %v1321 = vunpack.c.l.b16 %v1242
      %v1322 = vunpack.c.l.b16 %v1246
      %v1323 = vunpack.c.l.b16 %v1249
      %v1324 = vunpack.c.l.b16 %v1253
      %v1325 = vunpack.c.l.b16 %v1256
      %v1326 = vunpack.c.l.b16 %v1260
      %v1327 = vunpack.c.l.b16 %v1263
      %v1328 = vunpack.c.l.b16 %v1267
      %v1329 = vunpack.c.l.b16 %v1270
      %v1330 = vunpack.c.l.b16 %v1274
      %v1331 = vunpack.c.l.b16 %v1277
      %v1332 = vunpack.c.l.b16 %v1281
      %v1333 = vunpack.c.l.b16 %v1284
      %v1334 = vunpack.c.l.b16 %v1288
      %v1335 = vunpack.c.l.b16 %v1291
      %v1336 = vunpack.c.l.b16 %v1295
      %v1337 = vunpack.c.l.b16 %v1298
      %v1338 = vunpack.c.l.b16 %v1302
      %v1339 = vunpack.c.l.b16 %v1305
      %v1340 = vpack.c.b16 %v1309, %v1308
      %v1341 = vpack.c.b16 %v1311, %v1310
      %v1342 = vpack.c.b16 %v1313, %v1312
      %v1343 = vpack.c.b16 %v1315, %v1314
      %v1344 = vpack.c.b16 %v1317, %v1316
      %v1345 = vpack.c.b16 %v1319, %v1318
      %v1346 = vpack.c.b16 %v1321, %v1320
      %v1347 = vpack.c.b16 %v1323, %v1322
      %v1348 = vpack.c.b16 %v1325, %v1324
      %v1349 = vpack.c.b16 %v1327, %v1326
      %v1350 = vpack.c.b16 %v1329, %v1328
      %v1351 = vpack.c.b16 %v1331, %v1330
      %v1352 = vpack.c.b16 %v1333, %v1332
      %v1353 = vpack.c.b16 %v1335, %v1334
      %v1354 = vpack.c.b16 %v1337, %v1336
      %v1355 = vpack.c.b16 %v1339, %v1338
      %v1357 = vsel %vm669, %v1340, 0
      %v1360 = vsel %vm669, %v1341, 0
      %v1363 = vsel %vm669, %v1342, 0
      %v1366 = vsel %vm669, %v1343, 0
      %v1369 = vsel %vm669, %v1344, 0
      %v1372 = vsel %vm669, %v1345, 0
      %v1375 = vsel %vm669, %v1346, 0
      %v1378 = vsel %vm669, %v1347, 0
      %v1381 = vsel %vm669, %v1348, 0
      %v1384 = vsel %vm669, %v1349, 0
      %v1387 = vsel %vm669, %v1350, 0
      %v1390 = vsel %vm669, %v1351, 0
      %v1393 = vsel %vm669, %v1352, 0
      %v1396 = vsel %vm669, %v1353, 0
      %v1399 = vsel %vm669, %v1354, 0
      %v1402 = vsel %vm669, %v1355, 0
      %v1405 = vsel %vm718, %v1307, 0
      %1407 = vmatprep.subr.bf16.mxu0 0
      %1408 = vmatpush1.bf16.msra.mxu0 %v1405
      %1409 = vmatprep.subr.bf16.mxu0 0
      %1410 = vmatpush1.bf16.msra.mxu0 0
      %1411 = vmatprep.subr.bf16.mxu0 0
      %1412 = vmatpush1.bf16.msra.mxu0 0
      %1413 = vmatprep.subr.bf16.mxu0 0
      %1414 = vmatpush1.bf16.msra.mxu0 0
      %1415 = vmatprep.subr.bf16.mxu0 0
      %1416 = vmatpush1.bf16.msra.mxu0 0
      %1417 = vmatprep.subr.bf16.mxu0 0
      %1418 = vmatpush1.bf16.msra.mxu0 0
      %1419 = vmatprep.subr.bf16.mxu0 0
      %1420 = vmatpush1.bf16.msra.mxu0 0
      %1421 = vmatprep.subr.bf16.mxu0 0
      %1422 = vmatpush1.bf16.msra.mxu0 0
      %1423 = vmatprep.subr.bf16.mxu0 0
      %1424 = vmatpush1.bf16.msra.mxu0 0
      %1425 = vmatprep.subr.bf16.mxu0 0
      %1426 = vmatpush1.bf16.msra.mxu0 0
      %1427 = vmatprep.subr.bf16.mxu0 0
      %1428 = vmatpush1.bf16.msra.mxu0 0
      %1429 = vmatprep.subr.bf16.mxu0 0
      %1430 = vmatpush1.bf16.msra.mxu0 0
      %1431 = vmatprep.subr.bf16.mxu0 0
      %1432 = vmatpush1.bf16.msra.mxu0 0
      %1433 = vmatprep.subr.bf16.mxu0 0
      %1434 = vmatpush1.bf16.msra.mxu0 0
      %1435 = vmatprep.subr.bf16.mxu0 0
      %1436 = vmatpush1.bf16.msra.mxu0 0
      %1437 = vmatprep.subr.bf16.mxu0 0
      %1438 = vmatpush1.bf16.msra.mxu0 0
      %1439 = vmatprep.mubr.bf16.mxu0 0
      %1440 = vmatmul.mubr.bf16.gmra.mrb[0].mxu0 %v1357
      %v1441 = vpop.f32.mrb[0].mxu0
      %v1442 = vadd.f32 0.0, %v1441
      %v1443 = vpop.f32.mrb[0].mxu0
      %v1444 = vpop.f32.mrb[0].mxu0
      %v1445 = vadd.f32 0.0, %v1444
      %v1446 = vpop.f32.mrb[0].mxu0
      %1447 = vmatprep.mubr.bf16.mxu0 0
      %1448 = vmatmul.mubr.bf16.gmra.mrb[0].mxu0 %v1360
      %v1449 = vpop.f32.mrb[0].mxu0
      %v1450 = vadd.f32 0.0, %v1449
      %v1451 = vpop.f32.mrb[0].mxu0
      %v1452 = vpop.f32.mrb[0].mxu0
      %v1453 = vadd.f32 0.0, %v1452
      %v1454 = vpop.f32.mrb[0].mxu0
      %1455 = vmatprep.mubr.bf16.mxu0 0
      %1456 = vmatmul.mubr.bf16.gmra.mrb[0].mxu0 %v1363
      %v1457 = vpop.f32.mrb[0].mxu0
      %v1458 = vadd.f32 0.0, %v1457
      %v1459 = vpop.f32.mrb[0].mxu0
      %v1460 = vpop.f32.mrb[0].mxu0
      %v1461 = vadd.f32 0.0, %v1460
      %v1462 = vpop.f32.mrb[0].mxu0
      %1463 = vmatprep.mubr.bf16.mxu0 0
      %1464 = vmatmul.mubr.bf16.gmra.mrb[0].mxu0 %v1366
      %v1465 = vpop.f32.mrb[0].mxu0
      %v1466 = vadd.f32 0.0, %v1465
      %v1467 = vpop.f32.mrb[0].mxu0
      %v1468 = vpop.f32.mrb[0].mxu0
      %v1469 = vadd.f32 0.0, %v1468
      %v1470 = vpop.f32.mrb[0].mxu0
      %1471 = vmatprep.mubr.bf16.mxu0 0
      %1472 = vmatmul.mubr.bf16.gmra.mrb[0].mxu0 %v1369
      %v1473 = vpop.f32.mrb[0].mxu0
      %v1474 = vadd.f32 0.0, %v1473
      %v1475 = vpop.f32.mrb[0].mxu0
      %v1476 = vpop.f32.mrb[0].mxu0
      %v1477 = vadd.f32 0.0, %v1476
      %v1478 = vpop.f32.mrb[0].mxu0
      %1479 = vmatprep.mubr.bf16.mxu0 0
      %1480 = vmatmul.mubr.bf16.gmra.mrb[0].mxu0 %v1372
      %v1481 = vpop.f32.mrb[0].mxu0
      %v1482 = vadd.f32 0.0, %v1481
      %v1483 = vpop.f32.mrb[0].mxu0
      %v1484 = vpop.f32.mrb[0].mxu0
      %v1485 = vadd.f32 0.0, %v1484
      %v1486 = vpop.f32.mrb[0].mxu0
      %1487 = vmatprep.mubr.bf16.mxu0 0
      %1488 = vmatmul.mubr.bf16.gmra.mrb[0].mxu0 %v1375
      %v1489 = vpop.f32.mrb[0].mxu0
      %v1490 = vadd.f32 0.0, %v1489
      %v1491 = vpop.f32.mrb[0].mxu0
      %v1492 = vpop.f32.mrb[0].mxu0
      %v1493 = vadd.f32 0.0, %v1492
      %v1494 = vpop.f32.mrb[0].mxu0
      %1495 = vmatprep.mubr.bf16.mxu0 0
      %1496 = vmatmul.mubr.bf16.gmra.mrb[0].mxu0 %v1378
      %v1497 = vpop.f32.mrb[0].mxu0
      %v1498 = vadd.f32 0.0, %v1497
      %v1499 = vpop.f32.mrb[0].mxu0
      %v1500 = vpop.f32.mrb[0].mxu0
      %v1501 = vadd.f32 0.0, %v1500
      %v1502 = vpop.f32.mrb[0].mxu0
      %1503 = vmatprep.mubr.bf16.mxu0 0
      %1504 = vmatmul.mubr.bf16.gmra.mrb[0].mxu0 %v1381
      %v1505 = vpop.f32.mrb[0].mxu0
      %v1506 = vadd.f32 0.0, %v1505
      %v1507 = vpop.f32.mrb[0].mxu0
      %v1508 = vpop.f32.mrb[0].mxu0
      %v1509 = vadd.f32 0.0, %v1508
      %v1510 = vpop.f32.mrb[0].mxu0
      %1511 = vmatprep.mubr.bf16.mxu0 0
      %1512 = vmatmul.mubr.bf16.gmra.mrb[0].mxu0 %v1384
      %v1513 = vpop.f32.mrb[0].mxu0
      %v1514 = vadd.f32 0.0, %v1513
      %v1515 = vpop.f32.mrb[0].mxu0
      %v1516 = vpop.f32.mrb[0].mxu0
      %v1517 = vadd.f32 0.0, %v1516
      %v1518 = vpop.f32.mrb[0].mxu0
      %1519 = vmatprep.mubr.bf16.mxu0 0
      %1520 = vmatmul.mubr.bf16.gmra.mrb[0].mxu0 %v1387
      %v1521 = vpop.f32.mrb[0].mxu0
      %v1522 = vadd.f32 0.0, %v1521
      %v1523 = vpop.f32.mrb[0].mxu0
      %v1524 = vpop.f32.mrb[0].mxu0
      %v1525 = vadd.f32 0.0, %v1524
      %v1526 = vpop.f32.mrb[0].mxu0
      %1527 = vmatprep.mubr.bf16.mxu0 0
      %1528 = vmatmul.mubr.bf16.gmra.mrb[0].mxu0 %v1390
      %v1529 = vpop.f32.mrb[0].mxu0
      %v1530 = vadd.f32 0.0, %v1529
      %v1531 = vpop.f32.mrb[0].mxu0
      %v1532 = vpop.f32.mrb[0].mxu0
      %v1533 = vadd.f32 0.0, %v1532
      %v1534 = vpop.f32.mrb[0].mxu0
      %1535 = vmatprep.mubr.bf16.mxu0 0
      %1536 = vmatmul.mubr.bf16.gmra.mrb[0].mxu0 %v1393
      %v1537 = vpop.f32.mrb[0].mxu0
      %v1538 = vadd.f32 0.0, %v1537
      %v1539 = vpop.f32.mrb[0].mxu0
      %v1540 = vpop.f32.mrb[0].mxu0
      %v1541 = vadd.f32 0.0, %v1540
      %v1542 = vpop.f32.mrb[0].mxu0
      %1543 = vmatprep.mubr.bf16.mxu0 0
      %1544 = vmatmul.mubr.bf16.gmra.mrb[0].mxu0 %v1396
      %v1545 = vpop.f32.mrb[0].mxu0
      %v1546 = vadd.f32 0.0, %v1545
      %v1547 = vpop.f32.mrb[0].mxu0
      %v1548 = vpop.f32.mrb[0].mxu0
      %v1549 = vadd.f32 0.0, %v1548
      %v1550 = vpop.f32.mrb[0].mxu0
      %1551 = vmatprep.mubr.bf16.mxu0 0
      %1552 = vmatmul.mubr.bf16.gmra.mrb[0].mxu0 %v1399
      %v1553 = vpop.f32.mrb[0].mxu0
      %v1554 = vadd.f32 0.0, %v1553
      %v1555 = vpop.f32.mrb[0].mxu0
      %v1556 = vpop.f32.mrb[0].mxu0
      %v1557 = vadd.f32 0.0, %v1556
      %v1558 = vpop.f32.mrb[0].mxu0
      %1559 = vmatprep.mubr.bf16.mxu0 0
      %1560 = vmatmul.mubr.bf16.gmra.mrb[0].mxu0 %v1402
      %v1561 = vpop.f32.mrb[0].mxu0
      %v1562 = vadd.f32 0.0, %v1561
      %v1563 = vpop.f32.mrb[0].mxu0
      %v1564 = vpop.f32.mrb[0].mxu0
      %v1565 = vadd.f32 0.0, %v1564
      %v1566 = vpop.f32.mrb[0].mxu0
      %1567 = vdwg.mxu0
      %v1568 = vadd.f32 %v1049, %v1442
      %v1569 = vadd.f32 %v1052, %v1445
      %v1570 = vadd.f32 %v1057, %v1450
      %v1571 = vadd.f32 %v1060, %v1453
      %v1572 = vadd.f32 %v1065, %v1458
      %v1573 = vadd.f32 %v1068, %v1461
      %v1574 = vadd.f32 %v1073, %v1466
      %v1575 = vadd.f32 %v1076, %v1469
      %v1576 = vadd.f32 %v1081, %v1474
      %v1577 = vadd.f32 %v1084, %v1477
      %v1578 = vadd.f32 %v1089, %v1482
      %v1579 = vadd.f32 %v1092, %v1485
      %v1580 = vadd.f32 %v1097, %v1490
      %v1581 = vadd.f32 %v1100, %v1493
      %v1582 = vadd.f32 %v1105, %v1498
      %v1583 = vadd.f32 %v1108, %v1501
      %v1584 = vadd.f32 %v1113, %v1506
      %v1585 = vadd.f32 %v1116, %v1509
      %v1586 = vadd.f32 %v1121, %v1514
      %v1587 = vadd.f32 %v1124, %v1517
      %v1588 = vadd.f32 %v1129, %v1522
      %v1589 = vadd.f32 %v1132, %v1525
      %v1590 = vadd.f32 %v1137, %v1530
      %v1591 = vadd.f32 %v1140, %v1533
      %v1592 = vadd.f32 %v1145, %v1538
      %v1593 = vadd.f32 %v1148, %v1541
      %v1594 = vadd.f32 %v1153, %v1546
      %v1595 = vadd.f32 %v1156, %v1549
      %v1596 = vadd.f32 %v1161, %v1554
      %v1597 = vadd.f32 %v1164, %v1557
      %v1598 = vadd.f32 %v1169, %v1562
      %v1599 = vadd.f32 %v1172, %v1565
      %s1600 = scalar_lea.vmem %s1, 12
      %v1601 = vld [vmem:[%s1600] sm:$0xf]
      %v1604 = vunpack.c.l.b16 %v225
      %v1605 = vunpack.c.l.b16 %v226
      %v1606 = vpack.c.b16 %v1605, %v1604
      %v1608 = vsel %vm669, %v1606, 0
      %v1611 = vsel %vm718, %v1601, 0
      %1613 = vmatprep.subr.bf16.mxu0 0
      %1614 = vmatpush1.bf16.msra.mxu0 %v1611
      %1615 = vmatprep.subr.bf16.mxu0 0
      %1616 = vmatpush1.bf16.msra.mxu0 0
      %1617 = vmatprep.subr.bf16.mxu0 0
      %1618 = vmatpush1.bf16.msra.mxu0 0
      %1619 = vmatprep.subr.bf16.mxu0 0
      %1620 = vmatpush1.bf16.msra.mxu0 0
      %1621 = vmatprep.subr.bf16.mxu0 0
      %1622 = vmatpush1.bf16.msra.mxu0 0
      %1623 = vmatprep.subr.bf16.mxu0 0
      %1624 = vmatpush1.bf16.msra.mxu0 0
      %1625 = vmatprep.subr.bf16.mxu0 0
      %1626 = vmatpush1.bf16.msra.mxu0 0
      %1627 = vmatprep.subr.bf16.mxu0 0
      %1628 = vmatpush1.bf16.msra.mxu0 0
      %1629 = vmatprep.subr.bf16.mxu0 0
      %1630 = vmatpush1.bf16.msra.mxu0 0
      %1631 = vmatprep.subr.bf16.mxu0 0
      %1632 = vmatpush1.bf16.msra.mxu0 0
      %1633 = vmatprep.subr.bf16.mxu0 0
      %1634 = vmatpush1.bf16.msra.mxu0 0
      %1635 = vmatprep.subr.bf16.mxu0 0
      %1636 = vmatpush1.bf16.msra.mxu0 0
      %1637 = vmatprep.subr.bf16.mxu0 0
      %1638 = vmatpush1.bf16.msra.mxu0 0
      %1639 = vmatprep.subr.bf16.mxu0 0
      %1640 = vmatpush1.bf16.msra.mxu0 0
      %1641 = vmatprep.subr.bf16.mxu0 0
      %1642 = vmatpush1.bf16.msra.mxu0 0
      %1643 = vmatprep.subr.bf16.mxu0 0
      %1644 = vmatpush1.bf16.msra.mxu0 0
      %1645 = vmatprep.mubr.bf16.mxu0 0
      %1646 = vmatmul.mubr.bf16.gmra.mrb[0].mxu0 %v967
      %v1647 = vpop.f32.mrb[0].mxu0
      %v1648 = vadd.f32 0.0, %v1647
      %v1649 = vpop.f32.mrb[0].mxu0
      %v1650 = vpop.f32.mrb[0].mxu0
      %v1651 = vadd.f32 0.0, %v1650
      %v1652 = vpop.f32.mrb[0].mxu0
      %1653 = vmatprep.mubr.bf16.mxu0 0
      %1654 = vmatmul.mubr.bf16.gmra.mrb[0].mxu0 %v970
      %v1655 = vpop.f32.mrb[0].mxu0
      %v1656 = vadd.f32 0.0, %v1655
      %v1657 = vpop.f32.mrb[0].mxu0
      %v1658 = vpop.f32.mrb[0].mxu0
      %v1659 = vadd.f32 0.0, %v1658
      %v1660 = vpop.f32.mrb[0].mxu0
      %1661 = vmatprep.mubr.bf16.mxu0 0
      %1662 = vmatmul.mubr.bf16.gmra.mrb[0].mxu0 %v973
      %v1663 = vpop.f32.mrb[0].mxu0
      %v1664 = vadd.f32 0.0, %v1663
      %v1665 = vpop.f32.mrb[0].mxu0
      %v1666 = vpop.f32.mrb[0].mxu0
      %v1667 = vadd.f32 0.0, %v1666
      %v1668 = vpop.f32.mrb[0].mxu0
      %1669 = vmatprep.mubr.bf16.mxu0 0
      %1670 = vmatmul.mubr.bf16.gmra.mrb[0].mxu0 %v976
      %v1671 = vpop.f32.mrb[0].mxu0
      %v1672 = vadd.f32 0.0, %v1671
      %v1673 = vpop.f32.mrb[0].mxu0
      %v1674 = vpop.f32.mrb[0].mxu0
      %v1675 = vadd.f32 0.0, %v1674
      %v1676 = vpop.f32.mrb[0].mxu0
      %1677 = vmatprep.mubr.bf16.mxu0 0
      %1678 = vmatmul.mubr.bf16.gmra.mrb[0].mxu0 %v979
      %v1679 = vpop.f32.mrb[0].mxu0
      %v1680 = vadd.f32 0.0, %v1679
      %v1681 = vpop.f32.mrb[0].mxu0
      %v1682 = vpop.f32.mrb[0].mxu0
      %v1683 = vadd.f32 0.0, %v1682
      %v1684 = vpop.f32.mrb[0].mxu0
      %1685 = vmatprep.mubr.bf16.mxu0 0
      %1686 = vmatmul.mubr.bf16.gmra.mrb[0].mxu0 %v982
      %v1687 = vpop.f32.mrb[0].mxu0
      %v1688 = vadd.f32 0.0, %v1687
      %v1689 = vpop.f32.mrb[0].mxu0
      %v1690 = vpop.f32.mrb[0].mxu0
      %v1691 = vadd.f32 0.0, %v1690
      %v1692 = vpop.f32.mrb[0].mxu0
      %1693 = vmatprep.mubr.bf16.mxu0 0
      %1694 = vmatmul.mubr.bf16.gmra.mrb[0].mxu0 %v985
      %v1695 = vpop.f32.mrb[0].mxu0
      %v1696 = vadd.f32 0.0, %v1695
      %v1697 = vpop.f32.mrb[0].mxu0
      %v1698 = vpop.f32.mrb[0].mxu0
      %v1699 = vadd.f32 0.0, %v1698
      %v1700 = vpop.f32.mrb[0].mxu0
      %1701 = vmatprep.mubr.bf16.mxu0 0
      %1702 = vmatmul.mubr.bf16.gmra.mrb[0].mxu0 %v988
      %v1703 = vpop.f32.mrb[0].mxu0
      %v1704 = vadd.f32 0.0, %v1703
      %v1705 = vpop.f32.mrb[0].mxu0
      %v1706 = vpop.f32.mrb[0].mxu0
      %v1707 = vadd.f32 0.0, %v1706
      %v1708 = vpop.f32.mrb[0].mxu0
      %1709 = vmatprep.mubr.bf16.mxu0 0
      %1710 = vmatmul.mubr.bf16.gmra.mrb[0].mxu0 %v991
      %v1711 = vpop.f32.mrb[0].mxu0
      %v1712 = vadd.f32 0.0, %v1711
      %v1713 = vpop.f32.mrb[0].mxu0
      %v1714 = vpop.f32.mrb[0].mxu0
      %v1715 = vadd.f32 0.0, %v1714
      %v1716 = vpop.f32.mrb[0].mxu0
      %1717 = vmatprep.mubr.bf16.mxu0 0
      %1718 = vmatmul.mubr.bf16.gmra.mrb[0].mxu0 %v994
      %v1719 = vpop.f32.mrb[0].mxu0
      %v1720 = vadd.f32 0.0, %v1719
      %v1721 = vpop.f32.mrb[0].mxu0
      %v1722 = vpop.f32.mrb[0].mxu0
      %v1723 = vadd.f32 0.0, %v1722
      %v1724 = vpop.f32.mrb[0].mxu0
      %1725 = vmatprep.mubr.bf16.mxu0 0
      %1726 = vmatmul.mubr.bf16.gmra.mrb[0].mxu0 %v997
      %v1727 = vpop.f32.mrb[0].mxu0
      %v1728 = vadd.f32 0.0, %v1727
      %v1729 = vpop.f32.mrb[0].mxu0
      %v1730 = vpop.f32.mrb[0].mxu0
      %v1731 = vadd.f32 0.0, %v1730
      %v1732 = vpop.f32.mrb[0].mxu0
      %1733 = vmatprep.mubr.bf16.mxu0 0
      %1734 = vmatmul.mubr.bf16.gmra.mrb[0].mxu0 %v1000
      %v1735 = vpop.f32.mrb[0].mxu0
      %v1736 = vadd.f32 0.0, %v1735
      %v1737 = vpop.f32.mrb[0].mxu0
      %v1738 = vpop.f32.mrb[0].mxu0
      %v1739 = vadd.f32 0.0, %v1738
      %v1740 = vpop.f32.mrb[0].mxu0
      %1741 = vmatprep.mubr.bf16.mxu0 0
      %1742 = vmatmul.mubr.bf16.gmra.mrb[0].mxu0 %v1003
      %v1743 = vpop.f32.mrb[0].mxu0
      %v1744 = vadd.f32 0.0, %v1743
      %v1745 = vpop.f32.mrb[0].mxu0
      %v1746 = vpop.f32.mrb[0].mxu0
      %v1747 = vadd.f32 0.0, %v1746
      %v1748 = vpop.f32.mrb[0].mxu0
      %1749 = vmatprep.mubr.bf16.mxu0 0
      %1750 = vmatmul.mubr.bf16.gmra.mrb[0].mxu0 %v1006
      %v1751 = vpop.f32.mrb[0].mxu0
      %v1752 = vadd.f32 0.0, %v1751
      %v1753 = vpop.f32.mrb[0].mxu0
      %v1754 = vpop.f32.mrb[0].mxu0
      %v1755 = vadd.f32 0.0, %v1754
      %v1756 = vpop.f32.mrb[0].mxu0
      %1757 = vmatprep.mubr.bf16.mxu0 0
      %1758 = vmatmul.mubr.bf16.gmra.mrb[0].mxu0 %v1009
      %v1759 = vpop.f32.mrb[0].mxu0
      %v1760 = vadd.f32 0.0, %v1759
      %v1761 = vpop.f32.mrb[0].mxu0
      %v1762 = vpop.f32.mrb[0].mxu0
      %v1763 = vadd.f32 0.0, %v1762
      %v1764 = vpop.f32.mrb[0].mxu0
      %1765 = vmatprep.mubr.bf16.mxu0 0
      %1766 = vmatmul.mubr.bf16.gmra.mrb[0].mxu0 %v1608
      %v1767 = vpop.f32.mrb[0].mxu0
      %v1768 = vadd.f32 0.0, %v1767
      %v1769 = vpop.f32.mrb[0].mxu0
      %v1770 = vpop.f32.mrb[0].mxu0
      %v1771 = vadd.f32 0.0, %v1770
      %v1772 = vpop.f32.mrb[0].mxu0
      %1773 = vdwg.mxu0
      %v1774 = vadd.f32 %v1568, %v1648
      %v1775 = vadd.f32 %v1569, %v1651
      %v1776 = vadd.f32 %v1570, %v1656
      %v1777 = vadd.f32 %v1571, %v1659
      %v1778 = vadd.f32 %v1572, %v1664
      %v1779 = vadd.f32 %v1573, %v1667
      %v1780 = vadd.f32 %v1574, %v1672
      %v1781 = vadd.f32 %v1575, %v1675
      %v1782 = vadd.f32 %v1576, %v1680
      %v1783 = vadd.f32 %v1577, %v1683
      %v1784 = vadd.f32 %v1578, %v1688
      %v1785 = vadd.f32 %v1579, %v1691
      %v1786 = vadd.f32 %v1580, %v1696
      %v1787 = vadd.f32 %v1581, %v1699
      %v1788 = vadd.f32 %v1582, %v1704
      %v1789 = vadd.f32 %v1583, %v1707
      %v1790 = vadd.f32 %v1584, %v1712
      %v1791 = vadd.f32 %v1585, %v1715
      %v1792 = vadd.f32 %v1586, %v1720
      %v1793 = vadd.f32 %v1587, %v1723
      %v1794 = vadd.f32 %v1588, %v1728
      %v1795 = vadd.f32 %v1589, %v1731
      %v1796 = vadd.f32 %v1590, %v1736
      %v1797 = vadd.f32 %v1591, %v1739
      %v1798 = vadd.f32 %v1592, %v1744
      %v1799 = vadd.f32 %v1593, %v1747
      %v1800 = vadd.f32 %v1594, %v1752
      %v1801 = vadd.f32 %v1595, %v1755
      %v1802 = vadd.f32 %v1596, %v1760
      %v1803 = vadd.f32 %v1597, %v1763
      %v1804 = vadd.f32 %v1598, %v1768
      %v1805 = vadd.f32 %v1599, %v1771
      %v1807 = vshrl.u32 %v225, 16
      %v1809 = vrot.slane %v1807, 4
      %v1810 = vshll.u32 %v225, 16
      %v1812 = vrot.slane %v1810, 5
      %v1813 = vor.u32 %v1809, %v1812
      %v1814 = vrot.slane %v1813, 4
      %v1816 = vshll.u32 %v226, 16
      %v1818 = vrot.slane %v1816, 5
      %v1819 = vsel %vm234, %v1814, %v1818
      %v1820 = vshrl.u32 %v226, 16
      %v1822 = vrot.slane %v1820, 4
      %v1823 = vor.u32 %v1822, %v1818
      %v1824 = vrot.slane %v1823, 4
      %v1826 = vshll.u32 %v227, 16
      %v1828 = vrot.slane %v1826, 5
      %v1829 = vsel %vm234, %v1824, %v1828
      %s1830 = scalar_lea.vmem %s1, 16
      %v1831 = vld [vmem:[%s1830] sm:$0xf]
      %v1832 = vunpack.c.l.b16 %v1819
      %v1833 = vunpack.c.l.b16 %v1829
      %v1834 = vpack.c.b16 %v1833, %v1832
      %v1836 = vsel %vm669, %v1834, 0
      %v1839 = vsel %vm718, %v1831, 0
      %1841 = vmatprep.subr.bf16.mxu0 0
      %1842 = vmatpush1.bf16.msra.mxu0 %v1839
      %1843 = vmatprep.subr.bf16.mxu0 0
      %1844 = vmatpush1.bf16.msra.mxu0 0
      %1845 = vmatprep.subr.bf16.mxu0 0
      %1846 = vmatpush1.bf16.msra.mxu0 0
      %1847 = vmatprep.subr.bf16.mxu0 0
      %1848 = vmatpush1.bf16.msra.mxu0 0
      %1849 = vmatprep.subr.bf16.mxu0 0
      %1850 = vmatpush1.bf16.msra.mxu0 0
      %1851 = vmatprep.subr.bf16.mxu0 0
      %1852 = vmatpush1.bf16.msra.mxu0 0
      %1853 = vmatprep.subr.bf16.mxu0 0
      %1854 = vmatpush1.bf16.msra.mxu0 0
      %1855 = vmatprep.subr.bf16.mxu0 0
      %1856 = vmatpush1.bf16.msra.mxu0 0
      %1857 = vmatprep.subr.bf16.mxu0 0
      %1858 = vmatpush1.bf16.msra.mxu0 0
      %1859 = vmatprep.subr.bf16.mxu0 0
      %1860 = vmatpush1.bf16.msra.mxu0 0
      %1861 = vmatprep.subr.bf16.mxu0 0
      %1862 = vmatpush1.bf16.msra.mxu0 0
      %1863 = vmatprep.subr.bf16.mxu0 0
      %1864 = vmatpush1.bf16.msra.mxu0 0
      %1865 = vmatprep.subr.bf16.mxu0 0
      %1866 = vmatpush1.bf16.msra.mxu0 0
      %1867 = vmatprep.subr.bf16.mxu0 0
      %1868 = vmatpush1.bf16.msra.mxu0 0
      %1869 = vmatprep.subr.bf16.mxu0 0
      %1870 = vmatpush1.bf16.msra.mxu0 0
      %1871 = vmatprep.subr.bf16.mxu0 0
      %1872 = vmatpush1.bf16.msra.mxu0 0
      %1873 = vmatprep.mubr.bf16.mxu0 0
      %1874 = vmatmul.mubr.bf16.gmra.mrb[0].mxu0 %v674
      %v1875 = vpop.f32.mrb[0].mxu0
      %v1876 = vadd.f32 0.0, %v1875
      %v1877 = vpop.f32.mrb[0].mxu0
      %v1878 = vpop.f32.mrb[0].mxu0
      %v1879 = vadd.f32 0.0, %v1878
      %v1880 = vpop.f32.mrb[0].mxu0
      %1881 = vmatprep.mubr.bf16.mxu0 0
      %1882 = vmatmul.mubr.bf16.gmra.mrb[0].mxu0 %v677
      %v1883 = vpop.f32.mrb[0].mxu0
      %v1884 = vadd.f32 0.0, %v1883
      %v1885 = vpop.f32.mrb[0].mxu0
      %v1886 = vpop.f32.mrb[0].mxu0
      %v1887 = vadd.f32 0.0, %v1886
      %v1888 = vpop.f32.mrb[0].mxu0
      %1889 = vmatprep.mubr.bf16.mxu0 0
      %1890 = vmatmul.mubr.bf16.gmra.mrb[0].mxu0 %v680
      %v1891 = vpop.f32.mrb[0].mxu0
      %v1892 = vadd.f32 0.0, %v1891
      %v1893 = vpop.f32.mrb[0].mxu0
      %v1894 = vpop.f32.mrb[0].mxu0
      %v1895 = vadd.f32 0.0, %v1894
      %v1896 = vpop.f32.mrb[0].mxu0
      %1897 = vmatprep.mubr.bf16.mxu0 0
      %1898 = vmatmul.mubr.bf16.gmra.mrb[0].mxu0 %v683
      %v1899 = vpop.f32.mrb[0].mxu0
      %v1900 = vadd.f32 0.0, %v1899
      %v1901 = vpop.f32.mrb[0].mxu0
      %v1902 = vpop.f32.mrb[0].mxu0
      %v1903 = vadd.f32 0.0, %v1902
      %v1904 = vpop.f32.mrb[0].mxu0
      %1905 = vmatprep.mubr.bf16.mxu0 0
      %1906 = vmatmul.mubr.bf16.gmra.mrb[0].mxu0 %v686
      %v1907 = vpop.f32.mrb[0].mxu0
      %v1908 = vadd.f32 0.0, %v1907
      %v1909 = vpop.f32.mrb[0].mxu0
      %v1910 = vpop.f32.mrb[0].mxu0
      %v1911 = vadd.f32 0.0, %v1910
      %v1912 = vpop.f32.mrb[0].mxu0
      %1913 = vmatprep.mubr.bf16.mxu0 0
      %1914 = vmatmul.mubr.bf16.gmra.mrb[0].mxu0 %v689
      %v1915 = vpop.f32.mrb[0].mxu0
      %v1916 = vadd.f32 0.0, %v1915
      %v1917 = vpop.f32.mrb[0].mxu0
      %v1918 = vpop.f32.mrb[0].mxu0
      %v1919 = vadd.f32 0.0, %v1918
      %v1920 = vpop.f32.mrb[0].mxu0
      %1921 = vmatprep.mubr.bf16.mxu0 0
      %1922 = vmatmul.mubr.bf16.gmra.mrb[0].mxu0 %v692
      %v1923 = vpop.f32.mrb[0].mxu0
      %v1924 = vadd.f32 0.0, %v1923
      %v1925 = vpop.f32.mrb[0].mxu0
      %v1926 = vpop.f32.mrb[0].mxu0
      %v1927 = vadd.f32 0.0, %v1926
      %v1928 = vpop.f32.mrb[0].mxu0
      %1929 = vmatprep.mubr.bf16.mxu0 0
      %1930 = vmatmul.mubr.bf16.gmra.mrb[0].mxu0 %v695
      %v1931 = vpop.f32.mrb[0].mxu0
      %v1932 = vadd.f32 0.0, %v1931
      %v1933 = vpop.f32.mrb[0].mxu0
      %v1934 = vpop.f32.mrb[0].mxu0
      %v1935 = vadd.f32 0.0, %v1934
      %v1936 = vpop.f32.mrb[0].mxu0
      %1937 = vmatprep.mubr.bf16.mxu0 0
      %1938 = vmatmul.mubr.bf16.gmra.mrb[0].mxu0 %v698
      %v1939 = vpop.f32.mrb[0].mxu0
      %v1940 = vadd.f32 0.0, %v1939
      %v1941 = vpop.f32.mrb[0].mxu0
      %v1942 = vpop.f32.mrb[0].mxu0
      %v1943 = vadd.f32 0.0, %v1942
      %v1944 = vpop.f32.mrb[0].mxu0
      %1945 = vmatprep.mubr.bf16.mxu0 0
      %1946 = vmatmul.mubr.bf16.gmra.mrb[0].mxu0 %v701
      %v1947 = vpop.f32.mrb[0].mxu0
      %v1948 = vadd.f32 0.0, %v1947
      %v1949 = vpop.f32.mrb[0].mxu0
      %v1950 = vpop.f32.mrb[0].mxu0
      %v1951 = vadd.f32 0.0, %v1950
      %v1952 = vpop.f32.mrb[0].mxu0
      %1953 = vmatprep.mubr.bf16.mxu0 0
      %1954 = vmatmul.mubr.bf16.gmra.mrb[0].mxu0 %v704
      %v1955 = vpop.f32.mrb[0].mxu0
      %v1956 = vadd.f32 0.0, %v1955
      %v1957 = vpop.f32.mrb[0].mxu0
      %v1958 = vpop.f32.mrb[0].mxu0
      %v1959 = vadd.f32 0.0, %v1958
      %v1960 = vpop.f32.mrb[0].mxu0
      %1961 = vmatprep.mubr.bf16.mxu0 0
      %1962 = vmatmul.mubr.bf16.gmra.mrb[0].mxu0 %v707
      %v1963 = vpop.f32.mrb[0].mxu0
      %v1964 = vadd.f32 0.0, %v1963
      %v1965 = vpop.f32.mrb[0].mxu0
      %v1966 = vpop.f32.mrb[0].mxu0
      %v1967 = vadd.f32 0.0, %v1966
      %v1968 = vpop.f32.mrb[0].mxu0
      %1969 = vmatprep.mubr.bf16.mxu0 0
      %1970 = vmatmul.mubr.bf16.gmra.mrb[0].mxu0 %v710
      %v1971 = vpop.f32.mrb[0].mxu0
      %v1972 = vadd.f32 0.0, %v1971
      %v1973 = vpop.f32.mrb[0].mxu0
      %v1974 = vpop.f32.mrb[0].mxu0
      %v1975 = vadd.f32 0.0, %v1974
      %v1976 = vpop.f32.mrb[0].mxu0
      %1977 = vmatprep.mubr.bf16.mxu0 0
      %1978 = vmatmul.mubr.bf16.gmra.mrb[0].mxu0 %v713
      %v1979 = vpop.f32.mrb[0].mxu0
      %v1980 = vadd.f32 0.0, %v1979
      %v1981 = vpop.f32.mrb[0].mxu0
      %v1982 = vpop.f32.mrb[0].mxu0
      %v1983 = vadd.f32 0.0, %v1982
      %v1984 = vpop.f32.mrb[0].mxu0
      %1985 = vmatprep.mubr.bf16.mxu0 0
      %1986 = vmatmul.mubr.bf16.gmra.mrb[0].mxu0 %v716
      %v1987 = vpop.f32.mrb[0].mxu0
      %v1988 = vadd.f32 0.0, %v1987
      %v1989 = vpop.f32.mrb[0].mxu0
      %v1990 = vpop.f32.mrb[0].mxu0
      %v1991 = vadd.f32 0.0, %v1990
      %v1992 = vpop.f32.mrb[0].mxu0
      %1993 = vmatprep.mubr.bf16.mxu0 0
      %1994 = vmatmul.mubr.bf16.gmra.mrb[0].mxu0 %v1836
      %v1995 = vpop.f32.mrb[0].mxu0
      %v1996 = vadd.f32 0.0, %v1995
      %v1997 = vpop.f32.mrb[0].mxu0
      %v1998 = vpop.f32.mrb[0].mxu0
      %v1999 = vadd.f32 0.0, %v1998
      %v2000 = vpop.f32.mrb[0].mxu0
      %2001 = vdwg.mxu0
      %v2002 = vadd.f32 %v1774, %v1876
      %v2003 = vadd.f32 %v1775, %v1879
      %v2004 = vadd.f32 %v1776, %v1884
      %v2005 = vadd.f32 %v1777, %v1887
      %v2006 = vadd.f32 %v1778, %v1892
      %v2007 = vadd.f32 %v1779, %v1895
      %v2008 = vadd.f32 %v1780, %v1900
      %v2009 = vadd.f32 %v1781, %v1903
      %v2010 = vadd.f32 %v1782, %v1908
      %v2011 = vadd.f32 %v1783, %v1911
      %v2012 = vadd.f32 %v1784, %v1916
      %v2013 = vadd.f32 %v1785, %v1919
      %v2014 = vadd.f32 %v1786, %v1924
      %v2015 = vadd.f32 %v1787, %v1927
      %v2016 = vadd.f32 %v1788, %v1932
      %v2017 = vadd.f32 %v1789, %v1935
      %v2018 = vadd.f32 %v1790, %v1940
      %v2019 = vadd.f32 %v1791, %v1943
      %v2020 = vadd.f32 %v1792, %v1948
      %v2021 = vadd.f32 %v1793, %v1951
      %v2022 = vadd.f32 %v1794, %v1956
      %v2023 = vadd.f32 %v1795, %v1959
      %v2024 = vadd.f32 %v1796, %v1964
      %v2025 = vadd.f32 %v1797, %v1967
      %v2026 = vadd.f32 %v1798, %v1972
      %v2027 = vadd.f32 %v1799, %v1975
      %v2028 = vadd.f32 %v1800, %v1980
      %v2029 = vadd.f32 %v1801, %v1983
      %v2030 = vadd.f32 %v1802, %v1988
      %v2031 = vadd.f32 %v1803, %v1991
      %v2032 = vadd.f32 %v1804, %v1996
      %v2033 = vadd.f32 %v1805, %v1999
      %v2035 = vrot.slane %v225, 5
      %v2036 = vrot.slane %v2035, 4
      %v2037 = vrot.slane %v226, 5
      %v2038 = vsel %vm1193, %v2036, %v2037
      %v2039 = vrot.slane %v2037, 4
      %v2040 = vrot.slane %v227, 5
      %v2041 = vsel %vm1193, %v2039, %v2040
      %s2042 = scalar_lea.vmem %s1, 20
      %v2043 = vld [vmem:[%s2042] sm:$0xf]
      %v2044 = vunpack.c.l.b16 %v2038
      %v2045 = vunpack.c.l.b16 %v2041
      %v2046 = vpack.c.b16 %v2045, %v2044
      %v2048 = vsel %vm669, %v2046, 0
      %v2051 = vsel %vm718, %v2043, 0
      %2053 = vmatprep.subr.bf16.mxu0 0
      %2054 = vmatpush1.bf16.msra.mxu0 %v2051
      %2055 = vmatprep.subr.bf16.mxu0 0
      %2056 = vmatpush1.bf16.msra.mxu0 0
      %2057 = vmatprep.subr.bf16.mxu0 0
      %2058 = vmatpush1.bf16.msra.mxu0 0
      %2059 = vmatprep.subr.bf16.mxu0 0
      %2060 = vmatpush1.bf16.msra.mxu0 0
      %2061 = vmatprep.subr.bf16.mxu0 0
      %2062 = vmatpush1.bf16.msra.mxu0 0
      %2063 = vmatprep.subr.bf16.mxu0 0
      %2064 = vmatpush1.bf16.msra.mxu0 0
      %2065 = vmatprep.subr.bf16.mxu0 0
      %2066 = vmatpush1.bf16.msra.mxu0 0
      %2067 = vmatprep.subr.bf16.mxu0 0
      %2068 = vmatpush1.bf16.msra.mxu0 0
      %2069 = vmatprep.subr.bf16.mxu0 0
      %2070 = vmatpush1.bf16.msra.mxu0 0
      %2071 = vmatprep.subr.bf16.mxu0 0
      %2072 = vmatpush1.bf16.msra.mxu0 0
      %2073 = vmatprep.subr.bf16.mxu0 0
      %2074 = vmatpush1.bf16.msra.mxu0 0
      %2075 = vmatprep.subr.bf16.mxu0 0
      %2076 = vmatpush1.bf16.msra.mxu0 0
      %2077 = vmatprep.subr.bf16.mxu0 0
      %2078 = vmatpush1.bf16.msra.mxu0 0
      %2079 = vmatprep.subr.bf16.mxu0 0
      %2080 = vmatpush1.bf16.msra.mxu0 0
      %2081 = vmatprep.subr.bf16.mxu0 0
      %2082 = vmatpush1.bf16.msra.mxu0 0
      %2083 = vmatprep.subr.bf16.mxu0 0
      %2084 = vmatpush1.bf16.msra.mxu0 0
      %2085 = vmatprep.mubr.bf16.mxu0 0
      %2086 = vmatmul.mubr.bf16.gmra.mrb[0].mxu0 %v1360
      %v2087 = vpop.f32.mrb[0].mxu0
      %v2088 = vadd.f32 0.0, %v2087
      %v2089 = vpop.f32.mrb[0].mxu0
      %v2090 = vpop.f32.mrb[0].mxu0
      %v2091 = vadd.f32 0.0, %v2090
      %v2092 = vpop.f32.mrb[0].mxu0
      %2093 = vmatprep.mubr.bf16.mxu0 0
      %2094 = vmatmul.mubr.bf16.gmra.mrb[0].mxu0 %v1363
      %v2095 = vpop.f32.mrb[0].mxu0
      %v2096 = vadd.f32 0.0, %v2095
      %v2097 = vpop.f32.mrb[0].mxu0
      %v2098 = vpop.f32.mrb[0].mxu0
      %v2099 = vadd.f32 0.0, %v2098
      %v2100 = vpop.f32.mrb[0].mxu0
      %2101 = vmatprep.mubr.bf16.mxu0 0
      %2102 = vmatmul.mubr.bf16.gmra.mrb[0].mxu0 %v1366
      %v2103 = vpop.f32.mrb[0].mxu0
      %v2104 = vadd.f32 0.0, %v2103
      %v2105 = vpop.f32.mrb[0].mxu0
      %v2106 = vpop.f32.mrb[0].mxu0
      %v2107 = vadd.f32 0.0, %v2106
      %v2108 = vpop.f32.mrb[0].mxu0
      %2109 = vmatprep.mubr.bf16.mxu0 0
      %2110 = vmatmul.mubr.bf16.gmra.mrb[0].mxu0 %v1369
      %v2111 = vpop.f32.mrb[0].mxu0
      %v2112 = vadd.f32 0.0, %v2111
      %v2113 = vpop.f32.mrb[0].mxu0
      %v2114 = vpop.f32.mrb[0].mxu0
      %v2115 = vadd.f32 0.0, %v2114
      %v2116 = vpop.f32.mrb[0].mxu0
      %2117 = vmatprep.mubr.bf16.mxu0 0
      %2118 = vmatmul.mubr.bf16.gmra.mrb[0].mxu0 %v1372
      %v2119 = vpop.f32.mrb[0].mxu0
      %v2120 = vadd.f32 0.0, %v2119
      %v2121 = vpop.f32.mrb[0].mxu0
      %v2122 = vpop.f32.mrb[0].mxu0
      %v2123 = vadd.f32 0.0, %v2122
      %v2124 = vpop.f32.mrb[0].mxu0
      %2125 = vmatprep.mubr.bf16.mxu0 0
      %2126 = vmatmul.mubr.bf16.gmra.mrb[0].mxu0 %v1375
      %v2127 = vpop.f32.mrb[0].mxu0
      %v2128 = vadd.f32 0.0, %v2127
      %v2129 = vpop.f32.mrb[0].mxu0
      %v2130 = vpop.f32.mrb[0].mxu0
      %v2131 = vadd.f32 0.0, %v2130
      %v2132 = vpop.f32.mrb[0].mxu0
      %2133 = vmatprep.mubr.bf16.mxu0 0
      %2134 = vmatmul.mubr.bf16.gmra.mrb[0].mxu0 %v1378
      %v2135 = vpop.f32.mrb[0].mxu0
      %v2136 = vadd.f32 0.0, %v2135
      %v2137 = vpop.f32.mrb[0].mxu0
      %v2138 = vpop.f32.mrb[0].mxu0
      %v2139 = vadd.f32 0.0, %v2138
      %v2140 = vpop.f32.mrb[0].mxu0
      %2141 = vmatprep.mubr.bf16.mxu0 0
      %2142 = vmatmul.mubr.bf16.gmra.mrb[0].mxu0 %v1381
      %v2143 = vpop.f32.mrb[0].mxu0
      %v2144 = vadd.f32 0.0, %v2143
      %v2145 = vpop.f32.mrb[0].mxu0
      %v2146 = vpop.f32.mrb[0].mxu0
      %v2147 = vadd.f32 0.0, %v2146
      %v2148 = vpop.f32.mrb[0].mxu0
      %2149 = vmatprep.mubr.bf16.mxu0 0
      %2150 = vmatmul.mubr.bf16.gmra.mrb[0].mxu0 %v1384
      %v2151 = vpop.f32.mrb[0].mxu0
      %v2152 = vadd.f32 0.0, %v2151
      %v2153 = vpop.f32.mrb[0].mxu0
      %v2154 = vpop.f32.mrb[0].mxu0
      %v2155 = vadd.f32 0.0, %v2154
      %v2156 = vpop.f32.mrb[0].mxu0
      %2157 = vmatprep.mubr.bf16.mxu0 0
      %2158 = vmatmul.mubr.bf16.gmra.mrb[0].mxu0 %v1387
      %v2159 = vpop.f32.mrb[0].mxu0
      %v2160 = vadd.f32 0.0, %v2159
      %v2161 = vpop.f32.mrb[0].mxu0
      %v2162 = vpop.f32.mrb[0].mxu0
      %v2163 = vadd.f32 0.0, %v2162
      %v2164 = vpop.f32.mrb[0].mxu0
      %2165 = vmatprep.mubr.bf16.mxu0 0
      %2166 = vmatmul.mubr.bf16.gmra.mrb[0].mxu0 %v1390
      %v2167 = vpop.f32.mrb[0].mxu0
      %v2168 = vadd.f32 0.0, %v2167
      %v2169 = vpop.f32.mrb[0].mxu0
      %v2170 = vpop.f32.mrb[0].mxu0
      %v2171 = vadd.f32 0.0, %v2170
      %v2172 = vpop.f32.mrb[0].mxu0
      %2173 = vmatprep.mubr.bf16.mxu0 0
      %2174 = vmatmul.mubr.bf16.gmra.mrb[0].mxu0 %v1393
      %v2175 = vpop.f32.mrb[0].mxu0
      %v2176 = vadd.f32 0.0, %v2175
      %v2177 = vpop.f32.mrb[0].mxu0
      %v2178 = vpop.f32.mrb[0].mxu0
      %v2179 = vadd.f32 0.0, %v2178
      %v2180 = vpop.f32.mrb[0].mxu0
      %2181 = vmatprep.mubr.bf16.mxu0 0
      %2182 = vmatmul.mubr.bf16.gmra.mrb[0].mxu0 %v1396
      %v2183 = vpop.f32.mrb[0].mxu0
      %v2184 = vadd.f32 0.0, %v2183
      %v2185 = vpop.f32.mrb[0].mxu0
      %v2186 = vpop.f32.mrb[0].mxu0
      %v2187 = vadd.f32 0.0, %v2186
      %v2188 = vpop.f32.mrb[0].mxu0
      %2189 = vmatprep.mubr.bf16.mxu0 0
      %2190 = vmatmul.mubr.bf16.gmra.mrb[0].mxu0 %v1399
      %v2191 = vpop.f32.mrb[0].mxu0
      %v2192 = vadd.f32 0.0, %v2191
      %v2193 = vpop.f32.mrb[0].mxu0
      %v2194 = vpop.f32.mrb[0].mxu0
      %v2195 = vadd.f32 0.0, %v2194
      %v2196 = vpop.f32.mrb[0].mxu0
      %2197 = vmatprep.mubr.bf16.mxu0 0
      %2198 = vmatmul.mubr.bf16.gmra.mrb[0].mxu0 %v1402
      %v2199 = vpop.f32.mrb[0].mxu0
      %v2200 = vadd.f32 0.0, %v2199
      %v2201 = vpop.f32.mrb[0].mxu0
      %v2202 = vpop.f32.mrb[0].mxu0
      %v2203 = vadd.f32 0.0, %v2202
      %v2204 = vpop.f32.mrb[0].mxu0
      %2205 = vmatprep.mubr.bf16.mxu0 0
      %2206 = vmatmul.mubr.bf16.gmra.mrb[0].mxu0 %v2048
      %v2207 = vpop.f32.mrb[0].mxu0
      %v2208 = vadd.f32 0.0, %v2207
      %v2209 = vpop.f32.mrb[0].mxu0
      %v2210 = vpop.f32.mrb[0].mxu0
      %v2211 = vadd.f32 0.0, %v2210
      %v2212 = vpop.f32.mrb[0].mxu0
      %2213 = vdwg.mxu0
      %v2214 = vadd.f32 %v2002, %v2088
      %v2215 = vadd.f32 %v2003, %v2091
      %v2216 = vadd.f32 %v2004, %v2096
      %v2217 = vadd.f32 %v2005, %v2099
      %v2218 = vadd.f32 %v2006, %v2104
      %v2219 = vadd.f32 %v2007, %v2107
      %v2220 = vadd.f32 %v2008, %v2112
      %v2221 = vadd.f32 %v2009, %v2115
      %v2222 = vadd.f32 %v2010, %v2120
      %v2223 = vadd.f32 %v2011, %v2123
      %v2224 = vadd.f32 %v2012, %v2128
      %v2225 = vadd.f32 %v2013, %v2131
      %v2226 = vadd.f32 %v2014, %v2136
      %v2227 = vadd.f32 %v2015, %v2139
      %v2228 = vadd.f32 %v2016, %v2144
      %v2229 = vadd.f32 %v2017, %v2147
      %v2230 = vadd.f32 %v2018, %v2152
      %v2231 = vadd.f32 %v2019, %v2155
      %v2232 = vadd.f32 %v2020, %v2160
      %v2233 = vadd.f32 %v2021, %v2163
      %v2234 = vadd.f32 %v2022, %v2168
      %v2235 = vadd.f32 %v2023, %v2171
      %v2236 = vadd.f32 %v2024, %v2176
      %v2237 = vadd.f32 %v2025, %v2179
      %v2238 = vadd.f32 %v2026, %v2184
      %v2239 = vadd.f32 %v2027, %v2187
      %v2240 = vadd.f32 %v2028, %v2192
      %v2241 = vadd.f32 %v2029, %v2195
      %v2242 = vadd.f32 %v2030, %v2200
      %v2243 = vadd.f32 %v2031, %v2203
      %v2244 = vadd.f32 %v2032, %v2208
      %v2245 = vadd.f32 %v2033, %v2211
      %s2246 = scalar_lea.vmem %s1, 24
      %v2247 = vld [vmem:[%s2246] sm:$0xf]
      %v2250 = vunpack.c.l.b16 %v228
      %v2251 = vunpack.c.l.b16 %v229
      %v2252 = vpack.c.b16 %v2251, %v2250
      %v2254 = vsel %vm669, %v2252, 0
      %v2257 = vsel %vm718, %v2247, 0
      %2259 = vmatprep.subr.bf16.mxu0 0
      %2260 = vmatpush1.bf16.msra.mxu0 %v2257
      %2261 = vmatprep.subr.bf16.mxu0 0
      %2262 = vmatpush1.bf16.msra.mxu0 0
      %2263 = vmatprep.subr.bf16.mxu0 0
      %2264 = vmatpush1.bf16.msra.mxu0 0
      %2265 = vmatprep.subr.bf16.mxu0 0
      %2266 = vmatpush1.bf16.msra.mxu0 0
      %2267 = vmatprep.subr.bf16.mxu0 0
      %2268 = vmatpush1.bf16.msra.mxu0 0
      %2269 = vmatprep.subr.bf16.mxu0 0
      %2270 = vmatpush1.bf16.msra.mxu0 0
      %2271 = vmatprep.subr.bf16.mxu0 0
      %2272 = vmatpush1.bf16.msra.mxu0 0
      %2273 = vmatprep.subr.bf16.mxu0 0
      %2274 = vmatpush1.bf16.msra.mxu0 0
      %2275 = vmatprep.subr.bf16.mxu0 0
      %2276 = vmatpush1.bf16.msra.mxu0 0
      %2277 = vmatprep.subr.bf16.mxu0 0
      %2278 = vmatpush1.bf16.msra.mxu0 0
      %2279 = vmatprep.subr.bf16.mxu0 0
      %2280 = vmatpush1.bf16.msra.mxu0 0
      %2281 = vmatprep.subr.bf16.mxu0 0
      %2282 = vmatpush1.bf16.msra.mxu0 0
      %2283 = vmatprep.subr.bf16.mxu0 0
      %2284 = vmatpush1.bf16.msra.mxu0 0
      %2285 = vmatprep.subr.bf16.mxu0 0
      %2286 = vmatpush1.bf16.msra.mxu0 0
      %2287 = vmatprep.subr.bf16.mxu0 0
      %2288 = vmatpush1.bf16.msra.mxu0 0
      %2289 = vmatprep.subr.bf16.mxu0 0
      %2290 = vmatpush1.bf16.msra.mxu0 0
      %2291 = vmatprep.mubr.bf16.mxu0 0
      %2292 = vmatmul.mubr.bf16.gmra.mrb[0].mxu0 %v970
      %v2293 = vpop.f32.mrb[0].mxu0
      %v2294 = vadd.f32 0.0, %v2293
      %v2295 = vpop.f32.mrb[0].mxu0
      %v2296 = vpop.f32.mrb[0].mxu0
      %v2297 = vadd.f32 0.0, %v2296
      %v2298 = vpop.f32.mrb[0].mxu0
      %2299 = vmatprep.mubr.bf16.mxu0 0
      %2300 = vmatmul.mubr.bf16.gmra.mrb[0].mxu0 %v973
      %v2301 = vpop.f32.mrb[0].mxu0
      %v2302 = vadd.f32 0.0, %v2301
      %v2303 = vpop.f32.mrb[0].mxu0
      %v2304 = vpop.f32.mrb[0].mxu0
      %v2305 = vadd.f32 0.0, %v2304
      %v2306 = vpop.f32.mrb[0].mxu0
      %2307 = vmatprep.mubr.bf16.mxu0 0
      %2308 = vmatmul.mubr.bf16.gmra.mrb[0].mxu0 %v976
      %v2309 = vpop.f32.mrb[0].mxu0
      %v2310 = vadd.f32 0.0, %v2309
      %v2311 = vpop.f32.mrb[0].mxu0
      %v2312 = vpop.f32.mrb[0].mxu0
      %v2313 = vadd.f32 0.0, %v2312
      %v2314 = vpop.f32.mrb[0].mxu0
      %2315 = vmatprep.mubr.bf16.mxu0 0
      %2316 = vmatmul.mubr.bf16.gmra.mrb[0].mxu0 %v979
      %v2317 = vpop.f32.mrb[0].mxu0
      %v2318 = vadd.f32 0.0, %v2317
      %v2319 = vpop.f32.mrb[0].mxu0
      %v2320 = vpop.f32.mrb[0].mxu0
      %v2321 = vadd.f32 0.0, %v2320
      %v2322 = vpop.f32.mrb[0].mxu0
      %2323 = vmatprep.mubr.bf16.mxu0 0
      %2324 = vmatmul.mubr.bf16.gmra.mrb[0].mxu0 %v982
      %v2325 = vpop.f32.mrb[0].mxu0
      %v2326 = vadd.f32 0.0, %v2325
      %v2327 = vpop.f32.mrb[0].mxu0
      %v2328 = vpop.f32.mrb[0].mxu0
      %v2329 = vadd.f32 0.0, %v2328
      %v2330 = vpop.f32.mrb[0].mxu0
      %2331 = vmatprep.mubr.bf16.mxu0 0
      %2332 = vmatmul.mubr.bf16.gmra.mrb[0].mxu0 %v985
      %v2333 = vpop.f32.mrb[0].mxu0
      %v2334 = vadd.f32 0.0, %v2333
      %v2335 = vpop.f32.mrb[0].mxu0
      %v2336 = vpop.f32.mrb[0].mxu0
      %v2337 = vadd.f32 0.0, %v2336
      %v2338 = vpop.f32.mrb[0].mxu0
      %2339 = vmatprep.mubr.bf16.mxu0 0
      %2340 = vmatmul.mubr.bf16.gmra.mrb[0].mxu0 %v988
      %v2341 = vpop.f32.mrb[0].mxu0
      %v2342 = vadd.f32 0.0, %v2341
      %v2343 = vpop.f32.mrb[0].mxu0
      %v2344 = vpop.f32.mrb[0].mxu0
      %v2345 = vadd.f32 0.0, %v2344
      %v2346 = vpop.f32.mrb[0].mxu0
      %2347 = vmatprep.mubr.bf16.mxu0 0
      %2348 = vmatmul.mubr.bf16.gmra.mrb[0].mxu0 %v991
      %v2349 = vpop.f32.mrb[0].mxu0
      %v2350 = vadd.f32 0.0, %v2349
      %v2351 = vpop.f32.mrb[0].mxu0
      %v2352 = vpop.f32.mrb[0].mxu0
      %v2353 = vadd.f32 0.0, %v2352
      %v2354 = vpop.f32.mrb[0].mxu0
      %2355 = vmatprep.mubr.bf16.mxu0 0
      %2356 = vmatmul.mubr.bf16.gmra.mrb[0].mxu0 %v994
      %v2357 = vpop.f32.mrb[0].mxu0
      %v2358 = vadd.f32 0.0, %v2357
      %v2359 = vpop.f32.mrb[0].mxu0
      %v2360 = vpop.f32.mrb[0].mxu0
      %v2361 = vadd.f32 0.0, %v2360
      %v2362 = vpop.f32.mrb[0].mxu0
      %2363 = vmatprep.mubr.bf16.mxu0 0
      %2364 = vmatmul.mubr.bf16.gmra.mrb[0].mxu0 %v997
      %v2365 = vpop.f32.mrb[0].mxu0
      %v2366 = vadd.f32 0.0, %v2365
      %v2367 = vpop.f32.mrb[0].mxu0
      %v2368 = vpop.f32.mrb[0].mxu0
      %v2369 = vadd.f32 0.0, %v2368
      %v2370 = vpop.f32.mrb[0].mxu0
      %2371 = vmatprep.mubr.bf16.mxu0 0
      %2372 = vmatmul.mubr.bf16.gmra.mrb[0].mxu0 %v1000
      %v2373 = vpop.f32.mrb[0].mxu0
      %v2374 = vadd.f32 0.0, %v2373
      %v2375 = vpop.f32.mrb[0].mxu0
      %v2376 = vpop.f32.mrb[0].mxu0
      %v2377 = vadd.f32 0.0, %v2376
      %v2378 = vpop.f32.mrb[0].mxu0
      %2379 = vmatprep.mubr.bf16.mxu0 0
      %2380 = vmatmul.mubr.bf16.gmra.mrb[0].mxu0 %v1003
      %v2381 = vpop.f32.mrb[0].mxu0
      %v2382 = vadd.f32 0.0, %v2381
      %v2383 = vpop.f32.mrb[0].mxu0
      %v2384 = vpop.f32.mrb[0].mxu0
      %v2385 = vadd.f32 0.0, %v2384
      %v2386 = vpop.f32.mrb[0].mxu0
      %2387 = vmatprep.mubr.bf16.mxu0 0
      %2388 = vmatmul.mubr.bf16.gmra.mrb[0].mxu0 %v1006
      %v2389 = vpop.f32.mrb[0].mxu0
      %v2390 = vadd.f32 0.0, %v2389
      %v2391 = vpop.f32.mrb[0].mxu0
      %v2392 = vpop.f32.mrb[0].mxu0
      %v2393 = vadd.f32 0.0, %v2392
      %v2394 = vpop.f32.mrb[0].mxu0
      %2395 = vmatprep.mubr.bf16.mxu0 0
      %2396 = vmatmul.mubr.bf16.gmra.mrb[0].mxu0 %v1009
      %v2397 = vpop.f32.mrb[0].mxu0
      %v2398 = vadd.f32 0.0, %v2397
      %v2399 = vpop.f32.mrb[0].mxu0
      %v2400 = vpop.f32.mrb[0].mxu0
      %v2401 = vadd.f32 0.0, %v2400
      %v2402 = vpop.f32.mrb[0].mxu0
      %2403 = vmatprep.mubr.bf16.mxu0 0
      %2404 = vmatmul.mubr.bf16.gmra.mrb[0].mxu0 %v1608
      %v2405 = vpop.f32.mrb[0].mxu0
      %v2406 = vadd.f32 0.0, %v2405
      %v2407 = vpop.f32.mrb[0].mxu0
      %v2408 = vpop.f32.mrb[0].mxu0
      %v2409 = vadd.f32 0.0, %v2408
      %v2410 = vpop.f32.mrb[0].mxu0
      %2411 = vmatprep.mubr.bf16.mxu0 0
      %2412 = vmatmul.mubr.bf16.gmra.mrb[0].mxu0 %v2254
      %v2413 = vpop.f32.mrb[0].mxu0
      %v2414 = vadd.f32 0.0, %v2413
      %v2415 = vpop.f32.mrb[0].mxu0
      %v2416 = vpop.f32.mrb[0].mxu0
      %v2417 = vadd.f32 0.0, %v2416
      %v2418 = vpop.f32.mrb[0].mxu0
      %2419 = vdwg.mxu0
      %v2420 = vadd.f32 %v2214, %v2294
      %v2421 = vadd.f32 %v2215, %v2297
      %v2422 = vadd.f32 %v2216, %v2302
      %v2423 = vadd.f32 %v2217, %v2305
      %v2424 = vadd.f32 %v2218, %v2310
      %v2425 = vadd.f32 %v2219, %v2313
      %v2426 = vadd.f32 %v2220, %v2318
      %v2427 = vadd.f32 %v2221, %v2321
      %v2428 = vadd.f32 %v2222, %v2326
      %v2429 = vadd.f32 %v2223, %v2329
      %v2430 = vadd.f32 %v2224, %v2334
      %v2431 = vadd.f32 %v2225, %v2337
      %v2432 = vadd.f32 %v2226, %v2342
      %v2433 = vadd.f32 %v2227, %v2345
      %v2434 = vadd.f32 %v2228, %v2350
      %v2435 = vadd.f32 %v2229, %v2353
      %v2436 = vadd.f32 %v2230, %v2358
      %v2437 = vadd.f32 %v2231, %v2361
      %v2438 = vadd.f32 %v2232, %v2366
      %v2439 = vadd.f32 %v2233, %v2369
      %v2440 = vadd.f32 %v2234, %v2374
      %v2441 = vadd.f32 %v2235, %v2377
      %v2442 = vadd.f32 %v2236, %v2382
      %v2443 = vadd.f32 %v2237, %v2385
      %v2444 = vadd.f32 %v2238, %v2390
      %v2445 = vadd.f32 %v2239, %v2393
      %v2446 = vadd.f32 %v2240, %v2398
      %v2447 = vadd.f32 %v2241, %v2401
      %v2448 = vadd.f32 %v2242, %v2406
      %v2449 = vadd.f32 %v2243, %v2409
      %v2450 = vadd.f32 %v2244, %v2414
      %v2451 = vadd.f32 %v2245, %v2417
      %v2453 = vshrl.u32 %v228, 16
      %v2455 = vrot.slane %v2453, 4
      %v2456 = vshll.u32 %v228, 16
      %v2458 = vrot.slane %v2456, 5
      %v2459 = vor.u32 %v2455, %v2458
      %v2460 = vrot.slane %v2459, 4
      %v2462 = vshll.u32 %v229, 16
      %v2464 = vrot.slane %v2462, 5
      %v2465 = vsel %vm234, %v2460, %v2464
      %v2466 = vshrl.u32 %v229, 16
      %v2468 = vrot.slane %v2466, 4
      %v2469 = vor.u32 %v2468, %v2464
      %v2470 = vrot.slane %v2469, 4
      %v2472 = vshll.u32 %v230, 16
      %v2474 = vrot.slane %v2472, 5
      %v2475 = vsel %vm234, %v2470, %v2474
      %s2476 = scalar_lea.vmem %s1, 28
      %v2477 = vld [vmem:[%s2476] sm:$0xf]
      %v2478 = vunpack.c.l.b16 %v2465
      %v2479 = vunpack.c.l.b16 %v2475
      %v2480 = vpack.c.b16 %v2479, %v2478
      %v2482 = vsel %vm669, %v2480, 0
      %v2485 = vsel %vm718, %v2477, 0
      %2487 = vmatprep.subr.bf16.mxu0 0
      %2488 = vmatpush1.bf16.msra.mxu0 %v2485
      %2489 = vmatprep.subr.bf16.mxu0 0
      %2490 = vmatpush1.bf16.msra.mxu0 0
      %2491 = vmatprep.subr.bf16.mxu0 0
      %2492 = vmatpush1.bf16.msra.mxu0 0
      %2493 = vmatprep.subr.bf16.mxu0 0
      %2494 = vmatpush1.bf16.msra.mxu0 0
      %2495 = vmatprep.subr.bf16.mxu0 0
      %2496 = vmatpush1.bf16.msra.mxu0 0
      %2497 = vmatprep.subr.bf16.mxu0 0
      %2498 = vmatpush1.bf16.msra.mxu0 0
      %2499 = vmatprep.subr.bf16.mxu0 0
      %2500 = vmatpush1.bf16.msra.mxu0 0
      %2501 = vmatprep.subr.bf16.mxu0 0
      %2502 = vmatpush1.bf16.msra.mxu0 0
      %2503 = vmatprep.subr.bf16.mxu0 0
      %2504 = vmatpush1.bf16.msra.mxu0 0
      %2505 = vmatprep.subr.bf16.mxu0 0
      %2506 = vmatpush1.bf16.msra.mxu0 0
      %2507 = vmatprep.subr.bf16.mxu0 0
      %2508 = vmatpush1.bf16.msra.mxu0 0
      %2509 = vmatprep.subr.bf16.mxu0 0
      %2510 = vmatpush1.bf16.msra.mxu0 0
      %2511 = vmatprep.subr.bf16.mxu0 0
      %2512 = vmatpush1.bf16.msra.mxu0 0
      %2513 = vmatprep.subr.bf16.mxu0 0
      %2514 = vmatpush1.bf16.msra.mxu0 0
      %2515 = vmatprep.subr.bf16.mxu0 0
      %2516 = vmatpush1.bf16.msra.mxu0 0
      %2517 = vmatprep.subr.bf16.mxu0 0
      %2518 = vmatpush1.bf16.msra.mxu0 0
      %2519 = vmatprep.mubr.bf16.mxu0 0
      %2520 = vmatmul.mubr.bf16.gmra.mrb[0].mxu0 %v677
      %v2521 = vpop.f32.mrb[0].mxu0
      %v2522 = vadd.f32 0.0, %v2521
      %v2523 = vpop.f32.mrb[0].mxu0
      %v2524 = vpop.f32.mrb[0].mxu0
      %v2525 = vadd.f32 0.0, %v2524
      %v2526 = vpop.f32.mrb[0].mxu0
      %2527 = vmatprep.mubr.bf16.mxu0 0
      %2528 = vmatmul.mubr.bf16.gmra.mrb[0].mxu0 %v680
      %v2529 = vpop.f32.mrb[0].mxu0
      %v2530 = vadd.f32 0.0, %v2529
      %v2531 = vpop.f32.mrb[0].mxu0
      %v2532 = vpop.f32.mrb[0].mxu0
      %v2533 = vadd.f32 0.0, %v2532
      %v2534 = vpop.f32.mrb[0].mxu0
      %2535 = vmatprep.mubr.bf16.mxu0 0
      %2536 = vmatmul.mubr.bf16.gmra.mrb[0].mxu0 %v683
      %v2537 = vpop.f32.mrb[0].mxu0
      %v2538 = vadd.f32 0.0, %v2537
      %v2539 = vpop.f32.mrb[0].mxu0
      %v2540 = vpop.f32.mrb[0].mxu0
      %v2541 = vadd.f32 0.0, %v2540
      %v2542 = vpop.f32.mrb[0].mxu0
      %2543 = vmatprep.mubr.bf16.mxu0 0
      %2544 = vmatmul.mubr.bf16.gmra.mrb[0].mxu0 %v686
      %v2545 = vpop.f32.mrb[0].mxu0
      %v2546 = vadd.f32 0.0, %v2545
      %v2547 = vpop.f32.mrb[0].mxu0
      %v2548 = vpop.f32.mrb[0].mxu0
      %v2549 = vadd.f32 0.0, %v2548
      %v2550 = vpop.f32.mrb[0].mxu0
      %2551 = vmatprep.mubr.bf16.mxu0 0
      %2552 = vmatmul.mubr.bf16.gmra.mrb[0].mxu0 %v689
      %v2553 = vpop.f32.mrb[0].mxu0
      %v2554 = vadd.f32 0.0, %v2553
      %v2555 = vpop.f32.mrb[0].mxu0
      %v2556 = vpop.f32.mrb[0].mxu0
      %v2557 = vadd.f32 0.0, %v2556
      %v2558 = vpop.f32.mrb[0].mxu0
      %2559 = vmatprep.mubr.bf16.mxu0 0
      %2560 = vmatmul.mubr.bf16.gmra.mrb[0].mxu0 %v692
      %v2561 = vpop.f32.mrb[0].mxu0
      %v2562 = vadd.f32 0.0, %v2561
      %v2563 = vpop.f32.mrb[0].mxu0
      %v2564 = vpop.f32.mrb[0].mxu0
      %v2565 = vadd.f32 0.0, %v2564
      %v2566 = vpop.f32.mrb[0].mxu0
      %2567 = vmatprep.mubr.bf16.mxu0 0
      %2568 = vmatmul.mubr.bf16.gmra.mrb[0].mxu0 %v695
      %v2569 = vpop.f32.mrb[0].mxu0
      %v2570 = vadd.f32 0.0, %v2569
      %v2571 = vpop.f32.mrb[0].mxu0
      %v2572 = vpop.f32.mrb[0].mxu0
      %v2573 = vadd.f32 0.0, %v2572
      %v2574 = vpop.f32.mrb[0].mxu0
      %2575 = vmatprep.mubr.bf16.mxu0 0
      %2576 = vmatmul.mubr.bf16.gmra.mrb[0].mxu0 %v698
      %v2577 = vpop.f32.mrb[0].mxu0
      %v2578 = vadd.f32 0.0, %v2577
      %v2579 = vpop.f32.mrb[0].mxu0
      %v2580 = vpop.f32.mrb[0].mxu0
      %v2581 = vadd.f32 0.0, %v2580
      %v2582 = vpop.f32.mrb[0].mxu0
      %2583 = vmatprep.mubr.bf16.mxu0 0
      %2584 = vmatmul.mubr.bf16.gmra.mrb[0].mxu0 %v701
      %v2585 = vpop.f32.mrb[0].mxu0
      %v2586 = vadd.f32 0.0, %v2585
      %v2587 = vpop.f32.mrb[0].mxu0
      %v2588 = vpop.f32.mrb[0].mxu0
      %v2589 = vadd.f32 0.0, %v2588
      %v2590 = vpop.f32.mrb[0].mxu0
      %2591 = vmatprep.mubr.bf16.mxu0 0
      %2592 = vmatmul.mubr.bf16.gmra.mrb[0].mxu0 %v704
      %v2593 = vpop.f32.mrb[0].mxu0
      %v2594 = vadd.f32 0.0, %v2593
      %v2595 = vpop.f32.mrb[0].mxu0
      %v2596 = vpop.f32.mrb[0].mxu0
      %v2597 = vadd.f32 0.0, %v2596
      %v2598 = vpop.f32.mrb[0].mxu0
      %2599 = vmatprep.mubr.bf16.mxu0 0
      %2600 = vmatmul.mubr.bf16.gmra.mrb[0].mxu0 %v707
      %v2601 = vpop.f32.mrb[0].mxu0
      %v2602 = vadd.f32 0.0, %v2601
      %v2603 = vpop.f32.mrb[0].mxu0
      %v2604 = vpop.f32.mrb[0].mxu0
      %v2605 = vadd.f32 0.0, %v2604
      %v2606 = vpop.f32.mrb[0].mxu0
      %2607 = vmatprep.mubr.bf16.mxu0 0
      %2608 = vmatmul.mubr.bf16.gmra.mrb[0].mxu0 %v710
      %v2609 = vpop.f32.mrb[0].mxu0
      %v2610 = vadd.f32 0.0, %v2609
      %v2611 = vpop.f32.mrb[0].mxu0
      %v2612 = vpop.f32.mrb[0].mxu0
      %v2613 = vadd.f32 0.0, %v2612
      %v2614 = vpop.f32.mrb[0].mxu0
      %2615 = vmatprep.mubr.bf16.mxu0 0
      %2616 = vmatmul.mubr.bf16.gmra.mrb[0].mxu0 %v713
      %v2617 = vpop.f32.mrb[0].mxu0
      %v2618 = vadd.f32 0.0, %v2617
      %v2619 = vpop.f32.mrb[0].mxu0
      %v2620 = vpop.f32.mrb[0].mxu0
      %v2621 = vadd.f32 0.0, %v2620
      %v2622 = vpop.f32.mrb[0].mxu0
      %2623 = vmatprep.mubr.bf16.mxu0 0
      %2624 = vmatmul.mubr.bf16.gmra.mrb[0].mxu0 %v716
      %v2625 = vpop.f32.mrb[0].mxu0
      %v2626 = vadd.f32 0.0, %v2625
      %v2627 = vpop.f32.mrb[0].mxu0
      %v2628 = vpop.f32.mrb[0].mxu0
      %v2629 = vadd.f32 0.0, %v2628
      %v2630 = vpop.f32.mrb[0].mxu0
      %2631 = vmatprep.mubr.bf16.mxu0 0
      %2632 = vmatmul.mubr.bf16.gmra.mrb[0].mxu0 %v1836
      %v2633 = vpop.f32.mrb[0].mxu0
      %v2634 = vadd.f32 0.0, %v2633
      %v2635 = vpop.f32.mrb[0].mxu0
      %v2636 = vpop.f32.mrb[0].mxu0
      %v2637 = vadd.f32 0.0, %v2636
      %v2638 = vpop.f32.mrb[0].mxu0
      %2639 = vmatprep.mubr.bf16.mxu0 0
      %2640 = vmatmul.mubr.bf16.gmra.mrb[0].mxu0 %v2482
      %v2641 = vpop.f32.mrb[0].mxu0
      %v2642 = vadd.f32 0.0, %v2641
      %v2643 = vpop.f32.mrb[0].mxu0
      %v2644 = vpop.f32.mrb[0].mxu0
      %v2645 = vadd.f32 0.0, %v2644
      %v2646 = vpop.f32.mrb[0].mxu0
      %2647 = vdwg.mxu0
      %v2648 = vadd.f32 %v2420, %v2522
      %v2649 = vadd.f32 %v2421, %v2525
      %v2650 = vadd.f32 %v2422, %v2530
      %v2651 = vadd.f32 %v2423, %v2533
      %v2652 = vadd.f32 %v2424, %v2538
      %v2653 = vadd.f32 %v2425, %v2541
      %v2654 = vadd.f32 %v2426, %v2546
      %v2655 = vadd.f32 %v2427, %v2549
      %v2656 = vadd.f32 %v2428, %v2554
      %v2657 = vadd.f32 %v2429, %v2557
      %v2658 = vadd.f32 %v2430, %v2562
      %v2659 = vadd.f32 %v2431, %v2565
      %v2660 = vadd.f32 %v2432, %v2570
      %v2661 = vadd.f32 %v2433, %v2573
      %v2662 = vadd.f32 %v2434, %v2578
      %v2663 = vadd.f32 %v2435, %v2581
      %v2664 = vadd.f32 %v2436, %v2586
      %v2665 = vadd.f32 %v2437, %v2589
      %v2666 = vadd.f32 %v2438, %v2594
      %v2667 = vadd.f32 %v2439, %v2597
      %v2668 = vadd.f32 %v2440, %v2602
      %v2669 = vadd.f32 %v2441, %v2605
      %v2670 = vadd.f32 %v2442, %v2610
      %v2671 = vadd.f32 %v2443, %v2613
      %v2672 = vadd.f32 %v2444, %v2618
      %v2673 = vadd.f32 %v2445, %v2621
      %v2674 = vadd.f32 %v2446, %v2626
      %v2675 = vadd.f32 %v2447, %v2629
      %v2676 = vadd.f32 %v2448, %v2634
      %v2677 = vadd.f32 %v2449, %v2637
      %v2678 = vadd.f32 %v2450, %v2642
      %v2679 = vadd.f32 %v2451, %v2645
      %v2681 = vrot.slane %v228, 5
      %v2682 = vrot.slane %v2681, 4
      %v2683 = vrot.slane %v229, 5
      %v2684 = vsel %vm1193, %v2682, %v2683
      %v2685 = vrot.slane %v2683, 4
      %v2686 = vrot.slane %v230, 5
      %v2687 = vsel %vm1193, %v2685, %v2686
      %s2688 = scalar_lea.vmem %s1, 32
      %v2689 = vld [vmem:[%s2688] sm:$0xf]
      %v2690 = vunpack.c.l.b16 %v2684
      %v2691 = vunpack.c.l.b16 %v2687
      %v2692 = vpack.c.b16 %v2691, %v2690
      %v2694 = vsel %vm669, %v2692, 0
      %v2697 = vsel %vm718, %v2689, 0
      %2699 = vmatprep.subr.bf16.mxu0 0
      %2700 = vmatpush1.bf16.msra.mxu0 %v2697
      %2701 = vmatprep.subr.bf16.mxu0 0
      %2702 = vmatpush1.bf16.msra.mxu0 0
      %2703 = vmatprep.subr.bf16.mxu0 0
      %2704 = vmatpush1.bf16.msra.mxu0 0
      %2705 = vmatprep.subr.bf16.mxu0 0
      %2706 = vmatpush1.bf16.msra.mxu0 0
      %2707 = vmatprep.subr.bf16.mxu0 0
      %2708 = vmatpush1.bf16.msra.mxu0 0
      %2709 = vmatprep.subr.bf16.mxu0 0
      %2710 = vmatpush1.bf16.msra.mxu0 0
      %2711 = vmatprep.subr.bf16.mxu0 0
      %2712 = vmatpush1.bf16.msra.mxu0 0
      %2713 = vmatprep.subr.bf16.mxu0 0
      %2714 = vmatpush1.bf16.msra.mxu0 0
      %2715 = vmatprep.subr.bf16.mxu0 0
      %2716 = vmatpush1.bf16.msra.mxu0 0
      %2717 = vmatprep.subr.bf16.mxu0 0
      %2718 = vmatpush1.bf16.msra.mxu0 0
      %2719 = vmatprep.subr.bf16.mxu0 0
      %2720 = vmatpush1.bf16.msra.mxu0 0
      %2721 = vmatprep.subr.bf16.mxu0 0
      %2722 = vmatpush1.bf16.msra.mxu0 0
      %2723 = vmatprep.subr.bf16.mxu0 0
      %2724 = vmatpush1.bf16.msra.mxu0 0
      %2725 = vmatprep.subr.bf16.mxu0 0
      %2726 = vmatpush1.bf16.msra.mxu0 0
      %2727 = vmatprep.subr.bf16.mxu0 0
      %2728 = vmatpush1.bf16.msra.mxu0 0
      %2729 = vmatprep.subr.bf16.mxu0 0
      %2730 = vmatpush1.bf16.msra.mxu0 0
      %2731 = vmatprep.mubr.bf16.mxu0 0
      %2732 = vmatmul.mubr.bf16.gmra.mrb[0].mxu0 %v1363
      %v2733 = vpop.f32.mrb[0].mxu0
      %v2734 = vadd.f32 0.0, %v2733
      %v2735 = vpop.f32.mrb[0].mxu0
      %v2736 = vpop.f32.mrb[0].mxu0
      %v2737 = vadd.f32 0.0, %v2736
      %v2738 = vpop.f32.mrb[0].mxu0
      %2739 = vmatprep.mubr.bf16.mxu0 0
      %2740 = vmatmul.mubr.bf16.gmra.mrb[0].mxu0 %v1366
      %v2741 = vpop.f32.mrb[0].mxu0
      %v2742 = vadd.f32 0.0, %v2741
      %v2743 = vpop.f32.mrb[0].mxu0
      %v2744 = vpop.f32.mrb[0].mxu0
      %v2745 = vadd.f32 0.0, %v2744
      %v2746 = vpop.f32.mrb[0].mxu0
      %2747 = vmatprep.mubr.bf16.mxu0 0
      %2748 = vmatmul.mubr.bf16.gmra.mrb[0].mxu0 %v1369
      %v2749 = vpop.f32.mrb[0].mxu0
      %v2750 = vadd.f32 0.0, %v2749
      %v2751 = vpop.f32.mrb[0].mxu0
      %v2752 = vpop.f32.mrb[0].mxu0
      %v2753 = vadd.f32 0.0, %v2752
      %v2754 = vpop.f32.mrb[0].mxu0
      %2755 = vmatprep.mubr.bf16.mxu0 0
      %2756 = vmatmul.mubr.bf16.gmra.mrb[0].mxu0 %v1372
      %v2757 = vpop.f32.mrb[0].mxu0
      %v2758 = vadd.f32 0.0, %v2757
      %v2759 = vpop.f32.mrb[0].mxu0
      %v2760 = vpop.f32.mrb[0].mxu0
      %v2761 = vadd.f32 0.0, %v2760
      %v2762 = vpop.f32.mrb[0].mxu0
      %2763 = vmatprep.mubr.bf16.mxu0 0
      %2764 = vmatmul.mubr.bf16.gmra.mrb[0].mxu0 %v1375
      %v2765 = vpop.f32.mrb[0].mxu0
      %v2766 = vadd.f32 0.0, %v2765
      %v2767 = vpop.f32.mrb[0].mxu0
      %v2768 = vpop.f32.mrb[0].mxu0
      %v2769 = vadd.f32 0.0, %v2768
      %v2770 = vpop.f32.mrb[0].mxu0
      %2771 = vmatprep.mubr.bf16.mxu0 0
      %2772 = vmatmul.mubr.bf16.gmra.mrb[0].mxu0 %v1378
      %v2773 = vpop.f32.mrb[0].mxu0
      %v2774 = vadd.f32 0.0, %v2773
      %v2775 = vpop.f32.mrb[0].mxu0
      %v2776 = vpop.f32.mrb[0].mxu0
      %v2777 = vadd.f32 0.0, %v2776
      %v2778 = vpop.f32.mrb[0].mxu0
      %2779 = vmatprep.mubr.bf16.mxu0 0
      %2780 = vmatmul.mubr.bf16.gmra.mrb[0].mxu0 %v1381
      %v2781 = vpop.f32.mrb[0].mxu0
      %v2782 = vadd.f32 0.0, %v2781
      %v2783 = vpop.f32.mrb[0].mxu0
      %v2784 = vpop.f32.mrb[0].mxu0
      %v2785 = vadd.f32 0.0, %v2784
      %v2786 = vpop.f32.mrb[0].mxu0
      %2787 = vmatprep.mubr.bf16.mxu0 0
      %2788 = vmatmul.mubr.bf16.gmra.mrb[0].mxu0 %v1384
      %v2789 = vpop.f32.mrb[0].mxu0
      %v2790 = vadd.f32 0.0, %v2789
      %v2791 = vpop.f32.mrb[0].mxu0
      %v2792 = vpop.f32.mrb[0].mxu0
      %v2793 = vadd.f32 0.0, %v2792
      %v2794 = vpop.f32.mrb[0].mxu0
      %2795 = vmatprep.mubr.bf16.mxu0 0
      %2796 = vmatmul.mubr.bf16.gmra.mrb[0].mxu0 %v1387
      %v2797 = vpop.f32.mrb[0].mxu0
      %v2798 = vadd.f32 0.0, %v2797
      %v2799 = vpop.f32.mrb[0].mxu0
      %v2800 = vpop.f32.mrb[0].mxu0
      %v2801 = vadd.f32 0.0, %v2800
      %v2802 = vpop.f32.mrb[0].mxu0
      %2803 = vmatprep.mubr.bf16.mxu0 0
      %2804 = vmatmul.mubr.bf16.gmra.mrb[0].mxu0 %v1390
      %v2805 = vpop.f32.mrb[0].mxu0
      %v2806 = vadd.f32 0.0, %v2805
      %v2807 = vpop.f32.mrb[0].mxu0
      %v2808 = vpop.f32.mrb[0].mxu0
      %v2809 = vadd.f32 0.0, %v2808
      %v2810 = vpop.f32.mrb[0].mxu0
      %2811 = vmatprep.mubr.bf16.mxu0 0
      %2812 = vmatmul.mubr.bf16.gmra.mrb[0].mxu0 %v1393
      %v2813 = vpop.f32.mrb[0].mxu0
      %v2814 = vadd.f32 0.0, %v2813
      %v2815 = vpop.f32.mrb[0].mxu0
      %v2816 = vpop.f32.mrb[0].mxu0
      %v2817 = vadd.f32 0.0, %v2816
      %v2818 = vpop.f32.mrb[0].mxu0
      %2819 = vmatprep.mubr.bf16.mxu0 0
      %2820 = vmatmul.mubr.bf16.gmra.mrb[0].mxu0 %v1396
      %v2821 = vpop.f32.mrb[0].mxu0
      %v2822 = vadd.f32 0.0, %v2821
      %v2823 = vpop.f32.mrb[0].mxu0
      %v2824 = vpop.f32.mrb[0].mxu0
      %v2825 = vadd.f32 0.0, %v2824
      %v2826 = vpop.f32.mrb[0].mxu0
      %2827 = vmatprep.mubr.bf16.mxu0 0
      %2828 = vmatmul.mubr.bf16.gmra.mrb[0].mxu0 %v1399
      %v2829 = vpop.f32.mrb[0].mxu0
      %v2830 = vadd.f32 0.0, %v2829
      %v2831 = vpop.f32.mrb[0].mxu0
      %v2832 = vpop.f32.mrb[0].mxu0
      %v2833 = vadd.f32 0.0, %v2832
      %v2834 = vpop.f32.mrb[0].mxu0
      %2835 = vmatprep.mubr.bf16.mxu0 0
      %2836 = vmatmul.mubr.bf16.gmra.mrb[0].mxu0 %v1402
      %v2837 = vpop.f32.mrb[0].mxu0
      %v2838 = vadd.f32 0.0, %v2837
      %v2839 = vpop.f32.mrb[0].mxu0
      %v2840 = vpop.f32.mrb[0].mxu0
      %v2841 = vadd.f32 0.0, %v2840
      %v2842 = vpop.f32.mrb[0].mxu0
      %2843 = vmatprep.mubr.bf16.mxu0 0
      %2844 = vmatmul.mubr.bf16.gmra.mrb[0].mxu0 %v2048
      %v2845 = vpop.f32.mrb[0].mxu0
      %v2846 = vadd.f32 0.0, %v2845
      %v2847 = vpop.f32.mrb[0].mxu0
      %v2848 = vpop.f32.mrb[0].mxu0
      %v2849 = vadd.f32 0.0, %v2848
      %v2850 = vpop.f32.mrb[0].mxu0
      %2851 = vmatprep.mubr.bf16.mxu0 0
      %2852 = vmatmul.mubr.bf16.gmra.mrb[0].mxu0 %v2694
      %v2853 = vpop.f32.mrb[0].mxu0
      %v2854 = vadd.f32 0.0, %v2853
      %v2855 = vpop.f32.mrb[0].mxu0
      %v2856 = vpop.f32.mrb[0].mxu0
      %v2857 = vadd.f32 0.0, %v2856
      %v2858 = vpop.f32.mrb[0].mxu0
      %2859 = vdwg.mxu0
      %v2860 = vadd.f32 %v2648, %v2734
      %v2861 = vadd.f32 %v2649, %v2737
      %v2862 = vadd.f32 %v2650, %v2742
      %v2863 = vadd.f32 %v2651, %v2745
      %v2864 = vadd.f32 %v2652, %v2750
      %v2865 = vadd.f32 %v2653, %v2753
      %v2866 = vadd.f32 %v2654, %v2758
      %v2867 = vadd.f32 %v2655, %v2761
      %v2868 = vadd.f32 %v2656, %v2766
      %v2869 = vadd.f32 %v2657, %v2769
      %v2870 = vadd.f32 %v2658, %v2774
      %v2871 = vadd.f32 %v2659, %v2777
      %v2872 = vadd.f32 %v2660, %v2782
      %v2873 = vadd.f32 %v2661, %v2785
      %v2874 = vadd.f32 %v2662, %v2790
      %v2875 = vadd.f32 %v2663, %v2793
      %v2876 = vadd.f32 %v2664, %v2798
      %v2877 = vadd.f32 %v2665, %v2801
      %v2878 = vadd.f32 %v2666, %v2806
      %v2879 = vadd.f32 %v2667, %v2809
      %v2880 = vadd.f32 %v2668, %v2814
      %v2881 = vadd.f32 %v2669, %v2817
      %v2882 = vadd.f32 %v2670, %v2822
      %v2883 = vadd.f32 %v2671, %v2825
      %v2884 = vadd.f32 %v2672, %v2830
      %v2885 = vadd.f32 %v2673, %v2833
      %v2886 = vadd.f32 %v2674, %v2838
      %v2887 = vadd.f32 %v2675, %v2841
      %v2888 = vadd.f32 %v2676, %v2846
      %v2889 = vadd.f32 %v2677, %v2849
      %v2890 = vadd.f32 %v2678, %v2854
      %v2891 = vadd.f32 %v2679, %v2857
      %v2892 = vadd.f32 %v2860, %v2861
      %v2893 = vadd.f32 %v2892, %v2862
      %v2894 = vadd.f32 %v2893, %v2863
      %v2895 = vadd.f32 %v2894, %v2864
      %v2896 = vadd.f32 %v2895, %v2865
      %v2897 = vadd.f32 %v2896, %v2866
      %v2898 = vadd.f32 %v2897, %v2867
      %v2899 = vadd.f32 %v2898, %v2868
      %v2900 = vadd.f32 %v2899, %v2869
      %v2901 = vadd.f32 %v2900, %v2870
      %v2902 = vadd.f32 %v2901, %v2871
      %v2903 = vadd.f32 %v2902, %v2872
      %v2904 = vadd.f32 %v2903, %v2873
      %v2905 = vadd.f32 %v2904, %v2874
      %v2906 = vadd.f32 %v2905, %v2875
      %v2907 = vadd.f32 %v2906, %v2876
      %v2908 = vadd.f32 %v2907, %v2877
      %v2909 = vadd.f32 %v2908, %v2878
      %v2910 = vadd.f32 %v2909, %v2879
      %v2911 = vadd.f32 %v2910, %v2880
      %v2912 = vadd.f32 %v2911, %v2881
      %v2913 = vadd.f32 %v2912, %v2882
      %v2914 = vadd.f32 %v2913, %v2883
      %v2915 = vadd.f32 %v2914, %v2884
      %v2916 = vadd.f32 %v2915, %v2885
      %v2917 = vadd.f32 %v2916, %v2886
      %v2918 = vadd.f32 %v2917, %v2887
      %v2919 = vadd.f32 %v2918, %v2888
      %v2920 = vadd.f32 %v2919, %v2889
      %v2921 = vadd.f32 %v2920, %v2890
      %v2922 = vadd.f32 %v2921, %v2891
      %v2923 = vrot.slane %v2922, 4
      %v2924 = vadd.f32 %v2922, %v2923
      %v2925 = vrot.slane %v2924, 2
      %v2926 = vadd.f32 %v2924, %v2925
      %v2927 = vrot.slane %v2926, 1
      %v2928 = vadd.f32 %v2926, %v2927
      %2929 = vst [vmem:[%s172] sm:$0x1] %v2928
      %v2930 = vmul.f32 %v2860, %v2860
      %v2931 = vmul.f32 %v2861, %v2861
      %v2932 = vmul.f32 %v2862, %v2862
      %v2933 = vmul.f32 %v2863, %v2863
      %v2934 = vmul.f32 %v2864, %v2864
      %v2935 = vmul.f32 %v2865, %v2865
      %v2936 = vmul.f32 %v2866, %v2866
      %v2937 = vmul.f32 %v2867, %v2867
      %v2938 = vmul.f32 %v2868, %v2868
      %v2939 = vmul.f32 %v2869, %v2869
      %v2940 = vmul.f32 %v2870, %v2870
      %v2941 = vmul.f32 %v2871, %v2871
      %v2942 = vmul.f32 %v2872, %v2872
      %v2943 = vmul.f32 %v2873, %v2873
      %v2944 = vmul.f32 %v2874, %v2874
      %v2945 = vmul.f32 %v2875, %v2875
      %v2946 = vmul.f32 %v2876, %v2876
      %v2947 = vmul.f32 %v2877, %v2877
      %v2948 = vmul.f32 %v2878, %v2878
      %v2949 = vmul.f32 %v2879, %v2879
      %v2950 = vmul.f32 %v2880, %v2880
      %v2951 = vmul.f32 %v2881, %v2881
      %v2952 = vmul.f32 %v2882, %v2882
      %v2953 = vmul.f32 %v2883, %v2883
      %v2954 = vmul.f32 %v2884, %v2884
      %v2955 = vmul.f32 %v2885, %v2885
      %v2956 = vmul.f32 %v2886, %v2886
      %v2957 = vmul.f32 %v2887, %v2887
      %v2958 = vmul.f32 %v2888, %v2888
      %v2959 = vmul.f32 %v2889, %v2889
      %v2960 = vmul.f32 %v2890, %v2890
      %v2961 = vmul.f32 %v2891, %v2891
      %v2962 = vadd.f32 %v2930, %v2931
      %v2963 = vadd.f32 %v2962, %v2932
      %v2964 = vadd.f32 %v2963, %v2933
      %v2965 = vadd.f32 %v2964, %v2934
      %v2966 = vadd.f32 %v2965, %v2935
      %v2967 = vadd.f32 %v2966, %v2936
      %v2968 = vadd.f32 %v2967, %v2937
      %v2969 = vadd.f32 %v2968, %v2938
      %v2970 = vadd.f32 %v2969, %v2939
      %v2971 = vadd.f32 %v2970, %v2940
      %v2972 = vadd.f32 %v2971, %v2941
      %v2973 = vadd.f32 %v2972, %v2942
      %v2974 = vadd.f32 %v2973, %v2943
      %v2975 = vadd.f32 %v2974, %v2944
      %v2976 = vadd.f32 %v2975, %v2945
      %v2977 = vadd.f32 %v2976, %v2946
      %v2978 = vadd.f32 %v2977, %v2947
      %v2979 = vadd.f32 %v2978, %v2948
      %v2980 = vadd.f32 %v2979, %v2949
      %v2981 = vadd.f32 %v2980, %v2950
      %v2982 = vadd.f32 %v2981, %v2951
      %v2983 = vadd.f32 %v2982, %v2952
      %v2984 = vadd.f32 %v2983, %v2953
      %v2985 = vadd.f32 %v2984, %v2954
      %v2986 = vadd.f32 %v2985, %v2955
      %v2987 = vadd.f32 %v2986, %v2956
      %v2988 = vadd.f32 %v2987, %v2957
      %v2989 = vadd.f32 %v2988, %v2958
      %v2990 = vadd.f32 %v2989, %v2959
      %v2991 = vadd.f32 %v2990, %v2960
      %v2992 = vadd.f32 %v2991, %v2961
      %v2993 = vrot.slane %v2992, 4
      %v2994 = vadd.f32 %v2992, %v2993
      %v2995 = vrot.slane %v2994, 2
      %v2996 = vadd.f32 %v2994, %v2995
      %v2997 = vrot.slane %v2996, 1
      %v2998 = vadd.f32 %v2996, %v2997
      %2999 = vst [vmem:[%s175] sm:$0x1] %v2998
      %p3000 = scmp.lt.s32.totalorder %s15, 1
      %s3001 = scalar_select %p3000, %s15, 1
      %s3002 = scalar_lea.vmem %s2, %s3001
      %p3003 = scmp.lt.s32.totalorder %s15, 1
      %s3004 = scalar_select %p3003, %s15, 1
      %s3005 = scalar_lea.vmem %s3, %s3004
      // Predicated region
      $region29: #{conv_forward.2} parent=27 // pred_check
        %p3006 = pneg %p80
      $region30: #{conv_forward.2} parent=27 // pred_check_branch
        %3008 = sbr.rel (%p3006) target = $region32
      $region31: #{conv_forward.2} parent=27 // pred_region
        _
      $region32: #{conv_forward.2} parent=27 // pred_fallthru
        _
      // Predicated region
      $region33: #{conv_forward.2} parent=27 // pred_check
        %p3009 = pneg %p106
      $region34: #{conv_forward.2} parent=27 // pred_check_branch
        %3011 = sbr.rel (%p3009) target = $region36
      $region35: #{conv_forward.2} parent=27 // pred_region
        _
      $region36: #{conv_forward.2} parent=27 // pred_fallthru
        _
    $region28: #{conv_forward.2} parent=5 // pred_fallthru
      _
    %p3012 = scmp.le.s32.totalorder 2, %s10
    // Predicated region
    $region37: #{conv_forward.2} parent=5 // pred_check
      %p3013 = pneg %p3012
    $region38: #{conv_forward.2} parent=5 // pred_check_branch
      %3015 = sbr.rel (%p3013) target = $region40
    $region39: #{conv_forward.2} parent=5 // pred_region
      %s3016 = ssub.s32 %s10, 2
      // Predicated region
      $region41: #{conv_forward.2} parent=39 // pred_check
        %p3017 = pneg %p86
      $region42: #{conv_forward.2} parent=39 // pred_check_branch
        %3019 = sbr.rel (%p3017) target = $region44
      $region43: #{conv_forward.2} parent=39 // pred_region
        %p3020 = scmp.lt.s32.totalorder %s16, 1
        %s3021 = scalar_select %p3020, %s16, 1
        %s3022 = scalar_lea.vmem %s2, %s3021
      $region44: #{conv_forward.2} parent=39 // pred_fallthru
        _
      // Predicated region
      $region45: #{conv_forward.2} parent=39 // pred_check
        %p3023 = pneg %p112
      $region46: #{conv_forward.2} parent=39 // pred_check_branch
        %3025 = sbr.rel (%p3023) target = $region48
      $region47: #{conv_forward.2} parent=39 // pred_region
        %p3026 = scmp.lt.s32.totalorder %s16, 1
        %s3027 = scalar_select %p3026, %s16, 1
        %s3028 = scalar_lea.vmem %s3, %s3027
      $region48: #{conv_forward.2} parent=39 // pred_fallthru
        _
    $region40: #{conv_forward.2} parent=5 // pred_fallthru
      _
  $region6: #{conv_forward.2} parent=0 // loop_footer
    %s14 = sadd.s32 1, %s10
  $region7: #{conv_forward.2} parent=0 // loop_footer_branch
    %9 = sbr.rel target = $region3
  $region8: #{conv_forward.2} parent=0 // loop_exit
    _

// kernel: conv_forward.3
$region0: #{conv_forward.3}
  #allocation0 [shape = 'u32[]', space=smem, size = 0x4, offset = 0x4, fixed_abs, tag = 'smem constant byte address 0x4 - core index']
  #allocation1 [shape = 'u32[144,128]{1,0:T(1,128)}', space=vmem, size = 0x12000, scoped, tag = 'internal scratch']
  %s0 = inlined_call_operand.vmem [shape: bf16[2,18,18,8], index: 0, kind: input, shape index: {}]
  %s1 = inlined_call_operand.vmem [shape: bf16[9,8,128], index: 1, kind: input, shape index: {}]
  %s2 = inlined_call_operand.vmem [shape: f32[1,1,128], index: 2, kind: input, shape index: {}]
  %s3 = inlined_call_operand.vmem [shape: f32[1,1,128], index: 3, kind: input, shape index: {}]
  %s4 = inlined_call_operand.vmem [shape: f32[2,256,128], index: 4, kind: output, shape index: {}]
  %s5 = sld [smem:[#allocation0]]
  $region49: #{conv_forward.3} parent=0
    _
  %s7 = ssub.s32 1, %s5
  %s8 = scalar_select 0, %s7, %s5
  loop: start=0, step=1, limit=4
  $region2: #{conv_forward.3} parent=0 // loop_pre_header
    _
  $region3: #{conv_forward.3} parent=0 // loop_header
    %s10 = sphi 0, %s14
    %p11 = scmp.ge.s32.totalorder %s10, 4
    %s20 = sphi 0, %s22
    %s23 = sphi 0, %s20
    %s24 = sphi 0, %s23
    %s40 = sphi 0, %s24
    %s44 = sphi 0, %s44
    %s46 = sphi 0, %s44
    %s47 = sphi 0, %s46
    %s61 = sphi 0, %s47
    %s65 = sphi 0, %s65
    %s67 = sphi 0, %s65
    %s68 = sphi 0, %s67
    %s82 = sphi 0, %s68
    %s86 = sphi 0, %s86
    %s88 = sphi 0, %s86
    %s89 = sphi 0, %s88
    %s103 = sphi 0, %s89
    %s109 = sphi 0, %s111
    %s112 = sphi 0, %s109
    %s113 = sphi 0, %s112
    %s129 = sphi 0, %s113
  $region4: #{conv_forward.3} parent=0 // loop_header_branch
    %13 = sbr.rel (%p11) target = $region8
  $region5: #{conv_forward.3} parent=0 // loop_body
    %s15 = ssub.s32 %s10, 1
    %s16 = ssub.s32 %s10, 2
    %s17 = sadd.s32 %s10, 1
    %s18 = ssub.s32 %s10, %s17
    %p19 = scmp.eq.s32.totalorder %s18, 0
    %s21 = sadd.s32 %s20, 1
    %s22 = scalar_select %p19, %s20, %s21
    %p25 = pneg %p19
    %p26 = scmp.eq.s32.totalorder %s10, 1
    %p27 = por %p25, %p26
    %p28 = scmp.ne.s32.totalorder %s20, %s23
    %p29 = scmp.eq.s32.totalorder %s10, 0
    %p30 = por %p28, %p29
    %p31 = scmp.ne.s32.totalorder %s20, %s23
    %p32 = scmp.eq.s32.totalorder %s15, 1
    %p33 = por %p31, %p32
    %p34 = scmp.ne.s32.totalorder %s23, %s24
    %p35 = scmp.eq.s32.totalorder %s15, 0
    %p36 = por %p34, %p35
    %p37 = scmp.ne.s32.totalorder %s23, %s24
    %p38 = scmp.eq.s32.totalorder %s16, 1
    %p39 = por %p37, %p38
    %p41 = scmp.ne.s32.totalorder %s24, %s40
    %p42 = scmp.eq.s32.totalorder %s16, 0
    %p43 = por %p41, %p42
    %s45 = sadd.s32 %s44, 1
    %p48 = scmp.eq.s32.totalorder %s10, 1
    %p49 = scmp.ne.s32.totalorder %s44, %s46
    %p50 = scmp.eq.s32.totalorder %s10, 0
    %p51 = por %p49, %p50
    %p52 = scmp.ne.s32.totalorder %s44, %s46
    %p53 = scmp.eq.s32.totalorder %s15, 1
    %p54 = por %p52, %p53
    %p55 = scmp.ne.s32.totalorder %s46, %s47
    %p56 = scmp.eq.s32.totalorder %s15, 0
    %p57 = por %p55, %p56
    %p58 = scmp.ne.s32.totalorder %s46, %s47
    %p59 = scmp.eq.s32.totalorder %s16, 1
    %p60 = por %p58, %p59
    %p62 = scmp.ne.s32.totalorder %s47, %s61
    %p63 = scmp.eq.s32.totalorder %s16, 0
    %p64 = por %p62, %p63
    %s66 = sadd.s32 %s65, 1
    %p69 = scmp.eq.s32.totalorder %s10, 1
    %p70 = scmp.ne.s32.totalorder %s65, %s67
    %p71 = scmp.eq.s32.totalorder %s10, 0
    %p72 = por %p70, %p71
    %p73 = scmp.ne.s32.totalorder %s65, %s67
    %p74 = scmp.eq.s32.totalorder %s15, 1
    %p75 = por %p73, %p74
    %p76 = scmp.ne.s32.totalorder %s67, %s68
    %p77 = scmp.eq.s32.totalorder %s15, 0
    %p78 = por %p76, %p77
    %p79 = scmp.ne.s32.totalorder %s67, %s68
    %p80 = scmp.eq.s32.totalorder %s16, 1
    %p81 = por %p79, %p80
    %p83 = scmp.ne.s32.totalorder %s68, %s82
    %p84 = scmp.eq.s32.totalorder %s16, 0
    %p85 = por %p83, %p84
    %s87 = sadd.s32 %s86, 1
    %p90 = scmp.eq.s32.totalorder %s10, 1
    %p91 = scmp.ne.s32.totalorder %s86, %s88
    %p92 = scmp.eq.s32.totalorder %s10, 0
    %p93 = por %p91, %p92
    %p94 = scmp.ne.s32.totalorder %s86, %s88
    %p95 = scmp.eq.s32.totalorder %s15, 1
    %p96 = por %p94, %p95
    %p97 = scmp.ne.s32.totalorder %s88, %s89
    %p98 = scmp.eq.s32.totalorder %s15, 0
    %p99 = por %p97, %p98
    %p100 = scmp.ne.s32.totalorder %s88, %s89
    %p101 = scmp.eq.s32.totalorder %s16, 1
    %p102 = por %p100, %p101
    %p104 = scmp.ne.s32.totalorder %s89, %s103
    %p105 = scmp.eq.s32.totalorder %s16, 0
    %p106 = por %p104, %p105
    %s107 = ssub.s32 %s10, %s17
    %p108 = scmp.eq.s32.totalorder %s107, 0
    %s110 = sadd.s32 %s109, 1
    %s111 = scalar_select %p108, %s109, %s110
    %p114 = pneg %p108
    %p115 = scmp.eq.s32.totalorder %s10, 1
    %p116 = por %p114, %p115
    %p117 = scmp.ne.s32.totalorder %s109, %s112
    %p118 = scmp.eq.s32.totalorder %s10, 0
    %p119 = por %p117, %p118
    %p120 = scmp.ne.s32.totalorder %s109, %s112
    %p121 = scmp.eq.s32.totalorder %s15, 1
    %p122 = por %p120, %p121
    %p123 = scmp.ne.s32.totalorder %s112, %s113
    %p124 = scmp.eq.s32.totalorder %s15, 0
    %p125 = por %p123, %p124
    %p126 = scmp.ne.s32.totalorder %s112, %s113
    %p127 = scmp.eq.s32.totalorder %s16, 1
    %p128 = por %p126, %p127
    %p130 = scmp.ne.s32.totalorder %s113, %s129
    %p131 = scmp.eq.s32.totalorder %s16, 0
    %p132 = por %p130, %p131
    %p133 = scmp.le.s32.totalorder 1, %s10
    %p134 = scmp.lt.s32.totalorder %s10, 3
    %p135 = pnand %p133, %p134
    %p136 = pneg %p135
    // Predicated region
    $region9: #{conv_forward.3} parent=5 // pred_check
      _
    $region10: #{conv_forward.3} parent=5 // pred_check_branch
      %138 = sbr.rel (%p135) target = $region12
    $region11: #{conv_forward.3} parent=5 // pred_region
      %s139 = ssub.s32 %s10, 1
      // Predicated region
      $region13: #{conv_forward.3} parent=11 // pred_check
        %p140 = pneg %p57
      $region14: #{conv_forward.3} parent=11 // pred_check_branch
        %142 = sbr.rel (%p140) target = $region16
      $region15: #{conv_forward.3} parent=11 // pred_region
        _
      $region16: #{conv_forward.3} parent=11 // pred_fallthru
        _
      // Predicated region
      $region17: #{conv_forward.3} parent=11 // pred_check
        %p143 = pneg %p78
      $region18: #{conv_forward.3} parent=11 // pred_check_branch
        %145 = sbr.rel (%p143) target = $region20
      $region19: #{conv_forward.3} parent=11 // pred_region
        _
      $region20: #{conv_forward.3} parent=11 // pred_fallthru
        _
      // Predicated region
      $region21: #{conv_forward.3} parent=11 // pred_check
        %p146 = pneg %p99
      $region22: #{conv_forward.3} parent=11 // pred_check_branch
        %148 = sbr.rel (%p146) target = $region24
      $region23: #{conv_forward.3} parent=11 // pred_region
        _
      $region24: #{conv_forward.3} parent=11 // pred_fallthru
        _
    $region12: #{conv_forward.3} parent=5 // pred_fallthru
      _
    %p149 = scmp.lt.s32.totalorder %s10, 2
    // Predicated region
    $region25: #{conv_forward.3} parent=5 // pred_check
      %p150 = pneg %p149
    $region26: #{conv_forward.3} parent=5 // pred_check_branch
      %152 = sbr.rel (%p150) target = $region28
    $region27: #{conv_forward.3} parent=5 // pred_region
      // Predicated region
      $region29: #{conv_forward.3} parent=27 // pred_check
        %p153 = pneg %p30
      $region30: #{conv_forward.3} parent=27 // pred_check_branch
        %155 = sbr.rel (%p153) target = $region32
      $region31: #{conv_forward.3} parent=27 // pred_region
        %p156 = scmp.lt.s32.totalorder %s10, 1
        %s157 = scalar_select %p156, %s10, 1
        %s158 = smul.addr %s157, 54
        %s159 = smul.addr %s158, 4
        %s160 = scalar_lea.vmem %s0, %s159
      $region32: #{conv_forward.3} parent=27 // pred_fallthru
        _
    $region28: #{conv_forward.3} parent=5 // pred_fallthru
      _
    %p161 = scmp.le.s32.totalorder 1, %s10
    %p162 = scmp.lt.s32.totalorder %s10, 3
    %p163 = pnand %p161, %p162
    %p164 = pneg %p163
    // Predicated region
    $region33: #{conv_forward.3} parent=5 // pred_check
      _
    $region34: #{conv_forward.3} parent=5 // pred_check_branch
      %166 = sbr.rel (%p163) target = $region36
    $region35: #{conv_forward.3} parent=5 // pred_region
      %s167 = ssub.s32 %s10, 1
      %p168 = scmp.lt.s32.totalorder %s15, 1
      %s169 = scalar_select %p168, %s15, 1
      %s170 = smul.addr %s169, 54
      %s171 = smul.addr %s170, 4
      %s172 = scalar_lea.vmem %s0, %s171
      %p173 = pneg %p36
      %p174 = pneg %p33
      %p175 = pneg %p57
      %p176 = pneg %p54
      %p177 = pneg %p78
      %p178 = pneg %p75
      %p179 = pneg %p99
      %p180 = pneg %p96
      %p181 = pneg %p125
      %p182 = pneg %p122
      %p183 = scmp.lt.s32.totalorder %s15, 1
      %s184 = scalar_select %p183, %s15, 1
      %s185 = smul.addr %s184, 32
      %s186 = smul.addr %s185, 8
      %s187 = scalar_lea.vmem %s4, %s186
      %p188 = scmp.lt.s32.totalorder %s15, 1
      %s189 = scalar_select %p188, %s15, 1
      %s190 = smul.addr %s189, 54
      %s191 = smul.addr %s190, 4
      %s192 = scalar_lea.vmem %s0, %s191
      %p193 = scmp.lt.s32.totalorder %s15, 1
      %s194 = scalar_select %p193, %s15, 1
      %s195 = smul.addr %s194, 32
      %s196 = smul.addr %s195, 8
      %s197 = scalar_lea.vmem %s4, %s196
      %v199 = vld [vmem:[%s192] sm:$0xf]
      %v200 = vld [vmem:[%s192 + $0x4] sm:$0xf]
      %v201 = vld [vmem:[%s192 + $0x8] sm:$0x1]
      %v202 = vld [vmem:[%s192 + $0xc] sm:$0xf]
      %v203 = vld [vmem:[%s192 + $0x10] sm:$0xf]
      %v204 = vld [vmem:[%s192 + $0x14] sm:$0x1]
      %v205 = vld [vmem:[%s192 + $0x18] sm:$0xf]
      %v206 = vld [vmem:[%s192 + $0x1c] sm:$0xf]
      %v207 = vld [vmem:[%s192 + $0x20] sm:$0x1]
      %v208 = vld [vmem:[%s192 + $0x24] sm:$0xf]
      %v209 = vld [vmem:[%s192 + $0x28] sm:$0xf]
      %v210 = vld [vmem:[%s192 + $0x2c] sm:$0x1]
      %v211 = vld [vmem:[%s192 + $0x30] sm:$0xf]
      %v212 = vld [vmem:[%s192 + $0x34] sm:$0xf]
      %v213 = vld [vmem:[%s192 + $0x38] sm:$0x1]
      %v214 = vld [vmem:[%s192 + $0x3c] sm:$0xf]
      %v215 = vld [vmem:[%s192 + $0x40] sm:$0xf]
      %v216 = vld [vmem:[%s192 + $0x44] sm:$0x1]
      %v217 = vld [vmem:[%s192 + $0x48] sm:$0xf]
      %v218 = vld [vmem:[%s192 + $0x4c] sm:$0xf]
      %v219 = vld [vmem:[%s192 + $0x50] sm:$0x1]
      %v220 = vld [vmem:[%s192 + $0x54] sm:$0xf]
      %v221 = vld [vmem:[%s192 + $0x58] sm:$0xf]
      %v222 = vld [vmem:[%s192 + $0x5c] sm:$0x1]
      %v223 = vld [vmem:[%s192 + $0x60] sm:$0xf]
      %v224 = vld [vmem:[%s192 + $0x64] sm:$0xf]
      %v225 = vld [vmem:[%s192 + $0x68] sm:$0x1]
      %v226 = vld [vmem:[%s192 + $0x6c] sm:$0xf]
      %v227 = vld [vmem:[%s192 + $0x70] sm:$0xf]
      %v228 = vld [vmem:[%s192 + $0x74] sm:$0x1]
      %v229 = vld [vmem:[%s192 + $0x78] sm:$0xf]
      %v230 = vld [vmem:[%s192 + $0x7c] sm:$0xf]
      %v231 = vld [vmem:[%s192 + $0x80] sm:$0x1]
      %v232 = vld [vmem:[%s192 + $0x84] sm:$0xf]
      %v233 = vld [vmem:[%s192 + $0x88] sm:$0xf]
      %v234 = vld [vmem:[%s192 + $0x8c] sm:$0x1]
      %v235 = vld [vmem:[%s192 + $0x90] sm:$0xf]
      %v236 = vld [vmem:[%s192 + $0x94] sm:$0xf]
      %v237 = vld [vmem:[%s192 + $0x98] sm:$0x1]
      %v238 = vld [vmem:[%s192 + $0x9c] sm:$0xf]
      %v239 = vld [vmem:[%s192 + $0xa0] sm:$0xf]
      %v240 = vld [vmem:[%s192 + $0xa4] sm:$0x1]
      %v241 = vld [vmem:[%s192 + $0xa8] sm:$0xf]
      %v242 = vld [vmem:[%s192 + $0xac] sm:$0xf]
      %v243 = vld [vmem:[%s192 + $0xb0] sm:$0x1]
      %v244 = vld [vmem:[%s192 + $0xb4] sm:$0xf]
      %v245 = vld [vmem:[%s192 + $0xb8] sm:$0xf]
      %v246 = vld [vmem:[%s192 + $0xbc] sm:$0x1]
      %v247 = vld [vmem:[%s192 + $0xc0] sm:$0xf]
      %v248 = vld [vmem:[%s192 + $0xc4] sm:$0xf]
      %v249 = vld [vmem:[%s192 + $0xc8] sm:$0x1]
      %v250 = vld [vmem:[%s192 + $0xcc] sm:$0xf]
      %v251 = vld [vmem:[%s192 + $0xd0] sm:$0xf]
      %v252 = vld [vmem:[%s192 + $0xd4] sm:$0x1]
      %v253 = vld [vmem:[%s1] sm:$0xf]
      %vm254 = vsmask.f32 3328
      %vm255 = vsmask.f32 7440
      %vm256 = vmor %vm254, %vm255
      %v258 = vshrl.u32 %v199, 16
      %v260 = vrot.slane %v258, 4
      %v261 = vshll.u32 %v199, 16
      %v263 = vrot.slane %v261, 5
      %v264 = vor.u32 %v260, %v263
      %v265 = vrot.slane %v264, 4
      %v267 = vshll.u32 %v200, 16
      %v269 = vrot.slane %v267, 5
      %v270 = vsel %vm256, %v265, %v269
      %v271 = vshrl.u32 %v200, 16
      %v273 = vrot.slane %v271, 4
      %v274 = vor.u32 %v273, %v269
      %v275 = vrot.slane %v274, 4
      %v277 = vshll.u32 %v201, 16
      %v279 = vrot.slane %v277, 5
      %v280 = vsel %vm256, %v275, %v279
      %v282 = vshrl.u32 %v202, 16
      %v284 = vrot.slane %v282, 4
      %v285 = vshll.u32 %v202, 16
      %v287 = vrot.slane %v285, 5
      %v288 = vor.u32 %v284, %v287
      %v289 = vrot.slane %v288, 4
      %v291 = vshll.u32 %v203, 16
      %v293 = vrot.slane %v291, 5
      %v294 = vsel %vm256, %v289, %v293
      %v295 = vshrl.u32 %v203, 16
      %v297 = vrot.slane %v295, 4
      %v298 = vor.u32 %v297, %v293
      %v299 = vrot.slane %v298, 4
      %v301 = vshll.u32 %v204, 16
      %v303 = vrot.slane %v301, 5
      %v304 = vsel %vm256, %v299, %v303
      %v306 = vshrl.u32 %v205, 16
      %v308 = vrot.slane %v306, 4
      %v309 = vshll.u32 %v205, 16
      %v311 = vrot.slane %v309, 5
      %v312 = vor.u32 %v308, %v311
      %v313 = vrot.slane %v312, 4
      %v315 = vshll.u32 %v206, 16
      %v317 = vrot.slane %v315, 5
      %v318 = vsel %vm256, %v313, %v317
      %v319 = vshrl.u32 %v206, 16
      %v321 = vrot.slane %v319, 4
      %v322 = vor.u32 %v321, %v317
      %v323 = vrot.slane %v322, 4
      %v325 = vshll.u32 %v207, 16
      %v327 = vrot.slane %v325, 5
      %v328 = vsel %vm256, %v323, %v327
      %v330 = vshrl.u32 %v208, 16
      %v332 = vrot.slane %v330, 4
      %v333 = vshll.u32 %v208, 16
      %v335 = vrot.slane %v333, 5
      %v336 = vor.u32 %v332, %v335
      %v337 = vrot.slane %v336, 4
      %v339 = vshll.u32 %v209, 16
      %v341 = vrot.slane %v339, 5
      %v342 = vsel %vm256, %v337, %v341
      %v343 = vshrl.u32 %v209, 16
      %v345 = vrot.slane %v343, 4
      %v346 = vor.u32 %v345, %v341
      %v347 = vrot.slane %v346, 4
      %v349 = vshll.u32 %v210, 16
      %v351 = vrot.slane %v349, 5
      %v352 = vsel %vm256, %v347, %v351
      %v354 = vshrl.u32 %v211, 16
      %v356 = vrot.slane %v354, 4
      %v357 = vshll.u32 %v211, 16
      %v359 = vrot.slane %v357, 5
      %v360 = vor.u32 %v356, %v359
      %v361 = vrot.slane %v360, 4
      %v363 = vshll.u32 %v212, 16
      %v365 = vrot.slane %v363, 5
      %v366 = vsel %vm256, %v361, %v365
      %v367 = vshrl.u32 %v212, 16
      %v369 = vrot.slane %v367, 4
      %v370 = vor.u32 %v369, %v365
      %v371 = vrot.slane %v370, 4
      %v373 = vshll.u32 %v213, 16
      %v375 = vrot.slane %v373, 5
      %v376 = vsel %vm256, %v371, %v375
      %v378 = vshrl.u32 %v214, 16
      %v380 = vrot.slane %v378, 4
      %v381 = vshll.u32 %v214, 16
      %v383 = vrot.slane %v381, 5
      %v384 = vor.u32 %v380, %v383
      %v385 = vrot.slane %v384, 4
      %v387 = vshll.u32 %v215, 16
      %v389 = vrot.slane %v387, 5
      %v390 = vsel %vm256, %v385, %v389
      %v391 = vshrl.u32 %v215, 16
      %v393 = vrot.slane %v391, 4
      %v394 = vor.u32 %v393, %v389
      %v395 = vrot.slane %v394, 4
      %v397 = vshll.u32 %v216, 16
      %v399 = vrot.slane %v397, 5
      %v400 = vsel %vm256, %v395, %v399
      %v402 = vshrl.u32 %v217, 16
      %v404 = vrot.slane %v402, 4
      %v405 = vshll.u32 %v217, 16
      %v407 = vrot.slane %v405, 5
      %v408 = vor.u32 %v404, %v407
      %v409 = vrot.slane %v408, 4
      %v411 = vshll.u32 %v218, 16
      %v413 = vrot.slane %v411, 5
      %v414 = vsel %vm256, %v409, %v413
      %v415 = vshrl.u32 %v218, 16
      %v417 = vrot.slane %v415, 4
      %v418 = vor.u32 %v417, %v413
      %v419 = vrot.slane %v418, 4
      %v421 = vshll.u32 %v219, 16
      %v423 = vrot.slane %v421, 5
      %v424 = vsel %vm256, %v419, %v423
      %v426 = vshrl.u32 %v220, 16
      %v428 = vrot.slane %v426, 4
      %v429 = vshll.u32 %v220, 16
      %v431 = vrot.slane %v429, 5
      %v432 = vor.u32 %v428, %v431
      %v433 = vrot.slane %v432, 4
      %v435 = vshll.u32 %v221, 16
      %v437 = vrot.slane %v435, 5
      %v438 = vsel %vm256, %v433, %v437
      %v439 = vshrl.u32 %v221, 16
      %v441 = vrot.slane %v439, 4
      %v442 = vor.u32 %v441, %v437
      %v443 = vrot.slane %v442, 4
      %v445 = vshll.u32 %v222, 16
      %v447 = vrot.slane %v445, 5
      %v448 = vsel %vm256, %v443, %v447
      %v450 = vshrl.u32 %v223, 16
      %v452 = vrot.slane %v450, 4
      %v453 = vshll.u32 %v223, 16
      %v455 = vrot.slane %v453, 5
      %v456 = vor.u32 %v452, %v455
      %v457 = vrot.slane %v456, 4
      %v459 = vshll.u32 %v224, 16
      %v461 = vrot.slane %v459, 5
      %v462 = vsel %vm256, %v457, %v461
      %v463 = vshrl.u32 %v224, 16
      %v465 = vrot.slane %v463, 4
      %v466 = vor.u32 %v465, %v461
      %v467 = vrot.slane %v466, 4
      %v469 = vshll.u32 %v225, 16
      %v471 = vrot.slane %v469, 5
      %v472 = vsel %vm256, %v467, %v471
      %v474 = vshrl.u32 %v226, 16
      %v476 = vrot.slane %v474, 4
      %v477 = vshll.u32 %v226, 16
      %v479 = vrot.slane %v477, 5
      %v480 = vor.u32 %v476, %v479
      %v481 = vrot.slane %v480, 4
      %v483 = vshll.u32 %v227, 16
      %v485 = vrot.slane %v483, 5
      %v486 = vsel %vm256, %v481, %v485
      %v487 = vshrl.u32 %v227, 16
      %v489 = vrot.slane %v487, 4
      %v490 = vor.u32 %v489, %v485
      %v491 = vrot.slane %v490, 4
      %v493 = vshll.u32 %v228, 16
      %v495 = vrot.slane %v493, 5
      %v496 = vsel %vm256, %v491, %v495
      %v498 = vshrl.u32 %v229, 16
      %v500 = vrot.slane %v498, 4
      %v501 = vshll.u32 %v229, 16
      %v503 = vrot.slane %v501, 5
      %v504 = vor.u32 %v500, %v503
      %v505 = vrot.slane %v504, 4
      %v507 = vshll.u32 %v230, 16
      %v509 = vrot.slane %v507, 5
      %v510 = vsel %vm256, %v505, %v509
      %v511 = vshrl.u32 %v230, 16
      %v513 = vrot.slane %v511, 4
      %v514 = vor.u32 %v513, %v509
      %v515 = vrot.slane %v514, 4
      %v517 = vshll.u32 %v231, 16
      %v519 = vrot.slane %v517, 5
      %v520 = vsel %vm256, %v515, %v519
      %v522 = vshrl.u32 %v232, 16
      %v524 = vrot.slane %v522, 4
      %v525 = vshll.u32 %v232, 16
      %v527 = vrot.slane %v525, 5
      %v528 = vor.u32 %v524, %v527
      %v529 = vrot.slane %v528, 4
      %v531 = vshll.u32 %v233, 16
      %v533 = vrot.slane %v531, 5
      %v534 = vsel %vm256, %v529, %v533
      %v535 = vshrl.u32 %v233, 16
      %v537 = vrot.slane %v535, 4
      %v538 = vor.u32 %v537, %v533
      %v539 = vrot.slane %v538, 4
      %v541 = vshll.u32 %v234, 16
      %v543 = vrot.slane %v541, 5
      %v544 = vsel %vm256, %v539, %v543
      %v546 = vshrl.u32 %v235, 16
      %v548 = vrot.slane %v546, 4
      %v549 = vshll.u32 %v235, 16
      %v551 = vrot.slane %v549, 5
      %v552 = vor.u32 %v548, %v551
      %v553 = vrot.slane %v552, 4
      %v555 = vshll.u32 %v236, 16
      %v557 = vrot.slane %v555, 5
      %v558 = vsel %vm256, %v553, %v557
      %v559 = vshrl.u32 %v236, 16
      %v561 = vrot.slane %v559, 4
      %v562 = vor.u32 %v561, %v557
      %v563 = vrot.slane %v562, 4
      %v565 = vshll.u32 %v237, 16
      %v567 = vrot.slane %v565, 5
      %v568 = vsel %vm256, %v563, %v567
      %v570 = vshrl.u32 %v238, 16
      %v572 = vrot.slane %v570, 4
      %v573 = vshll.u32 %v238, 16
      %v575 = vrot.slane %v573, 5
      %v576 = vor.u32 %v572, %v575
      %v577 = vrot.slane %v576, 4
      %v579 = vshll.u32 %v239, 16
      %v581 = vrot.slane %v579, 5
      %v582 = vsel %vm256, %v577, %v581
      %v583 = vshrl.u32 %v239, 16
      %v585 = vrot.slane %v583, 4
      %v586 = vor.u32 %v585, %v581
      %v587 = vrot.slane %v586, 4
      %v589 = vshll.u32 %v240, 16
      %v591 = vrot.slane %v589, 5
      %v592 = vsel %vm256, %v587, %v591
      %v594 = vshrl.u32 %v241, 16
      %v596 = vrot.slane %v594, 4
      %v597 = vshll.u32 %v241, 16
      %v599 = vrot.slane %v597, 5
      %v600 = vor.u32 %v596, %v599
      %v601 = vrot.slane %v600, 4
      %v603 = vshll.u32 %v242, 16
      %v605 = vrot.slane %v603, 5
      %v606 = vsel %vm256, %v601, %v605
      %v607 = vshrl.u32 %v242, 16
      %v609 = vrot.slane %v607, 4
      %v610 = vor.u32 %v609, %v605
      %v611 = vrot.slane %v610, 4
      %v613 = vshll.u32 %v243, 16
      %v615 = vrot.slane %v613, 5
      %v616 = vsel %vm256, %v611, %v615
      %v618 = vshrl.u32 %v244, 16
      %v620 = vrot.slane %v618, 4
      %v621 = vshll.u32 %v244, 16
      %v623 = vrot.slane %v621, 5
      %v624 = vor.u32 %v620, %v623
      %v625 = vrot.slane %v624, 4
      %v627 = vshll.u32 %v245, 16
      %v629 = vrot.slane %v627, 5
      %v630 = vsel %vm256, %v625, %v629
      %v631 = vshrl.u32 %v245, 16
      %v633 = vrot.slane %v631, 4
      %v634 = vor.u32 %v633, %v629
      %v635 = vrot.slane %v634, 4
      %v637 = vshll.u32 %v246, 16
      %v639 = vrot.slane %v637, 5
      %v640 = vsel %vm256, %v635, %v639
      %s641 = scalar_lea.vmem %s1, 4
      %v642 = vld [vmem:[%s641] sm:$0xf]
      %v643 = vunpack.c.l.b16 %v270
      %v644 = vunpack.c.l.b16 %v280
      %v645 = vunpack.c.l.b16 %v294
      %v646 = vunpack.c.l.b16 %v304
      %v647 = vunpack.c.l.b16 %v318
      %v648 = vunpack.c.l.b16 %v328
      %v649 = vunpack.c.l.b16 %v342
      %v650 = vunpack.c.l.b16 %v352
      %v651 = vunpack.c.l.b16 %v366
      %v652 = vunpack.c.l.b16 %v376
      %v653 = vunpack.c.l.b16 %v390
      %v654 = vunpack.c.l.b16 %v400
      %v655 = vunpack.c.l.b16 %v414
      %v656 = vunpack.c.l.b16 %v424
      %v657 = vunpack.c.l.b16 %v438
      %v658 = vunpack.c.l.b16 %v448
      %v659 = vunpack.c.l.b16 %v462
      %v660 = vunpack.c.l.b16 %v472
      %v661 = vunpack.c.l.b16 %v486
      %v662 = vunpack.c.l.b16 %v496
      %v663 = vunpack.c.l.b16 %v510
      %v664 = vunpack.c.l.b16 %v520
      %v665 = vunpack.c.l.b16 %v534
      %v666 = vunpack.c.l.b16 %v544
      %v667 = vunpack.c.l.b16 %v558
      %v668 = vunpack.c.l.b16 %v568
      %v669 = vunpack.c.l.b16 %v582
      %v670 = vunpack.c.l.b16 %v592
      %v671 = vunpack.c.l.b16 %v606
      %v672 = vunpack.c.l.b16 %v616
      %v673 = vunpack.c.l.b16 %v630
      %v674 = vunpack.c.l.b16 %v640
      %v675 = vpack.c.b16 %v644, %v643
      %v676 = vpack.c.b16 %v646, %v645
      %v677 = vpack.c.b16 %v648, %v647
      %v678 = vpack.c.b16 %v650, %v649
      %v679 = vpack.c.b16 %v652, %v651
      %v680 = vpack.c.b16 %v654, %v653
      %v681 = vpack.c.b16 %v656, %v655
      %v682 = vpack.c.b16 %v658, %v657
      %v683 = vpack.c.b16 %v660, %v659
      %v684 = vpack.c.b16 %v662, %v661
      %v685 = vpack.c.b16 %v664, %v663
      %v686 = vpack.c.b16 %v666, %v665
      %v687 = vpack.c.b16 %v668, %v667
      %v688 = vpack.c.b16 %v670, %v669
      %v689 = vpack.c.b16 %v672, %v671
      %v690 = vpack.c.b16 %v674, %v673
      %vm691 = vcmask 64512
      %v693 = vsel %vm691, %v675, 0
      %v696 = vsel %vm691, %v676, 0
      %v699 = vsel %vm691, %v677, 0
      %v702 = vsel %vm691, %v678, 0
      %v705 = vsel %vm691, %v679, 0
      %v708 = vsel %vm691, %v680, 0
      %v711 = vsel %vm691, %v681, 0
      %v714 = vsel %vm691, %v682, 0
      %v717 = vsel %vm691, %v683, 0
      %v720 = vsel %vm691, %v684, 0
      %v723 = vsel %vm691, %v685, 0
      %v726 = vsel %vm691, %v686, 0
      %v729 = vsel %vm691, %v687, 0
      %v732 = vsel %vm691, %v688, 0
      %v735 = vsel %vm691, %v689, 0
      %v738 = vsel %vm691, %v690, 0
      %vm740 = vcmask 1043456
      %v742 = vsel %vm740, %v642, 0
      %744 = vmatprep.subr.bf16.mxu0 0
      %745 = vmatpush1.bf16.msra.mxu0 %v742
      %746 = vmatprep.subr.bf16.mxu0 0
      %747 = vmatpush1.bf16.msra.mxu0 0
      %748 = vmatprep.subr.bf16.mxu0 0
      %749 = vmatpush1.bf16.msra.mxu0 0
      %750 = vmatprep.subr.bf16.mxu0 0
      %751 = vmatpush1.bf16.msra.mxu0 0
      %752 = vmatprep.subr.bf16.mxu0 0
      %753 = vmatpush1.bf16.msra.mxu0 0
      %754 = vmatprep.subr.bf16.mxu0 0
      %755 = vmatpush1.bf16.msra.mxu0 0
      %756 = vmatprep.subr.bf16.mxu0 0
      %757 = vmatpush1.bf16.msra.mxu0 0
      %758 = vmatprep.subr.bf16.mxu0 0
      %759 = vmatpush1.bf16.msra.mxu0 0
      %760 = vmatprep.subr.bf16.mxu0 0
      %761 = vmatpush1.bf16.msra.mxu0 0
      %762 = vmatprep.subr.bf16.mxu0 0
      %763 = vmatpush1.bf16.msra.mxu0 0
      %764 = vmatprep.subr.bf16.mxu0 0
      %765 = vmatpush1.bf16.msra.mxu0 0
      %766 = vmatprep.subr.bf16.mxu0 0
      %767 = vmatpush1.bf16.msra.mxu0 0
      %768 = vmatprep.subr.bf16.mxu0 0
      %769 = vmatpush1.bf16.msra.mxu0 0
      %770 = vmatprep.subr.bf16.mxu0 0
      %771 = vmatpush1.bf16.msra.mxu0 0
      %772 = vmatprep.subr.bf16.mxu0 0
      %773 = vmatpush1.bf16.msra.mxu0 0
      %774 = vmatprep.subr.bf16.mxu0 0
      %775 = vmatpush1.bf16.msra.mxu0 0
      %776 = vmatprep.mubr.bf16.mxu0 0
      %777 = vmatmul.mubr.bf16.gmra.mrb[0].mxu0 %v693
      %v778 = vpop.f32.mrb[0].mxu0
      %v779 = vadd.f32 0.0, %v778
      %v780 = vpop.f32.mrb[0].mxu0
      %v781 = vpop.f32.mrb[0].mxu0
      %v782 = vadd.f32 0.0, %v781
      %v783 = vpop.f32.mrb[0].mxu0
      %784 = vmatprep.mubr.bf16.mxu0 0
      %785 = vmatmul.mubr.bf16.gmra.mrb[0].mxu0 %v696
      %v786 = vpop.f32.mrb[0].mxu0
      %v787 = vadd.f32 0.0, %v786
      %v788 = vpop.f32.mrb[0].mxu0
      %v789 = vpop.f32.mrb[0].mxu0
      %v790 = vadd.f32 0.0, %v789
      %v791 = vpop.f32.mrb[0].mxu0
      %792 = vmatprep.mubr.bf16.mxu0 0
      %793 = vmatmul.mubr.bf16.gmra.mrb[0].mxu0 %v699
      %v794 = vpop.f32.mrb[0].mxu0
      %v795 = vadd.f32 0.0, %v794
      %v796 = vpop.f32.mrb[0].mxu0
      %v797 = vpop.f32.mrb[0].mxu0
      %v798 = vadd.f32 0.0, %v797
      %v799 = vpop.f32.mrb[0].mxu0
      %800 = vmatprep.mubr.bf16.mxu0 0
      %801 = vmatmul.mubr.bf16.gmra.mrb[0].mxu0 %v702
      %v802 = vpop.f32.mrb[0].mxu0
      %v803 = vadd.f32 0.0, %v802
      %v804 = vpop.f32.mrb[0].mxu0
      %v805 = vpop.f32.mrb[0].mxu0
      %v806 = vadd.f32 0.0, %v805
      %v807 = vpop.f32.mrb[0].mxu0
      %808 = vmatprep.mubr.bf16.mxu0 0
      %809 = vmatmul.mubr.bf16.gmra.mrb[0].mxu0 %v705
      %v810 = vpop.f32.mrb[0].mxu0
      %v811 = vadd.f32 0.0, %v810
      %v812 = vpop.f32.mrb[0].mxu0
      %v813 = vpop.f32.mrb[0].mxu0
      %v814 = vadd.f32 0.0, %v813
      %v815 = vpop.f32.mrb[0].mxu0
      %816 = vmatprep.mubr.bf16.mxu0 0
      %817 = vmatmul.mubr.bf16.gmra.mrb[0].mxu0 %v708
      %v818 = vpop.f32.mrb[0].mxu0
      %v819 = vadd.f32 0.0, %v818
      %v820 = vpop.f32.mrb[0].mxu0
      %v821 = vpop.f32.mrb[0].mxu0
      %v822 = vadd.f32 0.0, %v821
      %v823 = vpop.f32.mrb[0].mxu0
      %824 = vmatprep.mubr.bf16.mxu0 0
      %825 = vmatmul.mubr.bf16.gmra.mrb[0].mxu0 %v711
      %v826 = vpop.f32.mrb[0].mxu0
      %v827 = vadd.f32 0.0, %v826
      %v828 = vpop.f32.mrb[0].mxu0
      %v829 = vpop.f32.mrb[0].mxu0
      %v830 = vadd.f32 0.0, %v829
      %v831 = vpop.f32.mrb[0].mxu0
      %832 = vmatprep.mubr.bf16.mxu0 0
      %833 = vmatmul.mubr.bf16.gmra.mrb[0].mxu0 %v714
      %v834 = vpop.f32.mrb[0].mxu0
      %v835 = vadd.f32 0.0, %v834
      %v836 = vpop.f32.mrb[0].mxu0
      %v837 = vpop.f32.mrb[0].mxu0
      %v838 = vadd.f32 0.0, %v837
      %v839 = vpop.f32.mrb[0].mxu0
      %840 = vmatprep.mubr.bf16.mxu0 0
      %841 = vmatmul.mubr.bf16.gmra.mrb[0].mxu0 %v717
      %v842 = vpop.f32.mrb[0].mxu0
      %v843 = vadd.f32 0.0, %v842
      %v844 = vpop.f32.mrb[0].mxu0
      %v845 = vpop.f32.mrb[0].mxu0
      %v846 = vadd.f32 0.0, %v845
      %v847 = vpop.f32.mrb[0].mxu0
      %848 = vmatprep.mubr.bf16.mxu0 0
      %849 = vmatmul.mubr.bf16.gmra.mrb[0].mxu0 %v720
      %v850 = vpop.f32.mrb[0].mxu0
      %v851 = vadd.f32 0.0, %v850
      %v852 = vpop.f32.mrb[0].mxu0
      %v853 = vpop.f32.mrb[0].mxu0
      %v854 = vadd.f32 0.0, %v853
      %v855 = vpop.f32.mrb[0].mxu0
      %856 = vmatprep.mubr.bf16.mxu0 0
      %857 = vmatmul.mubr.bf16.gmra.mrb[0].mxu0 %v723
      %v858 = vpop.f32.mrb[0].mxu0
      %v859 = vadd.f32 0.0, %v858
      %v860 = vpop.f32.mrb[0].mxu0
      %v861 = vpop.f32.mrb[0].mxu0
      %v862 = vadd.f32 0.0, %v861
      %v863 = vpop.f32.mrb[0].mxu0
      %864 = vmatprep.mubr.bf16.mxu0 0
      %865 = vmatmul.mubr.bf16.gmra.mrb[0].mxu0 %v726
      %v866 = vpop.f32.mrb[0].mxu0
      %v867 = vadd.f32 0.0, %v866
      %v868 = vpop.f32.mrb[0].mxu0
      %v869 = vpop.f32.mrb[0].mxu0
      %v870 = vadd.f32 0.0, %v869
      %v871 = vpop.f32.mrb[0].mxu0
      %872 = vmatprep.mubr.bf16.mxu0 0
      %873 = vmatmul.mubr.bf16.gmra.mrb[0].mxu0 %v729
      %v874 = vpop.f32.mrb[0].mxu0
      %v875 = vadd.f32 0.0, %v874
      %v876 = vpop.f32.mrb[0].mxu0
      %v877 = vpop.f32.mrb[0].mxu0
      %v878 = vadd.f32 0.0, %v877
      %v879 = vpop.f32.mrb[0].mxu0
      %880 = vmatprep.mubr.bf16.mxu0 0
      %881 = vmatmul.mubr.bf16.gmra.mrb[0].mxu0 %v732
      %v882 = vpop.f32.mrb[0].mxu0
      %v883 = vadd.f32 0.0, %v882
      %v884 = vpop.f32.mrb[0].mxu0
      %v885 = vpop.f32.mrb[0].mxu0
      %v886 = vadd.f32 0.0, %v885
      %v887 = vpop.f32.mrb[0].mxu0
      %888 = vmatprep.mubr.bf16.mxu0 0
      %889 = vmatmul.mubr.bf16.gmra.mrb[0].mxu0 %v735
      %v890 = vpop.f32.mrb[0].mxu0
      %v891 = vadd.f32 0.0, %v890
      %v892 = vpop.f32.mrb[0].mxu0
      %v893 = vpop.f32.mrb[0].mxu0
      %v894 = vadd.f32 0.0, %v893
      %v895 = vpop.f32.mrb[0].mxu0
      %896 = vmatprep.mubr.bf16.mxu0 0
      %897 = vmatmul.mubr.bf16.gmra.mrb[0].mxu0 %v738
      %v898 = vpop.f32.mrb[0].mxu0
      %v899 = vadd.f32 0.0, %v898
      %v900 = vpop.f32.mrb[0].mxu0
      %v901 = vpop.f32.mrb[0].mxu0
      %v902 = vadd.f32 0.0, %v901
      %v903 = vpop.f32.mrb[0].mxu0
      %904 = vdwg.mxu0
      %v937 = vunpack.c.l.b16 %v199
      %v938 = vunpack.c.l.b16 %v200
      %v939 = vunpack.c.l.b16 %v202
      %v940 = vunpack.c.l.b16 %v203
      %v941 = vunpack.c.l.b16 %v205
      %v942 = vunpack.c.l.b16 %v206
      %v943 = vunpack.c.l.b16 %v208
      %v944 = vunpack.c.l.b16 %v209
      %v945 = vunpack.c.l.b16 %v211
      %v946 = vunpack.c.l.b16 %v212
      %v947 = vunpack.c.l.b16 %v214
      %v948 = vunpack.c.l.b16 %v215
      %v949 = vunpack.c.l.b16 %v217
      %v950 = vunpack.c.l.b16 %v218
      %v951 = vunpack.c.l.b16 %v220
      %v952 = vunpack.c.l.b16 %v221
      %v953 = vunpack.c.l.b16 %v223
      %v954 = vunpack.c.l.b16 %v224
      %v955 = vunpack.c.l.b16 %v226
      %v956 = vunpack.c.l.b16 %v227
      %v957 = vunpack.c.l.b16 %v229
      %v958 = vunpack.c.l.b16 %v230
      %v959 = vunpack.c.l.b16 %v232
      %v960 = vunpack.c.l.b16 %v233
      %v961 = vunpack.c.l.b16 %v235
      %v962 = vunpack.c.l.b16 %v236
      %v963 = vunpack.c.l.b16 %v238
      %v964 = vunpack.c.l.b16 %v239
      %v965 = vunpack.c.l.b16 %v241
      %v966 = vunpack.c.l.b16 %v242
      %v967 = vunpack.c.l.b16 %v244
      %v968 = vunpack.c.l.b16 %v245
      %v969 = vpack.c.b16 %v938, %v937
      %v970 = vpack.c.b16 %v940, %v939
      %v971 = vpack.c.b16 %v942, %v941
      %v972 = vpack.c.b16 %v944, %v943
      %v973 = vpack.c.b16 %v946, %v945
      %v974 = vpack.c.b16 %v948, %v947
      %v975 = vpack.c.b16 %v950, %v949
      %v976 = vpack.c.b16 %v952, %v951
      %v977 = vpack.c.b16 %v954, %v953
      %v978 = vpack.c.b16 %v956, %v955
      %v979 = vpack.c.b16 %v958, %v957
      %v980 = vpack.c.b16 %v960, %v959
      %v981 = vpack.c.b16 %v962, %v961
      %v982 = vpack.c.b16 %v964, %v963
      %v983 = vpack.c.b16 %v966, %v965
      %v984 = vpack.c.b16 %v968, %v967
      %v986 = vsel %vm691, %v969, 0
      %v989 = vsel %vm691, %v970, 0
      %v992 = vsel %vm691, %v971, 0
      %v995 = vsel %vm691, %v972, 0
      %v998 = vsel %vm691, %v973, 0
      %v1001 = vsel %vm691, %v974, 0
      %v1004 = vsel %vm691, %v975, 0
      %v1007 = vsel %vm691, %v976, 0
      %v1010 = vsel %vm691, %v977, 0
      %v1013 = vsel %vm691, %v978, 0
      %v1016 = vsel %vm691, %v979, 0
      %v1019 = vsel %vm691, %v980, 0
      %v1022 = vsel %vm691, %v981, 0
      %v1025 = vsel %vm691, %v982, 0
      %v1028 = vsel %vm691, %v983, 0
      %v1031 = vsel %vm691, %v984, 0
      %v1034 = vsel %vm740, %v253, 0
      %1036 = vmatprep.subr.bf16.mxu0 0
      %1037 = vmatpush1.bf16.msra.mxu0 %v1034
      %1038 = vmatprep.subr.bf16.mxu0 0
      %1039 = vmatpush1.bf16.msra.mxu0 0
      %1040 = vmatprep.subr.bf16.mxu0 0
      %1041 = vmatpush1.bf16.msra.mxu0 0
      %1042 = vmatprep.subr.bf16.mxu0 0
      %1043 = vmatpush1.bf16.msra.mxu0 0
      %1044 = vmatprep.subr.bf16.mxu0 0
      %1045 = vmatpush1.bf16.msra.mxu0 0
      %1046 = vmatprep.subr.bf16.mxu0 0
      %1047 = vmatpush1.bf16.msra.mxu0 0
      %1048 = vmatprep.subr.bf16.mxu0 0
      %1049 = vmatpush1.bf16.msra.mxu0 0
      %1050 = vmatprep.subr.bf16.mxu0 0
      %1051 = vmatpush1.bf16.msra.mxu0 0
      %1052 = vmatprep.subr.bf16.mxu0 0
      %1053 = vmatpush1.bf16.msra.mxu0 0
      %1054 = vmatprep.subr.bf16.mxu0 0
      %1055 = vmatpush1.bf16.msra.mxu0 0
      %1056 = vmatprep.subr.bf16.mxu0 0
      %1057 = vmatpush1.bf16.msra.mxu0 0
      %1058 = vmatprep.subr.bf16.mxu0 0
      %1059 = vmatpush1.bf16.msra.mxu0 0
      %1060 = vmatprep.subr.bf16.mxu0 0
      %1061 = vmatpush1.bf16.msra.mxu0 0
      %1062 = vmatprep.subr.bf16.mxu0 0
      %1063 = vmatpush1.bf16.msra.mxu0 0
      %1064 = vmatprep.subr.bf16.mxu0 0
      %1065 = vmatpush1.bf16.msra.mxu0 0
      %1066 = vmatprep.subr.bf16.mxu0 0
      %1067 = vmatpush1.bf16.msra.mxu0 0
      %1068 = vmatprep.mubr.bf16.mxu0 0
      %1069 = vmatmul.mubr.bf16.gmra.mrb[0].mxu0 %v986
      %v1070 = vpop.f32.mrb[0].mxu0
      %v1071 = vadd.f32 %v779, %v1070
      %v1072 = vpop.f32.mrb[0].mxu0
      %v1073 = vpop.f32.mrb[0].mxu0
      %v1074 = vadd.f32 %v782, %v1073
      %v1075 = vpop.f32.mrb[0].mxu0
      %1076 = vmatprep.mubr.bf16.mxu0 0
      %1077 = vmatmul.mubr.bf16.gmra.mrb[0].mxu0 %v989
      %v1078 = vpop.f32.mrb[0].mxu0
      %v1079 = vadd.f32 %v787, %v1078
      %v1080 = vpop.f32.mrb[0].mxu0
      %v1081 = vpop.f32.mrb[0].mxu0
      %v1082 = vadd.f32 %v790, %v1081
      %v1083 = vpop.f32.mrb[0].mxu0
      %1084 = vmatprep.mubr.bf16.mxu0 0
      %1085 = vmatmul.mubr.bf16.gmra.mrb[0].mxu0 %v992
      %v1086 = vpop.f32.mrb[0].mxu0
      %v1087 = vadd.f32 %v795, %v1086
      %v1088 = vpop.f32.mrb[0].mxu0
      %v1089 = vpop.f32.mrb[0].mxu0
      %v1090 = vadd.f32 %v798, %v1089
      %v1091 = vpop.f32.mrb[0].mxu0
      %1092 = vmatprep.mubr.bf16.mxu0 0
      %1093 = vmatmul.mubr.bf16.gmra.mrb[0].mxu0 %v995
      %v1094 = vpop.f32.mrb[0].mxu0
      %v1095 = vadd.f32 %v803, %v1094
      %v1096 = vpop.f32.mrb[0].mxu0
      %v1097 = vpop.f32.mrb[0].mxu0
      %v1098 = vadd.f32 %v806, %v1097
      %v1099 = vpop.f32.mrb[0].mxu0
      %1100 = vmatprep.mubr.bf16.mxu0 0
      %1101 = vmatmul.mubr.bf16.gmra.mrb[0].mxu0 %v998
      %v1102 = vpop.f32.mrb[0].mxu0
      %v1103 = vadd.f32 %v811, %v1102
      %v1104 = vpop.f32.mrb[0].mxu0
      %v1105 = vpop.f32.mrb[0].mxu0
      %v1106 = vadd.f32 %v814, %v1105
      %v1107 = vpop.f32.mrb[0].mxu0
      %1108 = vmatprep.mubr.bf16.mxu0 0
      %1109 = vmatmul.mubr.bf16.gmra.mrb[0].mxu0 %v1001
      %v1110 = vpop.f32.mrb[0].mxu0
      %v1111 = vadd.f32 %v819, %v1110
      %v1112 = vpop.f32.mrb[0].mxu0
      %v1113 = vpop.f32.mrb[0].mxu0
      %v1114 = vadd.f32 %v822, %v1113
      %v1115 = vpop.f32.mrb[0].mxu0
      %1116 = vmatprep.mubr.bf16.mxu0 0
      %1117 = vmatmul.mubr.bf16.gmra.mrb[0].mxu0 %v1004
      %v1118 = vpop.f32.mrb[0].mxu0
      %v1119 = vadd.f32 %v827, %v1118
      %v1120 = vpop.f32.mrb[0].mxu0
      %v1121 = vpop.f32.mrb[0].mxu0
      %v1122 = vadd.f32 %v830, %v1121
      %v1123 = vpop.f32.mrb[0].mxu0
      %1124 = vmatprep.mubr.bf16.mxu0 0
      %1125 = vmatmul.mubr.bf16.gmra.mrb[0].mxu0 %v1007
      %v1126 = vpop.f32.mrb[0].mxu0
      %v1127 = vadd.f32 %v835, %v1126
      %v1128 = vpop.f32.mrb[0].mxu0
      %v1129 = vpop.f32.mrb[0].mxu0
      %v1130 = vadd.f32 %v838, %v1129
      %v1131 = vpop.f32.mrb[0].mxu0
      %1132 = vmatprep.mubr.bf16.mxu0 0
      %1133 = vmatmul.mubr.bf16.gmra.mrb[0].mxu0 %v1010
      %v1134 = vpop.f32.mrb[0].mxu0
      %v1135 = vadd.f32 %v843, %v1134
      %v1136 = vpop.f32.mrb[0].mxu0
      %v1137 = vpop.f32.mrb[0].mxu0
      %v1138 = vadd.f32 %v846, %v1137
      %v1139 = vpop.f32.mrb[0].mxu0
      %1140 = vmatprep.mubr.bf16.mxu0 0
      %1141 = vmatmul.mubr.bf16.gmra.mrb[0].mxu0 %v1013
      %v1142 = vpop.f32.mrb[0].mxu0
      %v1143 = vadd.f32 %v851, %v1142
      %v1144 = vpop.f32.mrb[0].mxu0
      %v1145 = vpop.f32.mrb[0].mxu0
      %v1146 = vadd.f32 %v854, %v1145
      %v1147 = vpop.f32.mrb[0].mxu0
      %1148 = vmatprep.mubr.bf16.mxu0 0
      %1149 = vmatmul.mubr.bf16.gmra.mrb[0].mxu0 %v1016
      %v1150 = vpop.f32.mrb[0].mxu0
      %v1151 = vadd.f32 %v859, %v1150
      %v1152 = vpop.f32.mrb[0].mxu0
      %v1153 = vpop.f32.mrb[0].mxu0
      %v1154 = vadd.f32 %v862, %v1153
      %v1155 = vpop.f32.mrb[0].mxu0
      %1156 = vmatprep.mubr.bf16.mxu0 0
      %1157 = vmatmul.mubr.bf16.gmra.mrb[0].mxu0 %v1019
      %v1158 = vpop.f32.mrb[0].mxu0
      %v1159 = vadd.f32 %v867, %v1158
      %v1160 = vpop.f32.mrb[0].mxu0
      %v1161 = vpop.f32.mrb[0].mxu0
      %v1162 = vadd.f32 %v870, %v1161
      %v1163 = vpop.f32.mrb[0].mxu0
      %1164 = vmatprep.mubr.bf16.mxu0 0
      %1165 = vmatmul.mubr.bf16.gmra.mrb[0].mxu0 %v1022
      %v1166 = vpop.f32.mrb[0].mxu0
      %v1167 = vadd.f32 %v875, %v1166
      %v1168 = vpop.f32.mrb[0].mxu0
      %v1169 = vpop.f32.mrb[0].mxu0
      %v1170 = vadd.f32 %v878, %v1169
      %v1171 = vpop.f32.mrb[0].mxu0
      %1172 = vmatprep.mubr.bf16.mxu0 0
      %1173 = vmatmul.mubr.bf16.gmra.mrb[0].mxu0 %v1025
      %v1174 = vpop.f32.mrb[0].mxu0
      %v1175 = vadd.f32 %v883, %v1174
      %v1176 = vpop.f32.mrb[0].mxu0
      %v1177 = vpop.f32.mrb[0].mxu0
      %v1178 = vadd.f32 %v886, %v1177
      %v1179 = vpop.f32.mrb[0].mxu0
      %1180 = vmatprep.mubr.bf16.mxu0 0
      %1181 = vmatmul.mubr.bf16.gmra.mrb[0].mxu0 %v1028
      %v1182 = vpop.f32.mrb[0].mxu0
      %v1183 = vadd.f32 %v891, %v1182
      %v1184 = vpop.f32.mrb[0].mxu0
      %v1185 = vpop.f32.mrb[0].mxu0
      %v1186 = vadd.f32 %v894, %v1185
      %v1187 = vpop.f32.mrb[0].mxu0
      %1188 = vmatprep.mubr.bf16.mxu0 0
      %1189 = vmatmul.mubr.bf16.gmra.mrb[0].mxu0 %v1031
      %v1190 = vpop.f32.mrb[0].mxu0
      %v1191 = vadd.f32 %v899, %v1190
      %v1192 = vpop.f32.mrb[0].mxu0
      %v1193 = vpop.f32.mrb[0].mxu0
      %v1194 = vadd.f32 %v902, %v1193
      %v1195 = vpop.f32.mrb[0].mxu0
      %1196 = vdwg.mxu0
      %vm1213 = vcmask 1042432
      %vm1214 = vcmask 1046532
      %vm1215 = vmor %vm1213, %vm1214
      %v1216 = vrot.slane %v199, 5
      %v1217 = vrot.slane %v1216, 4
      %v1218 = vrot.slane %v200, 5
      %v1219 = vsel %vm1215, %v1217, %v1218
      %v1220 = vrot.slane %v1218, 4
      %v1221 = vrot.slane %v201, 5
      %v1222 = vsel %vm1215, %v1220, %v1221
      %v1223 = vrot.slane %v202, 5
      %v1224 = vrot.slane %v1223, 4
      %v1225 = vrot.slane %v203, 5
      %v1226 = vsel %vm1215, %v1224, %v1225
      %v1227 = vrot.slane %v1225, 4
      %v1228 = vrot.slane %v204, 5
      %v1229 = vsel %vm1215, %v1227, %v1228
      %v1230 = vrot.slane %v205, 5
      %v1231 = vrot.slane %v1230, 4
      %v1232 = vrot.slane %v206, 5
      %v1233 = vsel %vm1215, %v1231, %v1232
      %v1234 = vrot.slane %v1232, 4
      %v1235 = vrot.slane %v207, 5
      %v1236 = vsel %vm1215, %v1234, %v1235
      %v1237 = vrot.slane %v208, 5
      %v1238 = vrot.slane %v1237, 4
      %v1239 = vrot.slane %v209, 5
      %v1240 = vsel %vm1215, %v1238, %v1239
      %v1241 = vrot.slane %v1239, 4
      %v1242 = vrot.slane %v210, 5
      %v1243 = vsel %vm1215, %v1241, %v1242
      %v1244 = vrot.slane %v211, 5
      %v1245 = vrot.slane %v1244, 4
      %v1246 = vrot.slane %v212, 5
      %v1247 = vsel %vm1215, %v1245, %v1246
      %v1248 = vrot.slane %v1246, 4
      %v1249 = vrot.slane %v213, 5
      %v1250 = vsel %vm1215, %v1248, %v1249
      %v1251 = vrot.slane %v214, 5
      %v1252 = vrot.slane %v1251, 4
      %v1253 = vrot.slane %v215, 5
      %v1254 = vsel %vm1215, %v1252, %v1253
      %v1255 = vrot.slane %v1253, 4
      %v1256 = vrot.slane %v216, 5
      %v1257 = vsel %vm1215, %v1255, %v1256
      %v1258 = vrot.slane %v217, 5
      %v1259 = vrot.slane %v1258, 4
      %v1260 = vrot.slane %v218, 5
      %v1261 = vsel %vm1215, %v1259, %v1260
      %v1262 = vrot.slane %v1260, 4
      %v1263 = vrot.slane %v219, 5
      %v1264 = vsel %vm1215, %v1262, %v1263
      %v1265 = vrot.slane %v220, 5
      %v1266 = vrot.slane %v1265, 4
      %v1267 = vrot.slane %v221, 5
      %v1268 = vsel %vm1215, %v1266, %v1267
      %v1269 = vrot.slane %v1267, 4
      %v1270 = vrot.slane %v222, 5
      %v1271 = vsel %vm1215, %v1269, %v1270
      %v1272 = vrot.slane %v223, 5
      %v1273 = vrot.slane %v1272, 4
      %v1274 = vrot.slane %v224, 5
      %v1275 = vsel %vm1215, %v1273, %v1274
      %v1276 = vrot.slane %v1274, 4
      %v1277 = vrot.slane %v225, 5
      %v1278 = vsel %vm1215, %v1276, %v1277
      %v1279 = vrot.slane %v226, 5
      %v1280 = vrot.slane %v1279, 4
      %v1281 = vrot.slane %v227, 5
      %v1282 = vsel %vm1215, %v1280, %v1281
      %v1283 = vrot.slane %v1281, 4
      %v1284 = vrot.slane %v228, 5
      %v1285 = vsel %vm1215, %v1283, %v1284
      %v1286 = vrot.slane %v229, 5
      %v1287 = vrot.slane %v1286, 4
      %v1288 = vrot.slane %v230, 5
      %v1289 = vsel %vm1215, %v1287, %v1288
      %v1290 = vrot.slane %v1288, 4
      %v1291 = vrot.slane %v231, 5
      %v1292 = vsel %vm1215, %v1290, %v1291
      %v1293 = vrot.slane %v232, 5
      %v1294 = vrot.slane %v1293, 4
      %v1295 = vrot.slane %v233, 5
      %v1296 = vsel %vm1215, %v1294, %v1295
      %v1297 = vrot.slane %v1295, 4
      %v1298 = vrot.slane %v234, 5
      %v1299 = vsel %vm1215, %v1297, %v1298
      %v1300 = vrot.slane %v235, 5
      %v1301 = vrot.slane %v1300, 4
      %v1302 = vrot.slane %v236, 5
      %v1303 = vsel %vm1215, %v1301, %v1302
      %v1304 = vrot.slane %v1302, 4
      %v1305 = vrot.slane %v237, 5
      %v1306 = vsel %vm1215, %v1304, %v1305
      %v1307 = vrot.slane %v238, 5
      %v1308 = vrot.slane %v1307, 4
      %v1309 = vrot.slane %v239, 5
      %v1310 = vsel %vm1215, %v1308, %v1309
      %v1311 = vrot.slane %v1309, 4
      %v1312 = vrot.slane %v240, 5
      %v1313 = vsel %vm1215, %v1311, %v1312
      %v1314 = vrot.slane %v241, 5
      %v1315 = vrot.slane %v1314, 4
      %v1316 = vrot.slane %v242, 5
      %v1317 = vsel %vm1215, %v1315, %v1316
      %v1318 = vrot.slane %v1316, 4
      %v1319 = vrot.slane %v243, 5
      %v1320 = vsel %vm1215, %v1318, %v1319
      %v1321 = vrot.slane %v244, 5
      %v1322 = vrot.slane %v1321, 4
      %v1323 = vrot.slane %v245, 5
      %v1324 = vsel %vm1215, %v1322, %v1323
      %v1325 = vrot.slane %v1323, 4
      %v1326 = vrot.slane %v246, 5
      %v1327 = vsel %vm1215, %v1325, %v1326
      %s1328 = scalar_lea.vmem %s1, 8
      %v1329 = vld [vmem:[%s1328] sm:$0xf]
      %v1330 = vunpack.c.l.b16 %v1219
      %v1331 = vunpack.c.l.b16 %v1222
      %v1332 = vunpack.c.l.b16 %v1226
      %v1333 = vunpack.c.l.b16 %v1229
      %v1334 = vunpack.c.l.b16 %v1233
      %v1335 = vunpack.c.l.b16 %v1236
      %v1336 = vunpack.c.l.b16 %v1240
      %v1337 = vunpack.c.l.b16 %v1243
      %v1338 = vunpack.c.l.b16 %v1247
      %v1339 = vunpack.c.l.b16 %v1250
      %v1340 = vunpack.c.l.b16 %v1254
      %v1341 = vunpack.c.l.b16 %v1257
      %v1342 = vunpack.c.l.b16 %v1261
      %v1343 = vunpack.c.l.b16 %v1264
      %v1344 = vunpack.c.l.b16 %v1268
      %v1345 = vunpack.c.l.b16 %v1271
      %v1346 = vunpack.c.l.b16 %v1275
      %v1347 = vunpack.c.l.b16 %v1278
      %v1348 = vunpack.c.l.b16 %v1282
      %v1349 = vunpack.c.l.b16 %v1285
      %v1350 = vunpack.c.l.b16 %v1289
      %v1351 = vunpack.c.l.b16 %v1292
      %v1352 = vunpack.c.l.b16 %v1296
      %v1353 = vunpack.c.l.b16 %v1299
      %v1354 = vunpack.c.l.b16 %v1303
      %v1355 = vunpack.c.l.b16 %v1306
      %v1356 = vunpack.c.l.b16 %v1310
      %v1357 = vunpack.c.l.b16 %v1313
      %v1358 = vunpack.c.l.b16 %v1317
      %v1359 = vunpack.c.l.b16 %v1320
      %v1360 = vunpack.c.l.b16 %v1324
      %v1361 = vunpack.c.l.b16 %v1327
      %v1362 = vpack.c.b16 %v1331, %v1330
      %v1363 = vpack.c.b16 %v1333, %v1332
      %v1364 = vpack.c.b16 %v1335, %v1334
      %v1365 = vpack.c.b16 %v1337, %v1336
      %v1366 = vpack.c.b16 %v1339, %v1338
      %v1367 = vpack.c.b16 %v1341, %v1340
      %v1368 = vpack.c.b16 %v1343, %v1342
      %v1369 = vpack.c.b16 %v1345, %v1344
      %v1370 = vpack.c.b16 %v1347, %v1346
      %v1371 = vpack.c.b16 %v1349, %v1348
      %v1372 = vpack.c.b16 %v1351, %v1350
      %v1373 = vpack.c.b16 %v1353, %v1352
      %v1374 = vpack.c.b16 %v1355, %v1354
      %v1375 = vpack.c.b16 %v1357, %v1356
      %v1376 = vpack.c.b16 %v1359, %v1358
      %v1377 = vpack.c.b16 %v1361, %v1360
      %v1379 = vsel %vm691, %v1362, 0
      %v1382 = vsel %vm691, %v1363, 0
      %v1385 = vsel %vm691, %v1364, 0
      %v1388 = vsel %vm691, %v1365, 0
      %v1391 = vsel %vm691, %v1366, 0
      %v1394 = vsel %vm691, %v1367, 0
      %v1397 = vsel %vm691, %v1368, 0
      %v1400 = vsel %vm691, %v1369, 0
      %v1403 = vsel %vm691, %v1370, 0
      %v1406 = vsel %vm691, %v1371, 0
      %v1409 = vsel %vm691, %v1372, 0
      %v1412 = vsel %vm691, %v1373, 0
      %v1415 = vsel %vm691, %v1374, 0
      %v1418 = vsel %vm691, %v1375, 0
      %v1421 = vsel %vm691, %v1376, 0
      %v1424 = vsel %vm691, %v1377, 0
      %v1427 = vsel %vm740, %v1329, 0
      %1429 = vmatprep.subr.bf16.mxu0 0
      %1430 = vmatpush1.bf16.msra.mxu0 %v1427
      %1431 = vmatprep.subr.bf16.mxu0 0
      %1432 = vmatpush1.bf16.msra.mxu0 0
      %1433 = vmatprep.subr.bf16.mxu0 0
      %1434 = vmatpush1.bf16.msra.mxu0 0
      %1435 = vmatprep.subr.bf16.mxu0 0
      %1436 = vmatpush1.bf16.msra.mxu0 0
      %1437 = vmatprep.subr.bf16.mxu0 0
      %1438 = vmatpush1.bf16.msra.mxu0 0
      %1439 = vmatprep.subr.bf16.mxu0 0
      %1440 = vmatpush1.bf16.msra.mxu0 0
      %1441 = vmatprep.subr.bf16.mxu0 0
      %1442 = vmatpush1.bf16.msra.mxu0 0
      %1443 = vmatprep.subr.bf16.mxu0 0
      %1444 = vmatpush1.bf16.msra.mxu0 0
      %1445 = vmatprep.subr.bf16.mxu0 0
      %1446 = vmatpush1.bf16.msra.mxu0 0
      %1447 = vmatprep.subr.bf16.mxu0 0
      %1448 = vmatpush1.bf16.msra.mxu0 0
      %1449 = vmatprep.subr.bf16.mxu0 0
      %1450 = vmatpush1.bf16.msra.mxu0 0
      %1451 = vmatprep.subr.bf16.mxu0 0
      %1452 = vmatpush1.bf16.msra.mxu0 0
      %1453 = vmatprep.subr.bf16.mxu0 0
      %1454 = vmatpush1.bf16.msra.mxu0 0
      %1455 = vmatprep.subr.bf16.mxu0 0
      %1456 = vmatpush1.bf16.msra.mxu0 0
      %1457 = vmatprep.subr.bf16.mxu0 0
      %1458 = vmatpush1.bf16.msra.mxu0 0
      %1459 = vmatprep.subr.bf16.mxu0 0
      %1460 = vmatpush1.bf16.msra.mxu0 0
      %1461 = vmatprep.mubr.bf16.mxu0 0
      %1462 = vmatmul.mubr.bf16.gmra.mrb[0].mxu0 %v1379
      %v1463 = vpop.f32.mrb[0].mxu0
      %v1464 = vadd.f32 0.0, %v1463
      %v1465 = vpop.f32.mrb[0].mxu0
      %v1466 = vpop.f32.mrb[0].mxu0
      %v1467 = vadd.f32 0.0, %v1466
      %v1468 = vpop.f32.mrb[0].mxu0
      %1469 = vmatprep.mubr.bf16.mxu0 0
      %1470 = vmatmul.mubr.bf16.gmra.mrb[0].mxu0 %v1382
      %v1471 = vpop.f32.mrb[0].mxu0
      %v1472 = vadd.f32 0.0, %v1471
      %v1473 = vpop.f32.mrb[0].mxu0
      %v1474 = vpop.f32.mrb[0].mxu0
      %v1475 = vadd.f32 0.0, %v1474
      %v1476 = vpop.f32.mrb[0].mxu0
      %1477 = vmatprep.mubr.bf16.mxu0 0
      %1478 = vmatmul.mubr.bf16.gmra.mrb[0].mxu0 %v1385
      %v1479 = vpop.f32.mrb[0].mxu0
      %v1480 = vadd.f32 0.0, %v1479
      %v1481 = vpop.f32.mrb[0].mxu0
      %v1482 = vpop.f32.mrb[0].mxu0
      %v1483 = vadd.f32 0.0, %v1482
      %v1484 = vpop.f32.mrb[0].mxu0
      %1485 = vmatprep.mubr.bf16.mxu0 0
      %1486 = vmatmul.mubr.bf16.gmra.mrb[0].mxu0 %v1388
      %v1487 = vpop.f32.mrb[0].mxu0
      %v1488 = vadd.f32 0.0, %v1487
      %v1489 = vpop.f32.mrb[0].mxu0
      %v1490 = vpop.f32.mrb[0].mxu0
      %v1491 = vadd.f32 0.0, %v1490
      %v1492 = vpop.f32.mrb[0].mxu0
      %1493 = vmatprep.mubr.bf16.mxu0 0
      %1494 = vmatmul.mubr.bf16.gmra.mrb[0].mxu0 %v1391
      %v1495 = vpop.f32.mrb[0].mxu0
      %v1496 = vadd.f32 0.0, %v1495
      %v1497 = vpop.f32.mrb[0].mxu0
      %v1498 = vpop.f32.mrb[0].mxu0
      %v1499 = vadd.f32 0.0, %v1498
      %v1500 = vpop.f32.mrb[0].mxu0
      %1501 = vmatprep.mubr.bf16.mxu0 0
      %1502 = vmatmul.mubr.bf16.gmra.mrb[0].mxu0 %v1394
      %v1503 = vpop.f32.mrb[0].mxu0
      %v1504 = vadd.f32 0.0, %v1503
      %v1505 = vpop.f32.mrb[0].mxu0
      %v1506 = vpop.f32.mrb[0].mxu0
      %v1507 = vadd.f32 0.0, %v1506
      %v1508 = vpop.f32.mrb[0].mxu0
      %1509 = vmatprep.mubr.bf16.mxu0 0
      %1510 = vmatmul.mubr.bf16.gmra.mrb[0].mxu0 %v1397
      %v1511 = vpop.f32.mrb[0].mxu0
      %v1512 = vadd.f32 0.0, %v1511
      %v1513 = vpop.f32.mrb[0].mxu0
      %v1514 = vpop.f32.mrb[0].mxu0
      %v1515 = vadd.f32 0.0, %v1514
      %v1516 = vpop.f32.mrb[0].mxu0
      %1517 = vmatprep.mubr.bf16.mxu0 0
      %1518 = vmatmul.mubr.bf16.gmra.mrb[0].mxu0 %v1400
      %v1519 = vpop.f32.mrb[0].mxu0
      %v1520 = vadd.f32 0.0, %v1519
      %v1521 = vpop.f32.mrb[0].mxu0
      %v1522 = vpop.f32.mrb[0].mxu0
      %v1523 = vadd.f32 0.0, %v1522
      %v1524 = vpop.f32.mrb[0].mxu0
      %1525 = vmatprep.mubr.bf16.mxu0 0
      %1526 = vmatmul.mubr.bf16.gmra.mrb[0].mxu0 %v1403
      %v1527 = vpop.f32.mrb[0].mxu0
      %v1528 = vadd.f32 0.0, %v1527
      %v1529 = vpop.f32.mrb[0].mxu0
      %v1530 = vpop.f32.mrb[0].mxu0
      %v1531 = vadd.f32 0.0, %v1530
      %v1532 = vpop.f32.mrb[0].mxu0
      %1533 = vmatprep.mubr.bf16.mxu0 0
      %1534 = vmatmul.mubr.bf16.gmra.mrb[0].mxu0 %v1406
      %v1535 = vpop.f32.mrb[0].mxu0
      %v1536 = vadd.f32 0.0, %v1535
      %v1537 = vpop.f32.mrb[0].mxu0
      %v1538 = vpop.f32.mrb[0].mxu0
      %v1539 = vadd.f32 0.0, %v1538
      %v1540 = vpop.f32.mrb[0].mxu0
      %1541 = vmatprep.mubr.bf16.mxu0 0
      %1542 = vmatmul.mubr.bf16.gmra.mrb[0].mxu0 %v1409
      %v1543 = vpop.f32.mrb[0].mxu0
      %v1544 = vadd.f32 0.0, %v1543
      %v1545 = vpop.f32.mrb[0].mxu0
      %v1546 = vpop.f32.mrb[0].mxu0
      %v1547 = vadd.f32 0.0, %v1546
      %v1548 = vpop.f32.mrb[0].mxu0
      %1549 = vmatprep.mubr.bf16.mxu0 0
      %1550 = vmatmul.mubr.bf16.gmra.mrb[0].mxu0 %v1412
      %v1551 = vpop.f32.mrb[0].mxu0
      %v1552 = vadd.f32 0.0, %v1551
      %v1553 = vpop.f32.mrb[0].mxu0
      %v1554 = vpop.f32.mrb[0].mxu0
      %v1555 = vadd.f32 0.0, %v1554
      %v1556 = vpop.f32.mrb[0].mxu0
      %1557 = vmatprep.mubr.bf16.mxu0 0
      %1558 = vmatmul.mubr.bf16.gmra.mrb[0].mxu0 %v1415
      %v1559 = vpop.f32.mrb[0].mxu0
      %v1560 = vadd.f32 0.0, %v1559
      %v1561 = vpop.f32.mrb[0].mxu0
      %v1562 = vpop.f32.mrb[0].mxu0
      %v1563 = vadd.f32 0.0, %v1562
      %v1564 = vpop.f32.mrb[0].mxu0
      %1565 = vmatprep.mubr.bf16.mxu0 0
      %1566 = vmatmul.mubr.bf16.gmra.mrb[0].mxu0 %v1418
      %v1567 = vpop.f32.mrb[0].mxu0
      %v1568 = vadd.f32 0.0, %v1567
      %v1569 = vpop.f32.mrb[0].mxu0
      %v1570 = vpop.f32.mrb[0].mxu0
      %v1571 = vadd.f32 0.0, %v1570
      %v1572 = vpop.f32.mrb[0].mxu0
      %1573 = vmatprep.mubr.bf16.mxu0 0
      %1574 = vmatmul.mubr.bf16.gmra.mrb[0].mxu0 %v1421
      %v1575 = vpop.f32.mrb[0].mxu0
      %v1576 = vadd.f32 0.0, %v1575
      %v1577 = vpop.f32.mrb[0].mxu0
      %v1578 = vpop.f32.mrb[0].mxu0
      %v1579 = vadd.f32 0.0, %v1578
      %v1580 = vpop.f32.mrb[0].mxu0
      %1581 = vmatprep.mubr.bf16.mxu0 0
      %1582 = vmatmul.mubr.bf16.gmra.mrb[0].mxu0 %v1424
      %v1583 = vpop.f32.mrb[0].mxu0
      %v1584 = vadd.f32 0.0, %v1583
      %v1585 = vpop.f32.mrb[0].mxu0
      %v1586 = vpop.f32.mrb[0].mxu0
      %v1587 = vadd.f32 0.0, %v1586
      %v1588 = vpop.f32.mrb[0].mxu0
      %1589 = vdwg.mxu0
      %v1590 = vadd.f32 %v1071, %v1464
      %v1591 = vadd.f32 %v1074, %v1467
      %v1592 = vadd.f32 %v1079, %v1472
      %v1593 = vadd.f32 %v1082, %v1475
      %v1594 = vadd.f32 %v1087, %v1480
      %v1595 = vadd.f32 %v1090, %v1483
      %v1596 = vadd.f32 %v1095, %v1488
      %v1597 = vadd.f32 %v1098, %v1491
      %v1598 = vadd.f32 %v1103, %v1496
      %v1599 = vadd.f32 %v1106, %v1499
      %v1600 = vadd.f32 %v1111, %v1504
      %v1601 = vadd.f32 %v1114, %v1507
      %v1602 = vadd.f32 %v1119, %v1512
      %v1603 = vadd.f32 %v1122, %v1515
      %v1604 = vadd.f32 %v1127, %v1520
      %v1605 = vadd.f32 %v1130, %v1523
      %v1606 = vadd.f32 %v1135, %v1528
      %v1607 = vadd.f32 %v1138, %v1531
      %v1608 = vadd.f32 %v1143, %v1536
      %v1609 = vadd.f32 %v1146, %v1539
      %v1610 = vadd.f32 %v1151, %v1544
      %v1611 = vadd.f32 %v1154, %v1547
      %v1612 = vadd.f32 %v1159, %v1552
      %v1613 = vadd.f32 %v1162, %v1555
      %v1614 = vadd.f32 %v1167, %v1560
      %v1615 = vadd.f32 %v1170, %v1563
      %v1616 = vadd.f32 %v1175, %v1568
      %v1617 = vadd.f32 %v1178, %v1571
      %v1618 = vadd.f32 %v1183, %v1576
      %v1619 = vadd.f32 %v1186, %v1579
      %v1620 = vadd.f32 %v1191, %v1584
      %v1621 = vadd.f32 %v1194, %v1587
      %s1622 = scalar_lea.vmem %s1, 12
      %v1623 = vld [vmem:[%s1622] sm:$0xf]
      %v1626 = vunpack.c.l.b16 %v247
      %v1627 = vunpack.c.l.b16 %v248
      %v1628 = vpack.c.b16 %v1627, %v1626
      %v1630 = vsel %vm691, %v1628, 0
      %v1633 = vsel %vm740, %v1623, 0
      %1635 = vmatprep.subr.bf16.mxu0 0
      %1636 = vmatpush1.bf16.msra.mxu0 %v1633
      %1637 = vmatprep.subr.bf16.mxu0 0
      %1638 = vmatpush1.bf16.msra.mxu0 0
      %1639 = vmatprep.subr.bf16.mxu0 0
      %1640 = vmatpush1.bf16.msra.mxu0 0
      %1641 = vmatprep.subr.bf16.mxu0 0
      %1642 = vmatpush1.bf16.msra.mxu0 0
      %1643 = vmatprep.subr.bf16.mxu0 0
      %1644 = vmatpush1.bf16.msra.mxu0 0
      %1645 = vmatprep.subr.bf16.mxu0 0
      %1646 = vmatpush1.bf16.msra.mxu0 0
      %1647 = vmatprep.subr.bf16.mxu0 0
      %1648 = vmatpush1.bf16.msra.mxu0 0
      %1649 = vmatprep.subr.bf16.mxu0 0
      %1650 = vmatpush1.bf16.msra.mxu0 0
      %1651 = vmatprep.subr.bf16.mxu0 0
      %1652 = vmatpush1.bf16.msra.mxu0 0
      %1653 = vmatprep.subr.bf16.mxu0 0
      %1654 = vmatpush1.bf16.msra.mxu0 0
      %1655 = vmatprep.subr.bf16.mxu0 0
      %1656 = vmatpush1.bf16.msra.mxu0 0
      %1657 = vmatprep.subr.bf16.mxu0 0
      %1658 = vmatpush1.bf16.msra.mxu0 0
      %1659 = vmatprep.subr.bf16.mxu0 0
      %1660 = vmatpush1.bf16.msra.mxu0 0
      %1661 = vmatprep.subr.bf16.mxu0 0
      %1662 = vmatpush1.bf16.msra.mxu0 0
      %1663 = vmatprep.subr.bf16.mxu0 0
      %1664 = vmatpush1.bf16.msra.mxu0 0
      %1665 = vmatprep.subr.bf16.mxu0 0
      %1666 = vmatpush1.bf16.msra.mxu0 0
      %1667 = vmatprep.mubr.bf16.mxu0 0
      %1668 = vmatmul.mubr.bf16.gmra.mrb[0].mxu0 %v989
      %v1669 = vpop.f32.mrb[0].mxu0
      %v1670 = vadd.f32 0.0, %v1669
      %v1671 = vpop.f32.mrb[0].mxu0
      %v1672 = vpop.f32.mrb[0].mxu0
      %v1673 = vadd.f32 0.0, %v1672
      %v1674 = vpop.f32.mrb[0].mxu0
      %1675 = vmatprep.mubr.bf16.mxu0 0
      %1676 = vmatmul.mubr.bf16.gmra.mrb[0].mxu0 %v992
      %v1677 = vpop.f32.mrb[0].mxu0
      %v1678 = vadd.f32 0.0, %v1677
      %v1679 = vpop.f32.mrb[0].mxu0
      %v1680 = vpop.f32.mrb[0].mxu0
      %v1681 = vadd.f32 0.0, %v1680
      %v1682 = vpop.f32.mrb[0].mxu0
      %1683 = vmatprep.mubr.bf16.mxu0 0
      %1684 = vmatmul.mubr.bf16.gmra.mrb[0].mxu0 %v995
      %v1685 = vpop.f32.mrb[0].mxu0
      %v1686 = vadd.f32 0.0, %v1685
      %v1687 = vpop.f32.mrb[0].mxu0
      %v1688 = vpop.f32.mrb[0].mxu0
      %v1689 = vadd.f32 0.0, %v1688
      %v1690 = vpop.f32.mrb[0].mxu0
      %1691 = vmatprep.mubr.bf16.mxu0 0
      %1692 = vmatmul.mubr.bf16.gmra.mrb[0].mxu0 %v998
      %v1693 = vpop.f32.mrb[0].mxu0
      %v1694 = vadd.f32 0.0, %v1693
      %v1695 = vpop.f32.mrb[0].mxu0
      %v1696 = vpop.f32.mrb[0].mxu0
      %v1697 = vadd.f32 0.0, %v1696
      %v1698 = vpop.f32.mrb[0].mxu0
      %1699 = vmatprep.mubr.bf16.mxu0 0
      %1700 = vmatmul.mubr.bf16.gmra.mrb[0].mxu0 %v1001
      %v1701 = vpop.f32.mrb[0].mxu0
      %v1702 = vadd.f32 0.0, %v1701
      %v1703 = vpop.f32.mrb[0].mxu0
      %v1704 = vpop.f32.mrb[0].mxu0
      %v1705 = vadd.f32 0.0, %v1704
      %v1706 = vpop.f32.mrb[0].mxu0
      %1707 = vmatprep.mubr.bf16.mxu0 0
      %1708 = vmatmul.mubr.bf16.gmra.mrb[0].mxu0 %v1004
      %v1709 = vpop.f32.mrb[0].mxu0
      %v1710 = vadd.f32 0.0, %v1709
      %v1711 = vpop.f32.mrb[0].mxu0
      %v1712 = vpop.f32.mrb[0].mxu0
      %v1713 = vadd.f32 0.0, %v1712
      %v1714 = vpop.f32.mrb[0].mxu0
      %1715 = vmatprep.mubr.bf16.mxu0 0
      %1716 = vmatmul.mubr.bf16.gmra.mrb[0].mxu0 %v1007
      %v1717 = vpop.f32.mrb[0].mxu0
      %v1718 = vadd.f32 0.0, %v1717
      %v1719 = vpop.f32.mrb[0].mxu0
      %v1720 = vpop.f32.mrb[0].mxu0
      %v1721 = vadd.f32 0.0, %v1720
      %v1722 = vpop.f32.mrb[0].mxu0
      %1723 = vmatprep.mubr.bf16.mxu0 0
      %1724 = vmatmul.mubr.bf16.gmra.mrb[0].mxu0 %v1010
      %v1725 = vpop.f32.mrb[0].mxu0
      %v1726 = vadd.f32 0.0, %v1725
      %v1727 = vpop.f32.mrb[0].mxu0
      %v1728 = vpop.f32.mrb[0].mxu0
      %v1729 = vadd.f32 0.0, %v1728
      %v1730 = vpop.f32.mrb[0].mxu0
      %1731 = vmatprep.mubr.bf16.mxu0 0
      %1732 = vmatmul.mubr.bf16.gmra.mrb[0].mxu0 %v1013
      %v1733 = vpop.f32.mrb[0].mxu0
      %v1734 = vadd.f32 0.0, %v1733
      %v1735 = vpop.f32.mrb[0].mxu0
      %v1736 = vpop.f32.mrb[0].mxu0
      %v1737 = vadd.f32 0.0, %v1736
      %v1738 = vpop.f32.mrb[0].mxu0
      %1739 = vmatprep.mubr.bf16.mxu0 0
      %1740 = vmatmul.mubr.bf16.gmra.mrb[0].mxu0 %v1016
      %v1741 = vpop.f32.mrb[0].mxu0
      %v1742 = vadd.f32 0.0, %v1741
      %v1743 = vpop.f32.mrb[0].mxu0
      %v1744 = vpop.f32.mrb[0].mxu0
      %v1745 = vadd.f32 0.0, %v1744
      %v1746 = vpop.f32.mrb[0].mxu0
      %1747 = vmatprep.mubr.bf16.mxu0 0
      %1748 = vmatmul.mubr.bf16.gmra.mrb[0].mxu0 %v1019
      %v1749 = vpop.f32.mrb[0].mxu0
      %v1750 = vadd.f32 0.0, %v1749
      %v1751 = vpop.f32.mrb[0].mxu0
      %v1752 = vpop.f32.mrb[0].mxu0
      %v1753 = vadd.f32 0.0, %v1752
      %v1754 = vpop.f32.mrb[0].mxu0
      %1755 = vmatprep.mubr.bf16.mxu0 0
      %1756 = vmatmul.mubr.bf16.gmra.mrb[0].mxu0 %v1022
      %v1757 = vpop.f32.mrb[0].mxu0
      %v1758 = vadd.f32 0.0, %v1757
      %v1759 = vpop.f32.mrb[0].mxu0
      %v1760 = vpop.f32.mrb[0].mxu0
      %v1761 = vadd.f32 0.0, %v1760
      %v1762 = vpop.f32.mrb[0].mxu0
      %1763 = vmatprep.mubr.bf16.mxu0 0
      %1764 = vmatmul.mubr.bf16.gmra.mrb[0].mxu0 %v1025
      %v1765 = vpop.f32.mrb[0].mxu0
      %v1766 = vadd.f32 0.0, %v1765
      %v1767 = vpop.f32.mrb[0].mxu0
      %v1768 = vpop.f32.mrb[0].mxu0
      %v1769 = vadd.f32 0.0, %v1768
      %v1770 = vpop.f32.mrb[0].mxu0
      %1771 = vmatprep.mubr.bf16.mxu0 0
      %1772 = vmatmul.mubr.bf16.gmra.mrb[0].mxu0 %v1028
      %v1773 = vpop.f32.mrb[0].mxu0
      %v1774 = vadd.f32 0.0, %v1773
      %v1775 = vpop.f32.mrb[0].mxu0
      %v1776 = vpop.f32.mrb[0].mxu0
      %v1777 = vadd.f32 0.0, %v1776
      %v1778 = vpop.f32.mrb[0].mxu0
      %1779 = vmatprep.mubr.bf16.mxu0 0
      %1780 = vmatmul.mubr.bf16.gmra.mrb[0].mxu0 %v1031
      %v1781 = vpop.f32.mrb[0].mxu0
      %v1782 = vadd.f32 0.0, %v1781
      %v1783 = vpop.f32.mrb[0].mxu0
      %v1784 = vpop.f32.mrb[0].mxu0
      %v1785 = vadd.f32 0.0, %v1784
      %v1786 = vpop.f32.mrb[0].mxu0
      %1787 = vmatprep.mubr.bf16.mxu0 0
      %1788 = vmatmul.mubr.bf16.gmra.mrb[0].mxu0 %v1630
      %v1789 = vpop.f32.mrb[0].mxu0
      %v1790 = vadd.f32 0.0, %v1789
      %v1791 = vpop.f32.mrb[0].mxu0
      %v1792 = vpop.f32.mrb[0].mxu0
      %v1793 = vadd.f32 0.0, %v1792
      %v1794 = vpop.f32.mrb[0].mxu0
      %1795 = vdwg.mxu0
      %v1796 = vadd.f32 %v1590, %v1670
      %v1797 = vadd.f32 %v1591, %v1673
      %v1798 = vadd.f32 %v1592, %v1678
      %v1799 = vadd.f32 %v1593, %v1681
      %v1800 = vadd.f32 %v1594, %v1686
      %v1801 = vadd.f32 %v1595, %v1689
      %v1802 = vadd.f32 %v1596, %v1694
      %v1803 = vadd.f32 %v1597, %v1697
      %v1804 = vadd.f32 %v1598, %v1702
      %v1805 = vadd.f32 %v1599, %v1705
      %v1806 = vadd.f32 %v1600, %v1710
      %v1807 = vadd.f32 %v1601, %v1713
      %v1808 = vadd.f32 %v1602, %v1718
      %v1809 = vadd.f32 %v1603, %v1721
      %v1810 = vadd.f32 %v1604, %v1726
      %v1811 = vadd.f32 %v1605, %v1729
      %v1812 = vadd.f32 %v1606, %v1734
      %v1813 = vadd.f32 %v1607, %v1737
      %v1814 = vadd.f32 %v1608, %v1742
      %v1815 = vadd.f32 %v1609, %v1745
      %v1816 = vadd.f32 %v1610, %v1750
      %v1817 = vadd.f32 %v1611, %v1753
      %v1818 = vadd.f32 %v1612, %v1758
      %v1819 = vadd.f32 %v1613, %v1761
      %v1820 = vadd.f32 %v1614, %v1766
      %v1821 = vadd.f32 %v1615, %v1769
      %v1822 = vadd.f32 %v1616, %v1774
      %v1823 = vadd.f32 %v1617, %v1777
      %v1824 = vadd.f32 %v1618, %v1782
      %v1825 = vadd.f32 %v1619, %v1785
      %v1826 = vadd.f32 %v1620, %v1790
      %v1827 = vadd.f32 %v1621, %v1793
      %v1829 = vshrl.u32 %v247, 16
      %v1831 = vrot.slane %v1829, 4
      %v1832 = vshll.u32 %v247, 16
      %v1834 = vrot.slane %v1832, 5
      %v1835 = vor.u32 %v1831, %v1834
      %v1836 = vrot.slane %v1835, 4
      %v1838 = vshll.u32 %v248, 16
      %v1840 = vrot.slane %v1838, 5
      %v1841 = vsel %vm256, %v1836, %v1840
      %v1842 = vshrl.u32 %v248, 16
      %v1844 = vrot.slane %v1842, 4
      %v1845 = vor.u32 %v1844, %v1840
      %v1846 = vrot.slane %v1845, 4
      %v1848 = vshll.u32 %v249, 16
      %v1850 = vrot.slane %v1848, 5
      %v1851 = vsel %vm256, %v1846, %v1850
      %s1852 = scalar_lea.vmem %s1, 16
      %v1853 = vld [vmem:[%s1852] sm:$0xf]
      %v1854 = vunpack.c.l.b16 %v1841
      %v1855 = vunpack.c.l.b16 %v1851
      %v1856 = vpack.c.b16 %v1855, %v1854
      %v1858 = vsel %vm691, %v1856, 0
      %v1861 = vsel %vm740, %v1853, 0
      %1863 = vmatprep.subr.bf16.mxu0 0
      %1864 = vmatpush1.bf16.msra.mxu0 %v1861
      %1865 = vmatprep.subr.bf16.mxu0 0
      %1866 = vmatpush1.bf16.msra.mxu0 0
      %1867 = vmatprep.subr.bf16.mxu0 0
      %1868 = vmatpush1.bf16.msra.mxu0 0
      %1869 = vmatprep.subr.bf16.mxu0 0
      %1870 = vmatpush1.bf16.msra.mxu0 0
      %1871 = vmatprep.subr.bf16.mxu0 0
      %1872 = vmatpush1.bf16.msra.mxu0 0
      %1873 = vmatprep.subr.bf16.mxu0 0
      %1874 = vmatpush1.bf16.msra.mxu0 0
      %1875 = vmatprep.subr.bf16.mxu0 0
      %1876 = vmatpush1.bf16.msra.mxu0 0
      %1877 = vmatprep.subr.bf16.mxu0 0
      %1878 = vmatpush1.bf16.msra.mxu0 0
      %1879 = vmatprep.subr.bf16.mxu0 0
      %1880 = vmatpush1.bf16.msra.mxu0 0
      %1881 = vmatprep.subr.bf16.mxu0 0
      %1882 = vmatpush1.bf16.msra.mxu0 0
      %1883 = vmatprep.subr.bf16.mxu0 0
      %1884 = vmatpush1.bf16.msra.mxu0 0
      %1885 = vmatprep.subr.bf16.mxu0 0
      %1886 = vmatpush1.bf16.msra.mxu0 0
      %1887 = vmatprep.subr.bf16.mxu0 0
      %1888 = vmatpush1.bf16.msra.mxu0 0
      %1889 = vmatprep.subr.bf16.mxu0 0
      %1890 = vmatpush1.bf16.msra.mxu0 0
      %1891 = vmatprep.subr.bf16.mxu0 0
      %1892 = vmatpush1.bf16.msra.mxu0 0
      %1893 = vmatprep.subr.bf16.mxu0 0
      %1894 = vmatpush1.bf16.msra.mxu0 0
      %1895 = vmatprep.mubr.bf16.mxu0 0
      %1896 = vmatmul.mubr.bf16.gmra.mrb[0].mxu0 %v696
      %v1897 = vpop.f32.mrb[0].mxu0
      %v1898 = vadd.f32 0.0, %v1897
      %v1899 = vpop.f32.mrb[0].mxu0
      %v1900 = vpop.f32.mrb[0].mxu0
      %v1901 = vadd.f32 0.0, %v1900
      %v1902 = vpop.f32.mrb[0].mxu0
      %1903 = vmatprep.mubr.bf16.mxu0 0
      %1904 = vmatmul.mubr.bf16.gmra.mrb[0].mxu0 %v699
      %v1905 = vpop.f32.mrb[0].mxu0
      %v1906 = vadd.f32 0.0, %v1905
      %v1907 = vpop.f32.mrb[0].mxu0
      %v1908 = vpop.f32.mrb[0].mxu0
      %v1909 = vadd.f32 0.0, %v1908
      %v1910 = vpop.f32.mrb[0].mxu0
      %1911 = vmatprep.mubr.bf16.mxu0 0
      %1912 = vmatmul.mubr.bf16.gmra.mrb[0].mxu0 %v702
      %v1913 = vpop.f32.mrb[0].mxu0
      %v1914 = vadd.f32 0.0, %v1913
      %v1915 = vpop.f32.mrb[0].mxu0
      %v1916 = vpop.f32.mrb[0].mxu0
      %v1917 = vadd.f32 0.0, %v1916
      %v1918 = vpop.f32.mrb[0].mxu0
      %1919 = vmatprep.mubr.bf16.mxu0 0
      %1920 = vmatmul.mubr.bf16.gmra.mrb[0].mxu0 %v705
      %v1921 = vpop.f32.mrb[0].mxu0
      %v1922 = vadd.f32 0.0, %v1921
      %v1923 = vpop.f32.mrb[0].mxu0
      %v1924 = vpop.f32.mrb[0].mxu0
      %v1925 = vadd.f32 0.0, %v1924
      %v1926 = vpop.f32.mrb[0].mxu0
      %1927 = vmatprep.mubr.bf16.mxu0 0
      %1928 = vmatmul.mubr.bf16.gmra.mrb[0].mxu0 %v708
      %v1929 = vpop.f32.mrb[0].mxu0
      %v1930 = vadd.f32 0.0, %v1929
      %v1931 = vpop.f32.mrb[0].mxu0
      %v1932 = vpop.f32.mrb[0].mxu0
      %v1933 = vadd.f32 0.0, %v1932
      %v1934 = vpop.f32.mrb[0].mxu0
      %1935 = vmatprep.mubr.bf16.mxu0 0
      %1936 = vmatmul.mubr.bf16.gmra.mrb[0].mxu0 %v711
      %v1937 = vpop.f32.mrb[0].mxu0
      %v1938 = vadd.f32 0.0, %v1937
      %v1939 = vpop.f32.mrb[0].mxu0
      %v1940 = vpop.f32.mrb[0].mxu0
      %v1941 = vadd.f32 0.0, %v1940
      %v1942 = vpop.f32.mrb[0].mxu0
      %1943 = vmatprep.mubr.bf16.mxu0 0
      %1944 = vmatmul.mubr.bf16.gmra.mrb[0].mxu0 %v714
      %v1945 = vpop.f32.mrb[0].mxu0
      %v1946 = vadd.f32 0.0, %v1945
      %v1947 = vpop.f32.mrb[0].mxu0
      %v1948 = vpop.f32.mrb[0].mxu0
      %v1949 = vadd.f32 0.0, %v1948
      %v1950 = vpop.f32.mrb[0].mxu0
      %1951 = vmatprep.mubr.bf16.mxu0 0
      %1952 = vmatmul.mubr.bf16.gmra.mrb[0].mxu0 %v717
      %v1953 = vpop.f32.mrb[0].mxu0
      %v1954 = vadd.f32 0.0, %v1953
      %v1955 = vpop.f32.mrb[0].mxu0
      %v1956 = vpop.f32.mrb[0].mxu0
      %v1957 = vadd.f32 0.0, %v1956
      %v1958 = vpop.f32.mrb[0].mxu0
      %1959 = vmatprep.mubr.bf16.mxu0 0
      %1960 = vmatmul.mubr.bf16.gmra.mrb[0].mxu0 %v720
      %v1961 = vpop.f32.mrb[0].mxu0
      %v1962 = vadd.f32 0.0, %v1961
      %v1963 = vpop.f32.mrb[0].mxu0
      %v1964 = vpop.f32.mrb[0].mxu0
      %v1965 = vadd.f32 0.0, %v1964
      %v1966 = vpop.f32.mrb[0].mxu0
      %1967 = vmatprep.mubr.bf16.mxu0 0
      %1968 = vmatmul.mubr.bf16.gmra.mrb[0].mxu0 %v723
      %v1969 = vpop.f32.mrb[0].mxu0
      %v1970 = vadd.f32 0.0, %v1969
      %v1971 = vpop.f32.mrb[0].mxu0
      %v1972 = vpop.f32.mrb[0].mxu0
      %v1973 = vadd.f32 0.0, %v1972
      %v1974 = vpop.f32.mrb[0].mxu0
      %1975 = vmatprep.mubr.bf16.mxu0 0
      %1976 = vmatmul.mubr.bf16.gmra.mrb[0].mxu0 %v726
      %v1977 = vpop.f32.mrb[0].mxu0
      %v1978 = vadd.f32 0.0, %v1977
      %v1979 = vpop.f32.mrb[0].mxu0
      %v1980 = vpop.f32.mrb[0].mxu0
      %v1981 = vadd.f32 0.0, %v1980
      %v1982 = vpop.f32.mrb[0].mxu0
      %1983 = vmatprep.mubr.bf16.mxu0 0
      %1984 = vmatmul.mubr.bf16.gmra.mrb[0].mxu0 %v729
      %v1985 = vpop.f32.mrb[0].mxu0
      %v1986 = vadd.f32 0.0, %v1985
      %v1987 = vpop.f32.mrb[0].mxu0
      %v1988 = vpop.f32.mrb[0].mxu0
      %v1989 = vadd.f32 0.0, %v1988
      %v1990 = vpop.f32.mrb[0].mxu0
      %1991 = vmatprep.mubr.bf16.mxu0 0
      %1992 = vmatmul.mubr.bf16.gmra.mrb[0].mxu0 %v732
      %v1993 = vpop.f32.mrb[0].mxu0
      %v1994 = vadd.f32 0.0, %v1993
      %v1995 = vpop.f32.mrb[0].mxu0
      %v1996 = vpop.f32.mrb[0].mxu0
      %v1997 = vadd.f32 0.0, %v1996
      %v1998 = vpop.f32.mrb[0].mxu0
      %1999 = vmatprep.mubr.bf16.mxu0 0
      %2000 = vmatmul.mubr.bf16.gmra.mrb[0].mxu0 %v735
      %v2001 = vpop.f32.mrb[0].mxu0
      %v2002 = vadd.f32 0.0, %v2001
      %v2003 = vpop.f32.mrb[0].mxu0
      %v2004 = vpop.f32.mrb[0].mxu0
      %v2005 = vadd.f32 0.0, %v2004
      %v2006 = vpop.f32.mrb[0].mxu0
      %2007 = vmatprep.mubr.bf16.mxu0 0
      %2008 = vmatmul.mubr.bf16.gmra.mrb[0].mxu0 %v738
      %v2009 = vpop.f32.mrb[0].mxu0
      %v2010 = vadd.f32 0.0, %v2009
      %v2011 = vpop.f32.mrb[0].mxu0
      %v2012 = vpop.f32.mrb[0].mxu0
      %v2013 = vadd.f32 0.0, %v2012
      %v2014 = vpop.f32.mrb[0].mxu0
      %2015 = vmatprep.mubr.bf16.mxu0 0
      %2016 = vmatmul.mubr.bf16.gmra.mrb[0].mxu0 %v1858
      %v2017 = vpop.f32.mrb[0].mxu0
      %v2018 = vadd.f32 0.0, %v2017
      %v2019 = vpop.f32.mrb[0].mxu0
      %v2020 = vpop.f32.mrb[0].mxu0
      %v2021 = vadd.f32 0.0, %v2020
      %v2022 = vpop.f32.mrb[0].mxu0
      %2023 = vdwg.mxu0
      %v2024 = vadd.f32 %v1796, %v1898
      %v2025 = vadd.f32 %v1797, %v1901
      %v2026 = vadd.f32 %v1798, %v1906
      %v2027 = vadd.f32 %v1799, %v1909
      %v2028 = vadd.f32 %v1800, %v1914
      %v2029 = vadd.f32 %v1801, %v1917
      %v2030 = vadd.f32 %v1802, %v1922
      %v2031 = vadd.f32 %v1803, %v1925
      %v2032 = vadd.f32 %v1804, %v1930
      %v2033 = vadd.f32 %v1805, %v1933
      %v2034 = vadd.f32 %v1806, %v1938
      %v2035 = vadd.f32 %v1807, %v1941
      %v2036 = vadd.f32 %v1808, %v1946
      %v2037 = vadd.f32 %v1809, %v1949
      %v2038 = vadd.f32 %v1810, %v1954
      %v2039 = vadd.f32 %v1811, %v1957
      %v2040 = vadd.f32 %v1812, %v1962
      %v2041 = vadd.f32 %v1813, %v1965
      %v2042 = vadd.f32 %v1814, %v1970
      %v2043 = vadd.f32 %v1815, %v1973
      %v2044 = vadd.f32 %v1816, %v1978
      %v2045 = vadd.f32 %v1817, %v1981
      %v2046 = vadd.f32 %v1818, %v1986
      %v2047 = vadd.f32 %v1819, %v1989
      %v2048 = vadd.f32 %v1820, %v1994
      %v2049 = vadd.f32 %v1821, %v1997
      %v2050 = vadd.f32 %v1822, %v2002
      %v2051 = vadd.f32 %v1823, %v2005
      %v2052 = vadd.f32 %v1824, %v2010
      %v2053 = vadd.f32 %v1825, %v2013
      %v2054 = vadd.f32 %v1826, %v2018
      %v2055 = vadd.f32 %v1827, %v2021
      %v2057 = vrot.slane %v247, 5
      %v2058 = vrot.slane %v2057, 4
      %v2059 = vrot.slane %v248, 5
      %v2060 = vsel %vm1215, %v2058, %v2059
      %v2061 = vrot.slane %v2059, 4
      %v2062 = vrot.slane %v249, 5
      %v2063 = vsel %vm1215, %v2061, %v2062
      %s2064 = scalar_lea.vmem %s1, 20
      %v2065 = vld [vmem:[%s2064] sm:$0xf]
      %v2066 = vunpack.c.l.b16 %v2060
      %v2067 = vunpack.c.l.b16 %v2063
      %v2068 = vpack.c.b16 %v2067, %v2066
      %v2070 = vsel %vm691, %v2068, 0
      %v2073 = vsel %vm740, %v2065, 0
      %2075 = vmatprep.subr.bf16.mxu0 0
      %2076 = vmatpush1.bf16.msra.mxu0 %v2073
      %2077 = vmatprep.subr.bf16.mxu0 0
      %2078 = vmatpush1.bf16.msra.mxu0 0
      %2079 = vmatprep.subr.bf16.mxu0 0
      %2080 = vmatpush1.bf16.msra.mxu0 0
      %2081 = vmatprep.subr.bf16.mxu0 0
      %2082 = vmatpush1.bf16.msra.mxu0 0
      %2083 = vmatprep.subr.bf16.mxu0 0
      %2084 = vmatpush1.bf16.msra.mxu0 0
      %2085 = vmatprep.subr.bf16.mxu0 0
      %2086 = vmatpush1.bf16.msra.mxu0 0
      %2087 = vmatprep.subr.bf16.mxu0 0
      %2088 = vmatpush1.bf16.msra.mxu0 0
      %2089 = vmatprep.subr.bf16.mxu0 0
      %2090 = vmatpush1.bf16.msra.mxu0 0
      %2091 = vmatprep.subr.bf16.mxu0 0
      %2092 = vmatpush1.bf16.msra.mxu0 0
      %2093 = vmatprep.subr.bf16.mxu0 0
      %2094 = vmatpush1.bf16.msra.mxu0 0
      %2095 = vmatprep.subr.bf16.mxu0 0
      %2096 = vmatpush1.bf16.msra.mxu0 0
      %2097 = vmatprep.subr.bf16.mxu0 0
      %2098 = vmatpush1.bf16.msra.mxu0 0
      %2099 = vmatprep.subr.bf16.mxu0 0
      %2100 = vmatpush1.bf16.msra.mxu0 0
      %2101 = vmatprep.subr.bf16.mxu0 0
      %2102 = vmatpush1.bf16.msra.mxu0 0
      %2103 = vmatprep.subr.bf16.mxu0 0
      %2104 = vmatpush1.bf16.msra.mxu0 0
      %2105 = vmatprep.subr.bf16.mxu0 0
      %2106 = vmatpush1.bf16.msra.mxu0 0
      %2107 = vmatprep.mubr.bf16.mxu0 0
      %2108 = vmatmul.mubr.bf16.gmra.mrb[0].mxu0 %v1382
      %v2109 = vpop.f32.mrb[0].mxu0
      %v2110 = vadd.f32 0.0, %v2109
      %v2111 = vpop.f32.mrb[0].mxu0
      %v2112 = vpop.f32.mrb[0].mxu0
      %v2113 = vadd.f32 0.0, %v2112
      %v2114 = vpop.f32.mrb[0].mxu0
      %2115 = vmatprep.mubr.bf16.mxu0 0
      %2116 = vmatmul.mubr.bf16.gmra.mrb[0].mxu0 %v1385
      %v2117 = vpop.f32.mrb[0].mxu0
      %v2118 = vadd.f32 0.0, %v2117
      %v2119 = vpop.f32.mrb[0].mxu0
      %v2120 = vpop.f32.mrb[0].mxu0
      %v2121 = vadd.f32 0.0, %v2120
      %v2122 = vpop.f32.mrb[0].mxu0
      %2123 = vmatprep.mubr.bf16.mxu0 0
      %2124 = vmatmul.mubr.bf16.gmra.mrb[0].mxu0 %v1388
      %v2125 = vpop.f32.mrb[0].mxu0
      %v2126 = vadd.f32 0.0, %v2125
      %v2127 = vpop.f32.mrb[0].mxu0
      %v2128 = vpop.f32.mrb[0].mxu0
      %v2129 = vadd.f32 0.0, %v2128
      %v2130 = vpop.f32.mrb[0].mxu0
      %2131 = vmatprep.mubr.bf16.mxu0 0
      %2132 = vmatmul.mubr.bf16.gmra.mrb[0].mxu0 %v1391
      %v2133 = vpop.f32.mrb[0].mxu0
      %v2134 = vadd.f32 0.0, %v2133
      %v2135 = vpop.f32.mrb[0].mxu0
      %v2136 = vpop.f32.mrb[0].mxu0
      %v2137 = vadd.f32 0.0, %v2136
      %v2138 = vpop.f32.mrb[0].mxu0
      %2139 = vmatprep.mubr.bf16.mxu0 0
      %2140 = vmatmul.mubr.bf16.gmra.mrb[0].mxu0 %v1394
      %v2141 = vpop.f32.mrb[0].mxu0
      %v2142 = vadd.f32 0.0, %v2141
      %v2143 = vpop.f32.mrb[0].mxu0
      %v2144 = vpop.f32.mrb[0].mxu0
      %v2145 = vadd.f32 0.0, %v2144
      %v2146 = vpop.f32.mrb[0].mxu0
      %2147 = vmatprep.mubr.bf16.mxu0 0
      %2148 = vmatmul.mubr.bf16.gmra.mrb[0].mxu0 %v1397
      %v2149 = vpop.f32.mrb[0].mxu0
      %v2150 = vadd.f32 0.0, %v2149
      %v2151 = vpop.f32.mrb[0].mxu0
      %v2152 = vpop.f32.mrb[0].mxu0
      %v2153 = vadd.f32 0.0, %v2152
      %v2154 = vpop.f32.mrb[0].mxu0
      %2155 = vmatprep.mubr.bf16.mxu0 0
      %2156 = vmatmul.mubr.bf16.gmra.mrb[0].mxu0 %v1400
      %v2157 = vpop.f32.mrb[0].mxu0
      %v2158 = vadd.f32 0.0, %v2157
      %v2159 = vpop.f32.mrb[0].mxu0
      %v2160 = vpop.f32.mrb[0].mxu0
      %v2161 = vadd.f32 0.0, %v2160
      %v2162 = vpop.f32.mrb[0].mxu0
      %2163 = vmatprep.mubr.bf16.mxu0 0
      %2164 = vmatmul.mubr.bf16.gmra.mrb[0].mxu0 %v1403
      %v2165 = vpop.f32.mrb[0].mxu0
      %v2166 = vadd.f32 0.0, %v2165
      %v2167 = vpop.f32.mrb[0].mxu0
      %v2168 = vpop.f32.mrb[0].mxu0
      %v2169 = vadd.f32 0.0, %v2168
      %v2170 = vpop.f32.mrb[0].mxu0
      %2171 = vmatprep.mubr.bf16.mxu0 0
      %2172 = vmatmul.mubr.bf16.gmra.mrb[0].mxu0 %v1406
      %v2173 = vpop.f32.mrb[0].mxu0
      %v2174 = vadd.f32 0.0, %v2173
      %v2175 = vpop.f32.mrb[0].mxu0
      %v2176 = vpop.f32.mrb[0].mxu0
      %v2177 = vadd.f32 0.0, %v2176
      %v2178 = vpop.f32.mrb[0].mxu0
      %2179 = vmatprep.mubr.bf16.mxu0 0
      %2180 = vmatmul.mubr.bf16.gmra.mrb[0].mxu0 %v1409
      %v2181 = vpop.f32.mrb[0].mxu0
      %v2182 = vadd.f32 0.0, %v2181
      %v2183 = vpop.f32.mrb[0].mxu0
      %v2184 = vpop.f32.mrb[0].mxu0
      %v2185 = vadd.f32 0.0, %v2184
      %v2186 = vpop.f32.mrb[0].mxu0
      %2187 = vmatprep.mubr.bf16.mxu0 0
      %2188 = vmatmul.mubr.bf16.gmra.mrb[0].mxu0 %v1412
      %v2189 = vpop.f32.mrb[0].mxu0
      %v2190 = vadd.f32 0.0, %v2189
      %v2191 = vpop.f32.mrb[0].mxu0
      %v2192 = vpop.f32.mrb[0].mxu0
      %v2193 = vadd.f32 0.0, %v2192
      %v2194 = vpop.f32.mrb[0].mxu0
      %2195 = vmatprep.mubr.bf16.mxu0 0
      %2196 = vmatmul.mubr.bf16.gmra.mrb[0].mxu0 %v1415
      %v2197 = vpop.f32.mrb[0].mxu0
      %v2198 = vadd.f32 0.0, %v2197
      %v2199 = vpop.f32.mrb[0].mxu0
      %v2200 = vpop.f32.mrb[0].mxu0
      %v2201 = vadd.f32 0.0, %v2200
      %v2202 = vpop.f32.mrb[0].mxu0
      %2203 = vmatprep.mubr.bf16.mxu0 0
      %2204 = vmatmul.mubr.bf16.gmra.mrb[0].mxu0 %v1418
      %v2205 = vpop.f32.mrb[0].mxu0
      %v2206 = vadd.f32 0.0, %v2205
      %v2207 = vpop.f32.mrb[0].mxu0
      %v2208 = vpop.f32.mrb[0].mxu0
      %v2209 = vadd.f32 0.0, %v2208
      %v2210 = vpop.f32.mrb[0].mxu0
      %2211 = vmatprep.mubr.bf16.mxu0 0
      %2212 = vmatmul.mubr.bf16.gmra.mrb[0].mxu0 %v1421
      %v2213 = vpop.f32.mrb[0].mxu0
      %v2214 = vadd.f32 0.0, %v2213
      %v2215 = vpop.f32.mrb[0].mxu0
      %v2216 = vpop.f32.mrb[0].mxu0
      %v2217 = vadd.f32 0.0, %v2216
      %v2218 = vpop.f32.mrb[0].mxu0
      %2219 = vmatprep.mubr.bf16.mxu0 0
      %2220 = vmatmul.mubr.bf16.gmra.mrb[0].mxu0 %v1424
      %v2221 = vpop.f32.mrb[0].mxu0
      %v2222 = vadd.f32 0.0, %v2221
      %v2223 = vpop.f32.mrb[0].mxu0
      %v2224 = vpop.f32.mrb[0].mxu0
      %v2225 = vadd.f32 0.0, %v2224
      %v2226 = vpop.f32.mrb[0].mxu0
      %2227 = vmatprep.mubr.bf16.mxu0 0
      %2228 = vmatmul.mubr.bf16.gmra.mrb[0].mxu0 %v2070
      %v2229 = vpop.f32.mrb[0].mxu0
      %v2230 = vadd.f32 0.0, %v2229
      %v2231 = vpop.f32.mrb[0].mxu0
      %v2232 = vpop.f32.mrb[0].mxu0
      %v2233 = vadd.f32 0.0, %v2232
      %v2234 = vpop.f32.mrb[0].mxu0
      %2235 = vdwg.mxu0
      %v2236 = vadd.f32 %v2024, %v2110
      %v2237 = vadd.f32 %v2025, %v2113
      %v2238 = vadd.f32 %v2026, %v2118
      %v2239 = vadd.f32 %v2027, %v2121
      %v2240 = vadd.f32 %v2028, %v2126
      %v2241 = vadd.f32 %v2029, %v2129
      %v2242 = vadd.f32 %v2030, %v2134
      %v2243 = vadd.f32 %v2031, %v2137
      %v2244 = vadd.f32 %v2032, %v2142
      %v2245 = vadd.f32 %v2033, %v2145
      %v2246 = vadd.f32 %v2034, %v2150
      %v2247 = vadd.f32 %v2035, %v2153
      %v2248 = vadd.f32 %v2036, %v2158
      %v2249 = vadd.f32 %v2037, %v2161
      %v2250 = vadd.f32 %v2038, %v2166
      %v2251 = vadd.f32 %v2039, %v2169
      %v2252 = vadd.f32 %v2040, %v2174
      %v2253 = vadd.f32 %v2041, %v2177
      %v2254 = vadd.f32 %v2042, %v2182
      %v2255 = vadd.f32 %v2043, %v2185
      %v2256 = vadd.f32 %v2044, %v2190
      %v2257 = vadd.f32 %v2045, %v2193
      %v2258 = vadd.f32 %v2046, %v2198
      %v2259 = vadd.f32 %v2047, %v2201
      %v2260 = vadd.f32 %v2048, %v2206
      %v2261 = vadd.f32 %v2049, %v2209
      %v2262 = vadd.f32 %v2050, %v2214
      %v2263 = vadd.f32 %v2051, %v2217
      %v2264 = vadd.f32 %v2052, %v2222
      %v2265 = vadd.f32 %v2053, %v2225
      %v2266 = vadd.f32 %v2054, %v2230
      %v2267 = vadd.f32 %v2055, %v2233
      %s2268 = scalar_lea.vmem %s1, 24
      %v2269 = vld [vmem:[%s2268] sm:$0xf]
      %v2272 = vunpack.c.l.b16 %v250
      %v2273 = vunpack.c.l.b16 %v251
      %v2274 = vpack.c.b16 %v2273, %v2272
      %v2276 = vsel %vm691, %v2274, 0
      %v2279 = vsel %vm740, %v2269, 0
      %2281 = vmatprep.subr.bf16.mxu0 0
      %2282 = vmatpush1.bf16.msra.mxu0 %v2279
      %2283 = vmatprep.subr.bf16.mxu0 0
      %2284 = vmatpush1.bf16.msra.mxu0 0
      %2285 = vmatprep.subr.bf16.mxu0 0
      %2286 = vmatpush1.bf16.msra.mxu0 0
      %2287 = vmatprep.subr.bf16.mxu0 0
      %2288 = vmatpush1.bf16.msra.mxu0 0
      %2289 = vmatprep.subr.bf16.mxu0 0
      %2290 = vmatpush1.bf16.msra.mxu0 0
      %2291 = vmatprep.subr.bf16.mxu0 0
      %2292 = vmatpush1.bf16.msra.mxu0 0
      %2293 = vmatprep.subr.bf16.mxu0 0
      %2294 = vmatpush1.bf16.msra.mxu0 0
      %2295 = vmatprep.subr.bf16.mxu0 0
      %2296 = vmatpush1.bf16.msra.mxu0 0
      %2297 = vmatprep.subr.bf16.mxu0 0
      %2298 = vmatpush1.bf16.msra.mxu0 0
      %2299 = vmatprep.subr.bf16.mxu0 0
      %2300 = vmatpush1.bf16.msra.mxu0 0
      %2301 = vmatprep.subr.bf16.mxu0 0
      %2302 = vmatpush1.bf16.msra.mxu0 0
      %2303 = vmatprep.subr.bf16.mxu0 0
      %2304 = vmatpush1.bf16.msra.mxu0 0
      %2305 = vmatprep.subr.bf16.mxu0 0
      %2306 = vmatpush1.bf16.msra.mxu0 0
      %2307 = vmatprep.subr.bf16.mxu0 0
      %2308 = vmatpush1.bf16.msra.mxu0 0
      %2309 = vmatprep.subr.bf16.mxu0 0
      %2310 = vmatpush1.bf16.msra.mxu0 0
      %2311 = vmatprep.subr.bf16.mxu0 0
      %2312 = vmatpush1.bf16.msra.mxu0 0
      %2313 = vmatprep.mubr.bf16.mxu0 0
      %2314 = vmatmul.mubr.bf16.gmra.mrb[0].mxu0 %v992
      %v2315 = vpop.f32.mrb[0].mxu0
      %v2316 = vadd.f32 0.0, %v2315
      %v2317 = vpop.f32.mrb[0].mxu0
      %v2318 = vpop.f32.mrb[0].mxu0
      %v2319 = vadd.f32 0.0, %v2318
      %v2320 = vpop.f32.mrb[0].mxu0
      %2321 = vmatprep.mubr.bf16.mxu0 0
      %2322 = vmatmul.mubr.bf16.gmra.mrb[0].mxu0 %v995
      %v2323 = vpop.f32.mrb[0].mxu0
      %v2324 = vadd.f32 0.0, %v2323
      %v2325 = vpop.f32.mrb[0].mxu0
      %v2326 = vpop.f32.mrb[0].mxu0
      %v2327 = vadd.f32 0.0, %v2326
      %v2328 = vpop.f32.mrb[0].mxu0
      %2329 = vmatprep.mubr.bf16.mxu0 0
      %2330 = vmatmul.mubr.bf16.gmra.mrb[0].mxu0 %v998
      %v2331 = vpop.f32.mrb[0].mxu0
      %v2332 = vadd.f32 0.0, %v2331
      %v2333 = vpop.f32.mrb[0].mxu0
      %v2334 = vpop.f32.mrb[0].mxu0
      %v2335 = vadd.f32 0.0, %v2334
      %v2336 = vpop.f32.mrb[0].mxu0
      %2337 = vmatprep.mubr.bf16.mxu0 0
      %2338 = vmatmul.mubr.bf16.gmra.mrb[0].mxu0 %v1001
      %v2339 = vpop.f32.mrb[0].mxu0
      %v2340 = vadd.f32 0.0, %v2339
      %v2341 = vpop.f32.mrb[0].mxu0
      %v2342 = vpop.f32.mrb[0].mxu0
      %v2343 = vadd.f32 0.0, %v2342
      %v2344 = vpop.f32.mrb[0].mxu0
      %2345 = vmatprep.mubr.bf16.mxu0 0
      %2346 = vmatmul.mubr.bf16.gmra.mrb[0].mxu0 %v1004
      %v2347 = vpop.f32.mrb[0].mxu0
      %v2348 = vadd.f32 0.0, %v2347
      %v2349 = vpop.f32.mrb[0].mxu0
      %v2350 = vpop.f32.mrb[0].mxu0
      %v2351 = vadd.f32 0.0, %v2350
      %v2352 = vpop.f32.mrb[0].mxu0
      %2353 = vmatprep.mubr.bf16.mxu0 0
      %2354 = vmatmul.mubr.bf16.gmra.mrb[0].mxu0 %v1007
      %v2355 = vpop.f32.mrb[0].mxu0
      %v2356 = vadd.f32 0.0, %v2355
      %v2357 = vpop.f32.mrb[0].mxu0
      %v2358 = vpop.f32.mrb[0].mxu0
      %v2359 = vadd.f32 0.0, %v2358
      %v2360 = vpop.f32.mrb[0].mxu0
      %2361 = vmatprep.mubr.bf16.mxu0 0
      %2362 = vmatmul.mubr.bf16.gmra.mrb[0].mxu0 %v1010
      %v2363 = vpop.f32.mrb[0].mxu0
      %v2364 = vadd.f32 0.0, %v2363
      %v2365 = vpop.f32.mrb[0].mxu0
      %v2366 = vpop.f32.mrb[0].mxu0
      %v2367 = vadd.f32 0.0, %v2366
      %v2368 = vpop.f32.mrb[0].mxu0
      %2369 = vmatprep.mubr.bf16.mxu0 0
      %2370 = vmatmul.mubr.bf16.gmra.mrb[0].mxu0 %v1013
      %v2371 = vpop.f32.mrb[0].mxu0
      %v2372 = vadd.f32 0.0, %v2371
      %v2373 = vpop.f32.mrb[0].mxu0
      %v2374 = vpop.f32.mrb[0].mxu0
      %v2375 = vadd.f32 0.0, %v2374
      %v2376 = vpop.f32.mrb[0].mxu0
      %2377 = vmatprep.mubr.bf16.mxu0 0
      %2378 = vmatmul.mubr.bf16.gmra.mrb[0].mxu0 %v1016
      %v2379 = vpop.f32.mrb[0].mxu0
      %v2380 = vadd.f32 0.0, %v2379
      %v2381 = vpop.f32.mrb[0].mxu0
      %v2382 = vpop.f32.mrb[0].mxu0
      %v2383 = vadd.f32 0.0, %v2382
      %v2384 = vpop.f32.mrb[0].mxu0
      %2385 = vmatprep.mubr.bf16.mxu0 0
      %2386 = vmatmul.mubr.bf16.gmra.mrb[0].mxu0 %v1019
      %v2387 = vpop.f32.mrb[0].mxu0
      %v2388 = vadd.f32 0.0, %v2387
      %v2389 = vpop.f32.mrb[0].mxu0
      %v2390 = vpop.f32.mrb[0].mxu0
      %v2391 = vadd.f32 0.0, %v2390
      %v2392 = vpop.f32.mrb[0].mxu0
      %2393 = vmatprep.mubr.bf16.mxu0 0
      %2394 = vmatmul.mubr.bf16.gmra.mrb[0].mxu0 %v1022
      %v2395 = vpop.f32.mrb[0].mxu0
      %v2396 = vadd.f32 0.0, %v2395
      %v2397 = vpop.f32.mrb[0].mxu0
      %v2398 = vpop.f32.mrb[0].mxu0
      %v2399 = vadd.f32 0.0, %v2398
      %v2400 = vpop.f32.mrb[0].mxu0
      %2401 = vmatprep.mubr.bf16.mxu0 0
      %2402 = vmatmul.mubr.bf16.gmra.mrb[0].mxu0 %v1025
      %v2403 = vpop.f32.mrb[0].mxu0
      %v2404 = vadd.f32 0.0, %v2403
      %v2405 = vpop.f32.mrb[0].mxu0
      %v2406 = vpop.f32.mrb[0].mxu0
      %v2407 = vadd.f32 0.0, %v2406
      %v2408 = vpop.f32.mrb[0].mxu0
      %2409 = vmatprep.mubr.bf16.mxu0 0
      %2410 = vmatmul.mubr.bf16.gmra.mrb[0].mxu0 %v1028
      %v2411 = vpop.f32.mrb[0].mxu0
      %v2412 = vadd.f32 0.0, %v2411
      %v2413 = vpop.f32.mrb[0].mxu0
      %v2414 = vpop.f32.mrb[0].mxu0
      %v2415 = vadd.f32 0.0, %v2414
      %v2416 = vpop.f32.mrb[0].mxu0
      %2417 = vmatprep.mubr.bf16.mxu0 0
      %2418 = vmatmul.mubr.bf16.gmra.mrb[0].mxu0 %v1031
      %v2419 = vpop.f32.mrb[0].mxu0
      %v2420 = vadd.f32 0.0, %v2419
      %v2421 = vpop.f32.mrb[0].mxu0
      %v2422 = vpop.f32.mrb[0].mxu0
      %v2423 = vadd.f32 0.0, %v2422
      %v2424 = vpop.f32.mrb[0].mxu0
      %2425 = vmatprep.mubr.bf16.mxu0 0
      %2426 = vmatmul.mubr.bf16.gmra.mrb[0].mxu0 %v1630
      %v2427 = vpop.f32.mrb[0].mxu0
      %v2428 = vadd.f32 0.0, %v2427
      %v2429 = vpop.f32.mrb[0].mxu0
      %v2430 = vpop.f32.mrb[0].mxu0
      %v2431 = vadd.f32 0.0, %v2430
      %v2432 = vpop.f32.mrb[0].mxu0
      %2433 = vmatprep.mubr.bf16.mxu0 0
      %2434 = vmatmul.mubr.bf16.gmra.mrb[0].mxu0 %v2276
      %v2435 = vpop.f32.mrb[0].mxu0
      %v2436 = vadd.f32 0.0, %v2435
      %v2437 = vpop.f32.mrb[0].mxu0
      %v2438 = vpop.f32.mrb[0].mxu0
      %v2439 = vadd.f32 0.0, %v2438
      %v2440 = vpop.f32.mrb[0].mxu0
      %2441 = vdwg.mxu0
      %v2442 = vadd.f32 %v2236, %v2316
      %v2443 = vadd.f32 %v2237, %v2319
      %v2444 = vadd.f32 %v2238, %v2324
      %v2445 = vadd.f32 %v2239, %v2327
      %v2446 = vadd.f32 %v2240, %v2332
      %v2447 = vadd.f32 %v2241, %v2335
      %v2448 = vadd.f32 %v2242, %v2340
      %v2449 = vadd.f32 %v2243, %v2343
      %v2450 = vadd.f32 %v2244, %v2348
      %v2451 = vadd.f32 %v2245, %v2351
      %v2452 = vadd.f32 %v2246, %v2356
      %v2453 = vadd.f32 %v2247, %v2359
      %v2454 = vadd.f32 %v2248, %v2364
      %v2455 = vadd.f32 %v2249, %v2367
      %v2456 = vadd.f32 %v2250, %v2372
      %v2457 = vadd.f32 %v2251, %v2375
      %v2458 = vadd.f32 %v2252, %v2380
      %v2459 = vadd.f32 %v2253, %v2383
      %v2460 = vadd.f32 %v2254, %v2388
      %v2461 = vadd.f32 %v2255, %v2391
      %v2462 = vadd.f32 %v2256, %v2396
      %v2463 = vadd.f32 %v2257, %v2399
      %v2464 = vadd.f32 %v2258, %v2404
      %v2465 = vadd.f32 %v2259, %v2407
      %v2466 = vadd.f32 %v2260, %v2412
      %v2467 = vadd.f32 %v2261, %v2415
      %v2468 = vadd.f32 %v2262, %v2420
      %v2469 = vadd.f32 %v2263, %v2423
      %v2470 = vadd.f32 %v2264, %v2428
      %v2471 = vadd.f32 %v2265, %v2431
      %v2472 = vadd.f32 %v2266, %v2436
      %v2473 = vadd.f32 %v2267, %v2439
      %v2475 = vshrl.u32 %v250, 16
      %v2477 = vrot.slane %v2475, 4
      %v2478 = vshll.u32 %v250, 16
      %v2480 = vrot.slane %v2478, 5
      %v2481 = vor.u32 %v2477, %v2480
      %v2482 = vrot.slane %v2481, 4
      %v2484 = vshll.u32 %v251, 16
      %v2486 = vrot.slane %v2484, 5
      %v2487 = vsel %vm256, %v2482, %v2486
      %v2488 = vshrl.u32 %v251, 16
      %v2490 = vrot.slane %v2488, 4
      %v2491 = vor.u32 %v2490, %v2486
      %v2492 = vrot.slane %v2491, 4
      %v2494 = vshll.u32 %v252, 16
      %v2496 = vrot.slane %v2494, 5
      %v2497 = vsel %vm256, %v2492, %v2496
      %s2498 = scalar_lea.vmem %s1, 28
      %v2499 = vld [vmem:[%s2498] sm:$0xf]
      %v2500 = vunpack.c.l.b16 %v2487
      %v2501 = vunpack.c.l.b16 %v2497
      %v2502 = vpack.c.b16 %v2501, %v2500
      %v2504 = vsel %vm691, %v2502, 0
      %v2507 = vsel %vm740, %v2499, 0
      %2509 = vmatprep.subr.bf16.mxu0 0
      %2510 = vmatpush1.bf16.msra.mxu0 %v2507
      %2511 = vmatprep.subr.bf16.mxu0 0
      %2512 = vmatpush1.bf16.msra.mxu0 0
      %2513 = vmatprep.subr.bf16.mxu0 0
      %2514 = vmatpush1.bf16.msra.mxu0 0
      %2515 = vmatprep.subr.bf16.mxu0 0
      %2516 = vmatpush1.bf16.msra.mxu0 0
      %2517 = vmatprep.subr.bf16.mxu0 0
      %2518 = vmatpush1.bf16.msra.mxu0 0
      %2519 = vmatprep.subr.bf16.mxu0 0
      %2520 = vmatpush1.bf16.msra.mxu0 0
      %2521 = vmatprep.subr.bf16.mxu0 0
      %2522 = vmatpush1.bf16.msra.mxu0 0
      %2523 = vmatprep.subr.bf16.mxu0 0
      %2524 = vmatpush1.bf16.msra.mxu0 0
      %2525 = vmatprep.subr.bf16.mxu0 0
      %2526 = vmatpush1.bf16.msra.mxu0 0
      %2527 = vmatprep.subr.bf16.mxu0 0
      %2528 = vmatpush1.bf16.msra.mxu0 0
      %2529 = vmatprep.subr.bf16.mxu0 0
      %2530 = vmatpush1.bf16.msra.mxu0 0
      %2531 = vmatprep.subr.bf16.mxu0 0
      %2532 = vmatpush1.bf16.msra.mxu0 0
      %2533 = vmatprep.subr.bf16.mxu0 0
      %2534 = vmatpush1.bf16.msra.mxu0 0
      %2535 = vmatprep.subr.bf16.mxu0 0
      %2536 = vmatpush1.bf16.msra.mxu0 0
      %2537 = vmatprep.subr.bf16.mxu0 0
      %2538 = vmatpush1.bf16.msra.mxu0 0
      %2539 = vmatprep.subr.bf16.mxu0 0
      %2540 = vmatpush1.bf16.msra.mxu0 0
      %2541 = vmatprep.mubr.bf16.mxu0 0
      %2542 = vmatmul.mubr.bf16.gmra.mrb[0].mxu0 %v699
      %v2543 = vpop.f32.mrb[0].mxu0
      %v2544 = vadd.f32 0.0, %v2543
      %v2545 = vpop.f32.mrb[0].mxu0
      %v2546 = vpop.f32.mrb[0].mxu0
      %v2547 = vadd.f32 0.0, %v2546
      %v2548 = vpop.f32.mrb[0].mxu0
      %2549 = vmatprep.mubr.bf16.mxu0 0
      %2550 = vmatmul.mubr.bf16.gmra.mrb[0].mxu0 %v702
      %v2551 = vpop.f32.mrb[0].mxu0
      %v2552 = vadd.f32 0.0, %v2551
      %v2553 = vpop.f32.mrb[0].mxu0
      %v2554 = vpop.f32.mrb[0].mxu0
      %v2555 = vadd.f32 0.0, %v2554
      %v2556 = vpop.f32.mrb[0].mxu0
      %2557 = vmatprep.mubr.bf16.mxu0 0
      %2558 = vmatmul.mubr.bf16.gmra.mrb[0].mxu0 %v705
      %v2559 = vpop.f32.mrb[0].mxu0
      %v2560 = vadd.f32 0.0, %v2559
      %v2561 = vpop.f32.mrb[0].mxu0
      %v2562 = vpop.f32.mrb[0].mxu0
      %v2563 = vadd.f32 0.0, %v2562
      %v2564 = vpop.f32.mrb[0].mxu0
      %2565 = vmatprep.mubr.bf16.mxu0 0
      %2566 = vmatmul.mubr.bf16.gmra.mrb[0].mxu0 %v708
      %v2567 = vpop.f32.mrb[0].mxu0
      %v2568 = vadd.f32 0.0, %v2567
      %v2569 = vpop.f32.mrb[0].mxu0
      %v2570 = vpop.f32.mrb[0].mxu0
      %v2571 = vadd.f32 0.0, %v2570
      %v2572 = vpop.f32.mrb[0].mxu0
      %2573 = vmatprep.mubr.bf16.mxu0 0
      %2574 = vmatmul.mubr.bf16.gmra.mrb[0].mxu0 %v711
      %v2575 = vpop.f32.mrb[0].mxu0
      %v2576 = vadd.f32 0.0, %v2575
      %v2577 = vpop.f32.mrb[0].mxu0
      %v2578 = vpop.f32.mrb[0].mxu0
      %v2579 = vadd.f32 0.0, %v2578
      %v2580 = vpop.f32.mrb[0].mxu0
      %2581 = vmatprep.mubr.bf16.mxu0 0
      %2582 = vmatmul.mubr.bf16.gmra.mrb[0].mxu0 %v714
      %v2583 = vpop.f32.mrb[0].mxu0
      %v2584 = vadd.f32 0.0, %v2583
      %v2585 = vpop.f32.mrb[0].mxu0
      %v2586 = vpop.f32.mrb[0].mxu0
      %v2587 = vadd.f32 0.0, %v2586
      %v2588 = vpop.f32.mrb[0].mxu0
      %2589 = vmatprep.mubr.bf16.mxu0 0
      %2590 = vmatmul.mubr.bf16.gmra.mrb[0].mxu0 %v717
      %v2591 = vpop.f32.mrb[0].mxu0
      %v2592 = vadd.f32 0.0, %v2591
      %v2593 = vpop.f32.mrb[0].mxu0
      %v2594 = vpop.f32.mrb[0].mxu0
      %v2595 = vadd.f32 0.0, %v2594
      %v2596 = vpop.f32.mrb[0].mxu0
      %2597 = vmatprep.mubr.bf16.mxu0 0
      %2598 = vmatmul.mubr.bf16.gmra.mrb[0].mxu0 %v720
      %v2599 = vpop.f32.mrb[0].mxu0
      %v2600 = vadd.f32 0.0, %v2599
      %v2601 = vpop.f32.mrb[0].mxu0
      %v2602 = vpop.f32.mrb[0].mxu0
      %v2603 = vadd.f32 0.0, %v2602
      %v2604 = vpop.f32.mrb[0].mxu0
      %2605 = vmatprep.mubr.bf16.mxu0 0
      %2606 = vmatmul.mubr.bf16.gmra.mrb[0].mxu0 %v723
      %v2607 = vpop.f32.mrb[0].mxu0
      %v2608 = vadd.f32 0.0, %v2607
      %v2609 = vpop.f32.mrb[0].mxu0
      %v2610 = vpop.f32.mrb[0].mxu0
      %v2611 = vadd.f32 0.0, %v2610
      %v2612 = vpop.f32.mrb[0].mxu0
      %2613 = vmatprep.mubr.bf16.mxu0 0
      %2614 = vmatmul.mubr.bf16.gmra.mrb[0].mxu0 %v726
      %v2615 = vpop.f32.mrb[0].mxu0
      %v2616 = vadd.f32 0.0, %v2615
      %v2617 = vpop.f32.mrb[0].mxu0
      %v2618 = vpop.f32.mrb[0].mxu0
      %v2619 = vadd.f32 0.0, %v2618
      %v2620 = vpop.f32.mrb[0].mxu0
      %2621 = vmatprep.mubr.bf16.mxu0 0
      %2622 = vmatmul.mubr.bf16.gmra.mrb[0].mxu0 %v729
      %v2623 = vpop.f32.mrb[0].mxu0
      %v2624 = vadd.f32 0.0, %v2623
      %v2625 = vpop.f32.mrb[0].mxu0
      %v2626 = vpop.f32.mrb[0].mxu0
      %v2627 = vadd.f32 0.0, %v2626
      %v2628 = vpop.f32.mrb[0].mxu0
      %2629 = vmatprep.mubr.bf16.mxu0 0
      %2630 = vmatmul.mubr.bf16.gmra.mrb[0].mxu0 %v732
      %v2631 = vpop.f32.mrb[0].mxu0
      %v2632 = vadd.f32 0.0, %v2631
      %v2633 = vpop.f32.mrb[0].mxu0
      %v2634 = vpop.f32.mrb[0].mxu0
      %v2635 = vadd.f32 0.0, %v2634
      %v2636 = vpop.f32.mrb[0].mxu0
      %2637 = vmatprep.mubr.bf16.mxu0 0
      %2638 = vmatmul.mubr.bf16.gmra.mrb[0].mxu0 %v735
      %v2639 = vpop.f32.mrb[0].mxu0
      %v2640 = vadd.f32 0.0, %v2639
      %v2641 = vpop.f32.mrb[0].mxu0
      %v2642 = vpop.f32.mrb[0].mxu0
      %v2643 = vadd.f32 0.0, %v2642
      %v2644 = vpop.f32.mrb[0].mxu0
      %2645 = vmatprep.mubr.bf16.mxu0 0
      %2646 = vmatmul.mubr.bf16.gmra.mrb[0].mxu0 %v738
      %v2647 = vpop.f32.mrb[0].mxu0
      %v2648 = vadd.f32 0.0, %v2647
      %v2649 = vpop.f32.mrb[0].mxu0
      %v2650 = vpop.f32.mrb[0].mxu0
      %v2651 = vadd.f32 0.0, %v2650
      %v2652 = vpop.f32.mrb[0].mxu0
      %2653 = vmatprep.mubr.bf16.mxu0 0
      %2654 = vmatmul.mubr.bf16.gmra.mrb[0].mxu0 %v1858
      %v2655 = vpop.f32.mrb[0].mxu0
      %v2656 = vadd.f32 0.0, %v2655
      %v2657 = vpop.f32.mrb[0].mxu0
      %v2658 = vpop.f32.mrb[0].mxu0
      %v2659 = vadd.f32 0.0, %v2658
      %v2660 = vpop.f32.mrb[0].mxu0
      %2661 = vmatprep.mubr.bf16.mxu0 0
      %2662 = vmatmul.mubr.bf16.gmra.mrb[0].mxu0 %v2504
      %v2663 = vpop.f32.mrb[0].mxu0
      %v2664 = vadd.f32 0.0, %v2663
      %v2665 = vpop.f32.mrb[0].mxu0
      %v2666 = vpop.f32.mrb[0].mxu0
      %v2667 = vadd.f32 0.0, %v2666
      %v2668 = vpop.f32.mrb[0].mxu0
      %2669 = vdwg.mxu0
      %v2670 = vadd.f32 %v2442, %v2544
      %v2671 = vadd.f32 %v2443, %v2547
      %v2672 = vadd.f32 %v2444, %v2552
      %v2673 = vadd.f32 %v2445, %v2555
      %v2674 = vadd.f32 %v2446, %v2560
      %v2675 = vadd.f32 %v2447, %v2563
      %v2676 = vadd.f32 %v2448, %v2568
      %v2677 = vadd.f32 %v2449, %v2571
      %v2678 = vadd.f32 %v2450, %v2576
      %v2679 = vadd.f32 %v2451, %v2579
      %v2680 = vadd.f32 %v2452, %v2584
      %v2681 = vadd.f32 %v2453, %v2587
      %v2682 = vadd.f32 %v2454, %v2592
      %v2683 = vadd.f32 %v2455, %v2595
      %v2684 = vadd.f32 %v2456, %v2600
      %v2685 = vadd.f32 %v2457, %v2603
      %v2686 = vadd.f32 %v2458, %v2608
      %v2687 = vadd.f32 %v2459, %v2611
      %v2688 = vadd.f32 %v2460, %v2616
      %v2689 = vadd.f32 %v2461, %v2619
      %v2690 = vadd.f32 %v2462, %v2624
      %v2691 = vadd.f32 %v2463, %v2627
      %v2692 = vadd.f32 %v2464, %v2632
      %v2693 = vadd.f32 %v2465, %v2635
      %v2694 = vadd.f32 %v2466, %v2640
      %v2695 = vadd.f32 %v2467, %v2643
      %v2696 = vadd.f32 %v2468, %v2648
      %v2697 = vadd.f32 %v2469, %v2651
      %v2698 = vadd.f32 %v2470, %v2656
      %v2699 = vadd.f32 %v2471, %v2659
      %v2700 = vadd.f32 %v2472, %v2664
      %v2701 = vadd.f32 %v2473, %v2667
      %v2703 = vrot.slane %v250, 5
      %v2704 = vrot.slane %v2703, 4
      %v2705 = vrot.slane %v251, 5
      %v2706 = vsel %vm1215, %v2704, %v2705
      %v2707 = vrot.slane %v2705, 4
      %v2708 = vrot.slane %v252, 5
      %v2709 = vsel %vm1215, %v2707, %v2708
      %s2710 = scalar_lea.vmem %s1, 32
      %v2711 = vld [vmem:[%s2710] sm:$0xf]
      %v2712 = vunpack.c.l.b16 %v2706
      %v2713 = vunpack.c.l.b16 %v2709
      %v2714 = vpack.c.b16 %v2713, %v2712
      %v2716 = vsel %vm691, %v2714, 0
      %v2719 = vsel %vm740, %v2711, 0
      %2721 = vmatprep.subr.bf16.mxu0 0
      %2722 = vmatpush1.bf16.msra.mxu0 %v2719
      %2723 = vmatprep.subr.bf16.mxu0 0
      %2724 = vmatpush1.bf16.msra.mxu0 0
      %2725 = vmatprep.subr.bf16.mxu0 0
      %2726 = vmatpush1.bf16.msra.mxu0 0
      %2727 = vmatprep.subr.bf16.mxu0 0
      %2728 = vmatpush1.bf16.msra.mxu0 0
      %2729 = vmatprep.subr.bf16.mxu0 0
      %2730 = vmatpush1.bf16.msra.mxu0 0
      %2731 = vmatprep.subr.bf16.mxu0 0
      %2732 = vmatpush1.bf16.msra.mxu0 0
      %2733 = vmatprep.subr.bf16.mxu0 0
      %2734 = vmatpush1.bf16.msra.mxu0 0
      %2735 = vmatprep.subr.bf16.mxu0 0
      %2736 = vmatpush1.bf16.msra.mxu0 0
      %2737 = vmatprep.subr.bf16.mxu0 0
      %2738 = vmatpush1.bf16.msra.mxu0 0
      %2739 = vmatprep.subr.bf16.mxu0 0
      %2740 = vmatpush1.bf16.msra.mxu0 0
      %2741 = vmatprep.subr.bf16.mxu0 0
      %2742 = vmatpush1.bf16.msra.mxu0 0
      %2743 = vmatprep.subr.bf16.mxu0 0
      %2744 = vmatpush1.bf16.msra.mxu0 0
      %2745 = vmatprep.subr.bf16.mxu0 0
      %2746 = vmatpush1.bf16.msra.mxu0 0
      %2747 = vmatprep.subr.bf16.mxu0 0
      %2748 = vmatpush1.bf16.msra.mxu0 0
      %2749 = vmatprep.subr.bf16.mxu0 0
      %2750 = vmatpush1.bf16.msra.mxu0 0
      %2751 = vmatprep.subr.bf16.mxu0 0
      %2752 = vmatpush1.bf16.msra.mxu0 0
      %2753 = vmatprep.mubr.bf16.mxu0 0
      %2754 = vmatmul.mubr.bf16.gmra.mrb[0].mxu0 %v1385
      %v2755 = vpop.f32.mrb[0].mxu0
      %v2756 = vadd.f32 0.0, %v2755
      %v2757 = vpop.f32.mrb[0].mxu0
      %v2758 = vpop.f32.mrb[0].mxu0
      %v2759 = vadd.f32 0.0, %v2758
      %v2760 = vpop.f32.mrb[0].mxu0
      %2761 = vmatprep.mubr.bf16.mxu0 0
      %2762 = vmatmul.mubr.bf16.gmra.mrb[0].mxu0 %v1388
      %v2763 = vpop.f32.mrb[0].mxu0
      %v2764 = vadd.f32 0.0, %v2763
      %v2765 = vpop.f32.mrb[0].mxu0
      %v2766 = vpop.f32.mrb[0].mxu0
      %v2767 = vadd.f32 0.0, %v2766
      %v2768 = vpop.f32.mrb[0].mxu0
      %2769 = vmatprep.mubr.bf16.mxu0 0
      %2770 = vmatmul.mubr.bf16.gmra.mrb[0].mxu0 %v1391
      %v2771 = vpop.f32.mrb[0].mxu0
      %v2772 = vadd.f32 0.0, %v2771
      %v2773 = vpop.f32.mrb[0].mxu0
      %v2774 = vpop.f32.mrb[0].mxu0
      %v2775 = vadd.f32 0.0, %v2774
      %v2776 = vpop.f32.mrb[0].mxu0
      %2777 = vmatprep.mubr.bf16.mxu0 0
      %2778 = vmatmul.mubr.bf16.gmra.mrb[0].mxu0 %v1394
      %v2779 = vpop.f32.mrb[0].mxu0
      %v2780 = vadd.f32 0.0, %v2779
      %v2781 = vpop.f32.mrb[0].mxu0
      %v2782 = vpop.f32.mrb[0].mxu0
      %v2783 = vadd.f32 0.0, %v2782
      %v2784 = vpop.f32.mrb[0].mxu0
      %2785 = vmatprep.mubr.bf16.mxu0 0
      %2786 = vmatmul.mubr.bf16.gmra.mrb[0].mxu0 %v1397
      %v2787 = vpop.f32.mrb[0].mxu0
      %v2788 = vadd.f32 0.0, %v2787
      %v2789 = vpop.f32.mrb[0].mxu0
      %v2790 = vpop.f32.mrb[0].mxu0
      %v2791 = vadd.f32 0.0, %v2790
      %v2792 = vpop.f32.mrb[0].mxu0
      %2793 = vmatprep.mubr.bf16.mxu0 0
      %2794 = vmatmul.mubr.bf16.gmra.mrb[0].mxu0 %v1400
      %v2795 = vpop.f32.mrb[0].mxu0
      %v2796 = vadd.f32 0.0, %v2795
      %v2797 = vpop.f32.mrb[0].mxu0
      %v2798 = vpop.f32.mrb[0].mxu0
      %v2799 = vadd.f32 0.0, %v2798
      %v2800 = vpop.f32.mrb[0].mxu0
      %2801 = vmatprep.mubr.bf16.mxu0 0
      %2802 = vmatmul.mubr.bf16.gmra.mrb[0].mxu0 %v1403
      %v2803 = vpop.f32.mrb[0].mxu0
      %v2804 = vadd.f32 0.0, %v2803
      %v2805 = vpop.f32.mrb[0].mxu0
      %v2806 = vpop.f32.mrb[0].mxu0
      %v2807 = vadd.f32 0.0, %v2806
      %v2808 = vpop.f32.mrb[0].mxu0
      %2809 = vmatprep.mubr.bf16.mxu0 0
      %2810 = vmatmul.mubr.bf16.gmra.mrb[0].mxu0 %v1406
      %v2811 = vpop.f32.mrb[0].mxu0
      %v2812 = vadd.f32 0.0, %v2811
      %v2813 = vpop.f32.mrb[0].mxu0
      %v2814 = vpop.f32.mrb[0].mxu0
      %v2815 = vadd.f32 0.0, %v2814
      %v2816 = vpop.f32.mrb[0].mxu0
      %2817 = vmatprep.mubr.bf16.mxu0 0
      %2818 = vmatmul.mubr.bf16.gmra.mrb[0].mxu0 %v1409
      %v2819 = vpop.f32.mrb[0].mxu0
      %v2820 = vadd.f32 0.0, %v2819
      %v2821 = vpop.f32.mrb[0].mxu0
      %v2822 = vpop.f32.mrb[0].mxu0
      %v2823 = vadd.f32 0.0, %v2822
      %v2824 = vpop.f32.mrb[0].mxu0
      %2825 = vmatprep.mubr.bf16.mxu0 0
      %2826 = vmatmul.mubr.bf16.gmra.mrb[0].mxu0 %v1412
      %v2827 = vpop.f32.mrb[0].mxu0
      %v2828 = vadd.f32 0.0, %v2827
      %v2829 = vpop.f32.mrb[0].mxu0
      %v2830 = vpop.f32.mrb[0].mxu0
      %v2831 = vadd.f32 0.0, %v2830
      %v2832 = vpop.f32.mrb[0].mxu0
      %2833 = vmatprep.mubr.bf16.mxu0 0
      %2834 = vmatmul.mubr.bf16.gmra.mrb[0].mxu0 %v1415
      %v2835 = vpop.f32.mrb[0].mxu0
      %v2836 = vadd.f32 0.0, %v2835
      %v2837 = vpop.f32.mrb[0].mxu0
      %v2838 = vpop.f32.mrb[0].mxu0
      %v2839 = vadd.f32 0.0, %v2838
      %v2840 = vpop.f32.mrb[0].mxu0
      %2841 = vmatprep.mubr.bf16.mxu0 0
      %2842 = vmatmul.mubr.bf16.gmra.mrb[0].mxu0 %v1418
      %v2843 = vpop.f32.mrb[0].mxu0
      %v2844 = vadd.f32 0.0, %v2843
      %v2845 = vpop.f32.mrb[0].mxu0
      %v2846 = vpop.f32.mrb[0].mxu0
      %v2847 = vadd.f32 0.0, %v2846
      %v2848 = vpop.f32.mrb[0].mxu0
      %2849 = vmatprep.mubr.bf16.mxu0 0
      %2850 = vmatmul.mubr.bf16.gmra.mrb[0].mxu0 %v1421
      %v2851 = vpop.f32.mrb[0].mxu0
      %v2852 = vadd.f32 0.0, %v2851
      %v2853 = vpop.f32.mrb[0].mxu0
      %v2854 = vpop.f32.mrb[0].mxu0
      %v2855 = vadd.f32 0.0, %v2854
      %v2856 = vpop.f32.mrb[0].mxu0
      %2857 = vmatprep.mubr.bf16.mxu0 0
      %2858 = vmatmul.mubr.bf16.gmra.mrb[0].mxu0 %v1424
      %v2859 = vpop.f32.mrb[0].mxu0
      %v2860 = vadd.f32 0.0, %v2859
      %v2861 = vpop.f32.mrb[0].mxu0
      %v2862 = vpop.f32.mrb[0].mxu0
      %v2863 = vadd.f32 0.0, %v2862
      %v2864 = vpop.f32.mrb[0].mxu0
      %2865 = vmatprep.mubr.bf16.mxu0 0
      %2866 = vmatmul.mubr.bf16.gmra.mrb[0].mxu0 %v2070
      %v2867 = vpop.f32.mrb[0].mxu0
      %v2868 = vadd.f32 0.0, %v2867
      %v2869 = vpop.f32.mrb[0].mxu0
      %v2870 = vpop.f32.mrb[0].mxu0
      %v2871 = vadd.f32 0.0, %v2870
      %v2872 = vpop.f32.mrb[0].mxu0
      %2873 = vmatprep.mubr.bf16.mxu0 0
      %2874 = vmatmul.mubr.bf16.gmra.mrb[0].mxu0 %v2716
      %v2875 = vpop.f32.mrb[0].mxu0
      %v2876 = vadd.f32 0.0, %v2875
      %v2877 = vpop.f32.mrb[0].mxu0
      %v2878 = vpop.f32.mrb[0].mxu0
      %v2879 = vadd.f32 0.0, %v2878
      %v2880 = vpop.f32.mrb[0].mxu0
      %2881 = vdwg.mxu0
      %v2882 = vadd.f32 %v2670, %v2756
      %v2883 = vadd.f32 %v2671, %v2759
      %v2884 = vadd.f32 %v2672, %v2764
      %v2885 = vadd.f32 %v2673, %v2767
      %v2886 = vadd.f32 %v2674, %v2772
      %v2887 = vadd.f32 %v2675, %v2775
      %v2888 = vadd.f32 %v2676, %v2780
      %v2889 = vadd.f32 %v2677, %v2783
      %v2890 = vadd.f32 %v2678, %v2788
      %v2891 = vadd.f32 %v2679, %v2791
      %v2892 = vadd.f32 %v2680, %v2796
      %v2893 = vadd.f32 %v2681, %v2799
      %v2894 = vadd.f32 %v2682, %v2804
      %v2895 = vadd.f32 %v2683, %v2807
      %v2896 = vadd.f32 %v2684, %v2812
      %v2897 = vadd.f32 %v2685, %v2815
      %v2898 = vadd.f32 %v2686, %v2820
      %v2899 = vadd.f32 %v2687, %v2823
      %v2900 = vadd.f32 %v2688, %v2828
      %v2901 = vadd.f32 %v2689, %v2831
      %v2902 = vadd.f32 %v2690, %v2836
      %v2903 = vadd.f32 %v2691, %v2839
      %v2904 = vadd.f32 %v2692, %v2844
      %v2905 = vadd.f32 %v2693, %v2847
      %v2906 = vadd.f32 %v2694, %v2852
      %v2907 = vadd.f32 %v2695, %v2855
      %v2908 = vadd.f32 %v2696, %v2860
      %v2909 = vadd.f32 %v2697, %v2863
      %v2910 = vadd.f32 %v2698, %v2868
      %v2911 = vadd.f32 %v2699, %v2871
      %v2912 = vadd.f32 %v2700, %v2876
      %v2913 = vadd.f32 %v2701, %v2879
      %v2914 = vld [vmem:[%s2] sm:$0x1]
      %v2916 = vlaneseq
      %v2917 = vshrl.u32 %v2916, 7
      %v2918 = vsub.s32 0, %v2917
      %v2919 = vrot.slane %v2914, %v2918
      %v2921 = vmul.f32 %v2882, %v2919
      %v2922 = vmul.f32 %v2883, %v2919
      %v2923 = vmul.f32 %v2884, %v2919
      %v2924 = vmul.f32 %v2885, %v2919
      %v2925 = vmul.f32 %v2886, %v2919
      %v2926 = vmul.f32 %v2887, %v2919
      %v2927 = vmul.f32 %v2888, %v2919
      %v2928 = vmul.f32 %v2889, %v2919
      %v2929 = vmul.f32 %v2890, %v2919
      %v2930 = vmul.f32 %v2891, %v2919
      %v2931 = vmul.f32 %v2892, %v2919
      %v2932 = vmul.f32 %v2893, %v2919
      %v2933 = vmul.f32 %v2894, %v2919
      %v2934 = vmul.f32 %v2895, %v2919
      %v2935 = vmul.f32 %v2896, %v2919
      %v2936 = vmul.f32 %v2897, %v2919
      %v2937 = vmul.f32 %v2898, %v2919
      %v2938 = vmul.f32 %v2899, %v2919
      %v2939 = vmul.f32 %v2900, %v2919
      %v2940 = vmul.f32 %v2901, %v2919
      %v2941 = vmul.f32 %v2902, %v2919
      %v2942 = vmul.f32 %v2903, %v2919
      %v2943 = vmul.f32 %v2904, %v2919
      %v2944 = vmul.f32 %v2905, %v2919
      %v2945 = vmul.f32 %v2906, %v2919
      %v2946 = vmul.f32 %v2907, %v2919
      %v2947 = vmul.f32 %v2908, %v2919
      %v2948 = vmul.f32 %v2909, %v2919
      %v2949 = vmul.f32 %v2910, %v2919
      %v2950 = vmul.f32 %v2911, %v2919
      %v2951 = vmul.f32 %v2912, %v2919
      %v2952 = vmul.f32 %v2913, %v2919
      %v2953 = vld [vmem:[%s3] sm:$0x1]
      %v2955 = vlaneseq
      %v2956 = vshrl.u32 %v2955, 7
      %v2957 = vsub.s32 0, %v2956
      %v2958 = vrot.slane %v2953, %v2957
      %v2960 = vadd.f32 %v2921, %v2958
      %v2961 = vadd.f32 %v2922, %v2958
      %v2962 = vadd.f32 %v2923, %v2958
      %v2963 = vadd.f32 %v2924, %v2958
      %v2964 = vadd.f32 %v2925, %v2958
      %v2965 = vadd.f32 %v2926, %v2958
      %v2966 = vadd.f32 %v2927, %v2958
      %v2967 = vadd.f32 %v2928, %v2958
      %v2968 = vadd.f32 %v2929, %v2958
      %v2969 = vadd.f32 %v2930, %v2958
      %v2970 = vadd.f32 %v2931, %v2958
      %v2971 = vadd.f32 %v2932, %v2958
      %v2972 = vadd.f32 %v2933, %v2958
      %v2973 = vadd.f32 %v2934, %v2958
      %v2974 = vadd.f32 %v2935, %v2958
      %v2975 = vadd.f32 %v2936, %v2958
      %v2976 = vadd.f32 %v2937, %v2958
      %v2977 = vadd.f32 %v2938, %v2958
      %v2978 = vadd.f32 %v2939, %v2958
      %v2979 = vadd.f32 %v2940, %v2958
      %v2980 = vadd.f32 %v2941, %v2958
      %v2981 = vadd.f32 %v2942, %v2958
      %v2982 = vadd.f32 %v2943, %v2958
      %v2983 = vadd.f32 %v2944, %v2958
      %v2984 = vadd.f32 %v2945, %v2958
      %v2985 = vadd.f32 %v2946, %v2958
      %v2986 = vadd.f32 %v2947, %v2958
      %v2987 = vadd.f32 %v2948, %v2958
      %v2988 = vadd.f32 %v2949, %v2958
      %v2989 = vadd.f32 %v2950, %v2958
      %v2990 = vadd.f32 %v2951, %v2958
      %v2991 = vadd.f32 %v2952, %v2958
      %2992 = vst [vmem:[%s197] sm:$0xff] %v2960
      %2993 = vst [vmem:[%s197 + $0x8] sm:$0xff] %v2961
      %2994 = vst [vmem:[%s197 + $0x10] sm:$0xff] %v2962
      %2995 = vst [vmem:[%s197 + $0x18] sm:$0xff] %v2963
      %2996 = vst [vmem:[%s197 + $0x20] sm:$0xff] %v2964
      %2997 = vst [vmem:[%s197 + $0x28] sm:$0xff] %v2965
      %2998 = vst [vmem:[%s197 + $0x30] sm:$0xff] %v2966
      %2999 = vst [vmem:[%s197 + $0x38] sm:$0xff] %v2967
      %3000 = vst [vmem:[%s197 + $0x40] sm:$0xff] %v2968
      %3001 = vst [vmem:[%s197 + $0x48] sm:$0xff] %v2969
      %3002 = vst [vmem:[%s197 + $0x50] sm:$0xff] %v2970
      %3003 = vst [vmem:[%s197 + $0x58] sm:$0xff] %v2971
      %3004 = vst [vmem:[%s197 + $0x60] sm:$0xff] %v2972
      %3005 = vst [vmem:[%s197 + $0x68] sm:$0xff] %v2973
      %3006 = vst [vmem:[%s197 + $0x70] sm:$0xff] %v2974
      %3007 = vst [vmem:[%s197 + $0x78] sm:$0xff] %v2975
      %3008 = vst [vmem:[%s197 + $0x80] sm:$0xff] %v2976
      %3009 = vst [vmem:[%s197 + $0x88] sm:$0xff] %v2977
      %3010 = vst [vmem:[%s197 + $0x90] sm:$0xff] %v2978
      %3011 = vst [vmem:[%s197 + $0x98] sm:$0xff] %v2979
      %3012 = vst [vmem:[%s197 + $0xa0] sm:$0xff] %v2980
      %3013 = vst [vmem:[%s197 + $0xa8] sm:$0xff] %v2981
      %3014 = vst [vmem:[%s197 + $0xb0] sm:$0xff] %v2982
      %3015 = vst [vmem:[%s197 + $0xb8] sm:$0xff] %v2983
      %3016 = vst [vmem:[%s197 + $0xc0] sm:$0xff] %v2984
      %3017 = vst [vmem:[%s197 + $0xc8] sm:$0xff] %v2985
      %3018 = vst [vmem:[%s197 + $0xd0] sm:$0xff] %v2986
      %3019 = vst [vmem:[%s197 + $0xd8] sm:$0xff] %v2987
      %3020 = vst [vmem:[%s197 + $0xe0] sm:$0xff] %v2988
      %3021 = vst [vmem:[%s197 + $0xe8] sm:$0xff] %v2989
      %3022 = vst [vmem:[%s197 + $0xf0] sm:$0xff] %v2990
      %3023 = vst [vmem:[%s197 + $0xf8] sm:$0xff] %v2991
      %p3024 = scmp.lt.s32.totalorder %s15, 1
      %s3025 = scalar_select %p3024, %s15, 1
      %s3026 = smul.addr %s3025, 32
      %s3027 = smul.addr %s3026, 8
      %s3028 = scalar_lea.vmem %s4, %s3027
      // Predicated region
      $region37: #{conv_forward.3} parent=35 // pred_check
        %p3029 = pneg %p122
      $region38: #{conv_forward.3} parent=35 // pred_check_branch
        %3031 = sbr.rel (%p3029) target = $region40
      $region39: #{conv_forward.3} parent=35 // pred_region
        _
      $region40: #{conv_forward.3} parent=35 // pred_fallthru
        _
    $region36: #{conv_forward.3} parent=5 // pred_fallthru
      _
    %p3032 = scmp.le.s32.totalorder 2, %s10
    // Predicated region
    $region41: #{conv_forward.3} parent=5 // pred_check
      %p3033 = pneg %p3032
    $region42: #{conv_forward.3} parent=5 // pred_check_branch
      %3035 = sbr.rel (%p3033) target = $region44
    $region43: #{conv_forward.3} parent=5 // pred_region
      %s3036 = ssub.s32 %s10, 2
      // Predicated region
      $region45: #{conv_forward.3} parent=43 // pred_check
        %p3037 = pneg %p128
      $region46: #{conv_forward.3} parent=43 // pred_check_branch
        %3039 = sbr.rel (%p3037) target = $region48
      $region47: #{conv_forward.3} parent=43 // pred_region
        %p3040 = scmp.lt.s32.totalorder %s16, 1
        %s3041 = scalar_select %p3040, %s16, 1
        %s3042 = smul.addr %s3041, 32
        %s3043 = smul.addr %s3042, 8
        %s3044 = scalar_lea.vmem %s4, %s3043
      $region48: #{conv_forward.3} parent=43 // pred_fallthru
        _
    $region44: #{conv_forward.3} parent=5 // pred_fallthru
      _
  $region6: #{conv_forward.3} parent=0 // loop_footer
    %s14 = sadd.s32 1, %s10
  $region7: #{conv_forward.3} parent=0 // loop_footer_branch
    %9 = sbr.rel target = $region3
  $region8: #{conv_forward.3} parent=0 // loop_exit
    _

</llo_original>
